<compile_context>
chip_gen: v6e
topology: v6e:2x2x1
jax: 0.10.0
libtpu: 0.0.40
codegen_flags: <defaults>
</compile_context>

<pallas_src>
import numpy as np
import jax
import jax.numpy as jnp
from jax.experimental import pallas as pl
from jax.experimental.pallas import tpu as pltpu


def _ceil_to(n, m):
    return (n + m - 1) // m * m


def blstm_forward(x, params):
    """Pallas BLSTM forward. x: (B, T, D) float32 -> (B, 1) float32."""
    (wih_f, whh_f, b_f, wih_b, whh_b, b_b, w_fcn, b_fcn, w_out, b_out) = params
    B, T, D = x.shape
    H = whh_f.shape[1]          # whh_*: (4H, H)  (PyTorch layout)
    F = w_fcn.shape[0]          # w_fcn: (F, 2H)  (PyTorch layout)
    G = 4 * H
    G2 = 8 * H
    assert F <= G2, "packed-slab lane width assumes F <= 8H"

    f32 = jnp.float32
    HI = jax.lax.Precision.HIGHEST

    # ---- glue: fuse / transpose params into kernel-friendly layouts ----
    # fwd+bwd input weights fused -> one (D, 8H) RHS (8H = 256 lanes at H=32,
    # matching the 256-wide MXU on v6e/v7x).
    wih_fused = jnp.concatenate([wih_f.T, wih_b.T], axis=1).astype(f32)   # (D, 8H)
    # b = b_ih + b_hh must be pre-combined when importing PyTorch weights.
    b_fused = jnp.concatenate([b_f, b_b]).reshape(1, G2).astype(f32)      # (1, 8H)

    # Pack every other (tiny) parameter into ONE lane-padded slab so the kernel
    # issues 3 input DMAs total (x, wih_fused, slab) instead of 9.
    def seg(a, rows_used):
        rows = _ceil_to(rows_used, 8)                 # sublane-aligned segment starts
        a = a.astype(f32)
        return jnp.pad(a, ((0, rows - a.shape[0]), (0, G2 - a.shape[1]))), rows

    layout = {
        "whh":   (whh_f.T,             H),            # (H, 4H) fwd recurrent weights
        "bfuse": (b_fused,             1),            # (1, 8H) fused biases
        "wfcn":  (w_fcn.T,             2 * H),        # (2H, F)
        "bfcn":  (b_fcn.reshape(1, F), 1),            # (1, F)
        "wout":  (w_out.reshape(1, F), 1),            # (1, F) row vector (VPU head)
        "bout":  (b_out.reshape(1, 1), 1),            # (1, 1)
    }
    pieces, offs, row = [], {}, 0
    for name, (arr, used) in layout.items():
        padded, rows = seg(arr, used)
        offs[name] = row
        pieces.append(padded)
        row += rows
    slab = jnp.concatenate(pieces, axis=0)            # (row, 8H), ~128 KiB at H=32

    # Time-major, flattened: input projection is one (T*B, D) @ (D, 8H) matmul.
    x_tm = jnp.transpose(x, (1, 0, 2)).reshape(T * B, D).astype(f32)

    def kernel(x_ref, wih_ref, p_ref, pred_ref, xg_ref):
        # One wide input projection for both directions and all timesteps, with
        # the biases folded in here (so the serial loop has no per-step bias add).
        b_all = p_ref[offs["bfuse"]:offs["bfuse"] + 1, :]                  # (1, 8H)
        xg_ref[...] = (jnp.dot(x_ref[...], wih_ref[...],
                               preferred_element_type=f32, precision=HI)
                       + b_all)

        whh = p_ref[offs["whh"]:offs["whh"] + H, 0:G]                      # (H, 4H)

        def gate_slices(gates):
            # 2 EUP passes (full-vreg sigmoid + full-vreg tanh) instead of 4
            # quarter-vreg activations; slice i/f/o from the sigmoid result and
            # g from the tanh result.
            sg = jax.nn.sigmoid(gates)
            th = jnp.tanh(gates)
            i = sg[:, 0 * H:1 * H]
            f = sg[:, 1 * H:2 * H]
            g = th[:, 2 * H:3 * H]
            o = sg[:, 3 * H:4 * H]
            return i, f, g, o

        # Forward recurrence; h/c carried in vregs across a static unroll,
        # per-step gates re-loaded from the xg VMEM scratch (low vreg pressure).
        h = None
        c = None
        for t in range(T):
            gates = xg_ref[t * B:(t + 1) * B, 0:G]                         # (B, 4H)
            if t > 0:
                gates = gates + jnp.dot(h, whh,
                                        preferred_element_type=f32, precision=HI)
            i, f, g, o = gate_slices(gates)
            c = i * g if t == 0 else f * c + i * g                         # c0 == 0
            h = o * jnp.tanh(c)

        # Backward direction: lstm_out[:, -1, H:] is the backward state after a
        # single step on x[:, T-1] from zero init -> computed exactly once.
        gb = xg_ref[(T - 1) * B:T * B, G:G2]                               # (B, 4H)
        ib, _fb, gg, ob = gate_slices(gb)
        cb = ib * gg                                                       # f * c0 == 0
        hb = ob * jnp.tanh(cb)

        # Head: Linear(2H -> F) on the MXU, then Linear(F -> 1) as a VPU
        # multiply + lane reduction (avoids a 1-lane-wide MXU matmul).
        feat = jnp.concatenate([h, hb], axis=-1)                           # (B, 2H)
        w_fcn_k = p_ref[offs["wfcn"]:offs["wfcn"] + 2 * H, 0:F]
        b_fcn_k = p_ref[offs["bfcn"]:offs["bfcn"] + 1, 0:F]
        fcn = jnp.dot(feat, w_fcn_k, preferred_element_type=f32,
                      precision=HI) + b_fcn_k                              # (B, F)
        w_out_k = p_ref[offs["wout"]:offs["wout"] + 1, 0:F]                # (1, F)
        b_out_k = p_ref[offs["bout"]:offs["bout"] + 1, 0:1]                # (1, 1)
        pred = jnp.sum(fcn * w_out_k, axis=-1, keepdims=True) + b_out_k    # (B, 1)
        pred_ref[...] = pred.astype(pred_ref.dtype)

    vmem = pltpu.MemorySpace.VMEM
    cost = pl.CostEstimate(
        flops=(2 * T * B * D * G2            # input projection
               + 2 * (T - 1) * B * H * G     # recurrence matmuls
               + 2 * B * 2 * H * F           # fcn
               + 2 * B * F),                 # out (VPU)
        transcendentals=(T + 1) * B * 9 * H,
        bytes_accessed=4 * (T * B * D + D * G2 + slab.shape[0] * G2 + B),
    )

    return pl.pallas_call(
        kernel,
        out_shape=jax.ShapeDtypeStruct((B, 1), f32),
        in_specs=[pl.BlockSpec(memory_space=vmem),     # x (time-major, flat)
                  pl.BlockSpec(memory_space=vmem),     # fused input weights
                  pl.BlockSpec(memory_space=vmem)],    # packed param slab
        out_specs=pl.BlockSpec(memory_space=vmem),
        scratch_shapes=[pltpu.VMEM((T * B, G2), f32)], # xg scratch
        cost_estimate=cost,
    )(x_tm, wih_fused, slab)


def blstm_ref(x, params):
    """Pure-JAX reference with identical semantics (for verification)."""
    (wih_f, whh_f, b_f, wih_b, whh_b, b_b, w_fcn, b_fcn, w_out, b_out) = params
    B, T, D = x.shape
    H = whh_f.shape[1]
    HI = jax.lax.Precision.HIGHEST

    def cell(xt, h, c, wih, whh, b):
        g = (jnp.dot(xt, wih.T, precision=HI)
             + jnp.dot(h, whh.T, precision=HI) + b)
        i = jax.nn.sigmoid(g[:, :H])
        f = jax.nn.sigmoid(g[:, H:2 * H])
        gg = jnp.tanh(g[:, 2 * H:3 * H])
        o = jax.nn.sigmoid(g[:, 3 * H:])
        c = f * c + i * gg
        h = o * jnp.tanh(c)
        return h, c

    hf = jnp.zeros((B, H), jnp.float32)
    cf = jnp.zeros((B, H), jnp.float32)
    for t in range(T):
        hf, cf = cell(x[:, t], hf, cf, wih_f, whh_f, b_f)
    hb0 = jnp.zeros((B, H), jnp.float32)
    cb0 = jnp.zeros((B, H), jnp.float32)
    hb1, _ = cell(x[:, T - 1], hb0, cb0, wih_b, whh_b, b_b)  # bwd output at pos T-1
    feat = jnp.concatenate([hf, hb1], axis=-1)
    fcn = jnp.dot(feat, w_fcn.T, precision=HI) + b_fcn
    return jnp.dot(fcn, w_out.T, precision=HI) + b_out


def make_params(key, D, H, F):
    """Deterministic PyTorch-like init (uniform(-1/sqrt(H), 1/sqrt(H)))."""
    ks = jax.random.split(key, 10)
    s = 1.0 / np.sqrt(H)
    u = lambda k, shape: jax.random.uniform(k, shape, jnp.float32, -s, s)
    wih_f = u(ks[0], (4 * H, D))
    whh_f = u(ks[1], (4 * H, H))
    b_f = u(ks[2], (4 * H,))          # combined b_ih + b_hh
    wih_b = u(ks[3], (4 * H, D))
    whh_b = u(ks[4], (4 * H, H))
    b_b = u(ks[5], (4 * H,))
    w_fcn = u(ks[6], (F, 2 * H))
    b_fcn = u(ks[7], (F,))
    w_out = u(ks[8], (1, F))
    b_out = u(ks[9], (1,))
    return (wih_f, whh_f, b_f, wih_b, whh_b, b_b, w_fcn, b_fcn, w_out, b_out)


if __name__ == "__main__":
    B, T, D, H, F = 8, 8, 16, 32, 32   # batch, seq, lstm_input, lstm_hidden, fcn_hidden
    key = jax.random.PRNGKey(0)
    kx, kp = jax.random.split(key)
    x = jax.random.normal(kx, (B, T, D), jnp.float32)
    params = make_params(kp, D, H, F)

    pred = jax.block_until_ready(blstm_forward(x, params))
    ref = jax.block_until_ready(blstm_ref(x, params))

    assert pred.shape == (B, 1), pred.shape
    np.testing.assert_allclose(np.asarray(pred), np.asarray(ref), atol=1e-4, rtol=1e-4)
    print("KERNEL_OK")
</pallas_src>

<mosaic_0001>
module attributes {stable_mosaic.version = 11 : i64} {
  func.func @kernel(%arg0: memref<64x16xf32, #tpu.memory_space<vmem>>, %arg1: memref<16x256xf32, #tpu.memory_space<vmem>>, %arg2: memref<128x256xf32, #tpu.memory_space<vmem>>, %arg3: memref<8x1xf32, #tpu.memory_space<vmem>>, %arg4: memref<64x256xf32, #tpu.memory_space<vmem>>) attributes {dimension_semantics = [], scalar_prefetch = 0 : i64, scratch_operands = 1 : i64, tpu.core_type = #tpu.core_type<tc>} {
    %c32 = arith.constant 32 : index
    %c0 = arith.constant 0 : index
    %0 = vector.load %arg2[%c32, %c0] : memref<128x256xf32, #tpu.memory_space<vmem>>, vector<1x256xf32>
    %c0_0 = arith.constant 0 : index
    %c0_1 = arith.constant 0 : index
    %1 = vector.load %arg0[%c0_0, %c0_1] : memref<64x16xf32, #tpu.memory_space<vmem>>, vector<64x16xf32>
    %c0_2 = arith.constant 0 : index
    %c0_3 = arith.constant 0 : index
    %2 = vector.load %arg1[%c0_2, %c0_3] : memref<16x256xf32, #tpu.memory_space<vmem>>, vector<16x256xf32>
    %cst = arith.constant dense<0.000000e+00> : vector<64x256xf32>
    %3 = tpu.matmul %1, %2, %cst {dimension_numbers = #tpu.dot_dimension_numbers<[1], [0], [0], [1], [0, 0, 1, 1], [], []>, precision = #tpu.contract_precision<fp32>} : vector<64x16xf32>, vector<16x256xf32>, vector<64x256xf32> -> vector<64x256xf32>
    %4 = vector.broadcast %0 : vector<1x256xf32> to vector<64x256xf32>
    %5 = arith.addf %3, %4 : vector<64x256xf32>
    %c0_4 = arith.constant 0 : index
    %c0_5 = arith.constant 0 : index
    %6 = vector.load %arg4[%c0_4, %c0_5] : memref<64x256xf32, #tpu.memory_space<vmem>>, vector<64x256xf32>
    tpu.vector_store %arg4[%c0_4, %c0_5], %5 {strides = array<i32>} : memref<64x256xf32, #tpu.memory_space<vmem>>, vector<64x256xf32>,
    %c0_6 = arith.constant 0 : index
    %c0_7 = arith.constant 0 : index
    %7 = vector.load %arg2[%c0_6, %c0_7] : memref<128x256xf32, #tpu.memory_space<vmem>>, vector<32x128xf32>
    %c0_8 = arith.constant 0 : index
    %c0_9 = arith.constant 0 : index
    %8 = vector.load %arg4[%c0_8, %c0_9] : memref<64x256xf32, #tpu.memory_space<vmem>>, vector<8x128xf32>
    %9 = arith.negf %8 : vector<8x128xf32>
    %10 = math.exp %9 : vector<8x128xf32>
    %cst_10 = arith.constant 1.000000e+00 : f32
    %11 = vector.broadcast %cst_10 : f32 to vector<8x128xf32>
    %12 = arith.addf %11, %10 : vector<8x128xf32>
    %13 = arith.divf %11, %12 : vector<8x128xf32>
    %14 = math.tanh %8 : vector<8x128xf32>
    %15 = vector.extract_strided_slice %13 {offsets = [0, 0], sizes = [8, 32], strides = [1, 1]} : vector<8x128xf32> to vector<8x32xf32>
    %16 = vector.extract_strided_slice %14 {offsets = [0, 64], sizes = [8, 32], strides = [1, 1]} : vector<8x128xf32> to vector<8x32xf32>
    %17 = vector.extract_strided_slice %13 {offsets = [0, 96], sizes = [8, 32], strides = [1, 1]} : vector<8x128xf32> to vector<8x32xf32>
    %18 = arith.mulf %15, %16 : vector<8x32xf32>
    %19 = math.tanh %18 : vector<8x32xf32>
    %20 = arith.mulf %17, %19 : vector<8x32xf32>
    %c8 = arith.constant 8 : index
    %c0_11 = arith.constant 0 : index
    %21 = vector.load %arg4[%c8, %c0_11] : memref<64x256xf32, #tpu.memory_space<vmem>>, vector<8x128xf32>
    %cst_12 = arith.constant dense<0.000000e+00> : vector<8x128xf32>
    %22 = tpu.matmul %20, %7, %cst_12 {dimension_numbers = #tpu.dot_dimension_numbers<[1], [0], [0], [1], [0, 0, 1, 1], [], []>, precision = #tpu.contract_precision<fp32>} : vector<8x32xf32>, vector<32x128xf32>, vector<8x128xf32> -> vector<8x128xf32>
    %23 = arith.addf %21, %22 : vector<8x128xf32>
    %24 = arith.negf %23 : vector<8x128xf32>
    %25 = math.exp %24 : vector<8x128xf32>
    %cst_13 = arith.constant 1.000000e+00 : f32
    %26 = vector.broadcast %cst_13 : f32 to vector<8x128xf32>
    %27 = arith.addf %26, %25 : vector<8x128xf32>
    %28 = arith.divf %26, %27 : vector<8x128xf32>
    %29 = math.tanh %23 : vector<8x128xf32>
    %30 = vector.extract_strided_slice %28 {offsets = [0, 0], sizes = [8, 32], strides = [1, 1]} : vector<8x128xf32> to vector<8x32xf32>
    %31 = vector.extract_strided_slice %28 {offsets = [0, 32], sizes = [8, 32], strides = [1, 1]} : vector<8x128xf32> to vector<8x32xf32>
    %32 = vector.extract_strided_slice %29 {offsets = [0, 64], sizes = [8, 32], strides = [1, 1]} : vector<8x128xf32> to vector<8x32xf32>
    %33 = vector.extract_strided_slice %28 {offsets = [0, 96], sizes = [8, 32], strides = [1, 1]} : vector<8x128xf32> to vector<8x32xf32>
    %34 = arith.mulf %31, %18 : vector<8x32xf32>
    %35 = arith.mulf %30, %32 : vector<8x32xf32>
    %36 = arith.addf %34, %35 : vector<8x32xf32>
    %37 = math.tanh %36 : vector<8x32xf32>
    %38 = arith.mulf %33, %37 : vector<8x32xf32>
    %c16 = arith.constant 16 : index
    %c0_14 = arith.constant 0 : index
    %39 = vector.load %arg4[%c16, %c0_14] : memref<64x256xf32, #tpu.memory_space<vmem>>, vector<8x128xf32>
    %cst_15 = arith.constant dense<0.000000e+00> : vector<8x128xf32>
    %40 = tpu.matmul %38, %7, %cst_15 {dimension_numbers = #tpu.dot_dimension_numbers<[1], [0], [0], [1], [0, 0, 1, 1], [], []>, precision = #tpu.contract_precision<fp32>} : vector<8x32xf32>, vector<32x128xf32>, vector<8x128xf32> -> vector<8x128xf32>
    %41 = arith.addf %39, %40 : vector<8x128xf32>
    %42 = arith.negf %41 : vector<8x128xf32>
    %43 = math.exp %42 : vector<8x128xf32>
    %cst_16 = arith.constant 1.000000e+00 : f32
    %44 = vector.broadcast %cst_16 : f32 to vector<8x128xf32>
    %45 = arith.addf %44, %43 : vector<8x128xf32>
    %46 = arith.divf %44, %45 : vector<8x128xf32>
    %47 = math.tanh %41 : vector<8x128xf32>
    %48 = vector.extract_strided_slice %46 {offsets = [0, 0], sizes = [8, 32], strides = [1, 1]} : vector<8x128xf32> to vector<8x32xf32>
    %49 = vector.extract_strided_slice %46 {offsets = [0, 32], sizes = [8, 32], strides = [1, 1]} : vector<8x128xf32> to vector<8x32xf32>
    %50 = vector.extract_strided_slice %47 {offsets = [0, 64], sizes = [8, 32], strides = [1, 1]} : vector<8x128xf32> to vector<8x32xf32>
    %51 = vector.extract_strided_slice %46 {offsets = [0, 96], sizes = [8, 32], strides = [1, 1]} : vector<8x128xf32> to vector<8x32xf32>
    %52 = arith.mulf %49, %36 : vector<8x32xf32>
    %53 = arith.mulf %48, %50 : vector<8x32xf32>
    %54 = arith.addf %52, %53 : vector<8x32xf32>
    %55 = math.tanh %54 : vector<8x32xf32>
    %56 = arith.mulf %51, %55 : vector<8x32xf32>
    %c24 = arith.constant 24 : index
    %c0_17 = arith.constant 0 : index
    %57 = vector.load %arg4[%c24, %c0_17] : memref<64x256xf32, #tpu.memory_space<vmem>>, vector<8x128xf32>
    %cst_18 = arith.constant dense<0.000000e+00> : vector<8x128xf32>
    %58 = tpu.matmul %56, %7, %cst_18 {dimension_numbers = #tpu.dot_dimension_numbers<[1], [0], [0], [1], [0, 0, 1, 1], [], []>, precision = #tpu.contract_precision<fp32>} : vector<8x32xf32>, vector<32x128xf32>, vector<8x128xf32> -> vector<8x128xf32>
    %59 = arith.addf %57, %58 : vector<8x128xf32>
    %60 = arith.negf %59 : vector<8x128xf32>
    %61 = math.exp %60 : vector<8x128xf32>
    %cst_19 = arith.constant 1.000000e+00 : f32
    %62 = vector.broadcast %cst_19 : f32 to vector<8x128xf32>
    %63 = arith.addf %62, %61 : vector<8x128xf32>
    %64 = arith.divf %62, %63 : vector<8x128xf32>
    %65 = math.tanh %59 : vector<8x128xf32>
    %66 = vector.extract_strided_slice %64 {offsets = [0, 0], sizes = [8, 32], strides = [1, 1]} : vector<8x128xf32> to vector<8x32xf32>
    %67 = vector.extract_strided_slice %64 {offsets = [0, 32], sizes = [8, 32], strides = [1, 1]} : vector<8x128xf32> to vector<8x32xf32>
    %68 = vector.extract_strided_slice %65 {offsets = [0, 64], sizes = [8, 32], strides = [1, 1]} : vector<8x128xf32> to vector<8x32xf32>
    %69 = vector.extract_strided_slice %64 {offsets = [0, 96], sizes = [8, 32], strides = [1, 1]} : vector<8x128xf32> to vector<8x32xf32>
    %70 = arith.mulf %67, %54 : vector<8x32xf32>
    %71 = arith.mulf %66, %68 : vector<8x32xf32>
    %72 = arith.addf %70, %71 : vector<8x32xf32>
    %73 = math.tanh %72 : vector<8x32xf32>
    %74 = arith.mulf %69, %73 : vector<8x32xf32>
    %c32_20 = arith.constant 32 : index
    %c0_21 = arith.constant 0 : index
    %75 = vector.load %arg4[%c32_20, %c0_21] : memref<64x256xf32, #tpu.memory_space<vmem>>, vector<8x128xf32>
    %cst_22 = arith.constant dense<0.000000e+00> : vector<8x128xf32>
    %76 = tpu.matmul %74, %7, %cst_22 {dimension_numbers = #tpu.dot_dimension_numbers<[1], [0], [0], [1], [0, 0, 1, 1], [], []>, precision = #tpu.contract_precision<fp32>} : vector<8x32xf32>, vector<32x128xf32>, vector<8x128xf32> -> vector<8x128xf32>
    %77 = arith.addf %75, %76 : vector<8x128xf32>
    %78 = arith.negf %77 : vector<8x128xf32>
    %79 = math.exp %78 : vector<8x128xf32>
    %cst_23 = arith.constant 1.000000e+00 : f32
    %80 = vector.broadcast %cst_23 : f32 to vector<8x128xf32>
    %81 = arith.addf %80, %79 : vector<8x128xf32>
    %82 = arith.divf %80, %81 : vector<8x128xf32>
    %83 = math.tanh %77 : vector<8x128xf32>
    %84 = vector.extract_strided_slice %82 {offsets = [0, 0], sizes = [8, 32], strides = [1, 1]} : vector<8x128xf32> to vector<8x32xf32>
    %85 = vector.extract_strided_slice %82 {offsets = [0, 32], sizes = [8, 32], strides = [1, 1]} : vector<8x128xf32> to vector<8x32xf32>
    %86 = vector.extract_strided_slice %83 {offsets = [0, 64], sizes = [8, 32], strides = [1, 1]} : vector<8x128xf32> to vector<8x32xf32>
    %87 = vector.extract_strided_slice %82 {offsets = [0, 96], sizes = [8, 32], strides = [1, 1]} : vector<8x128xf32> to vector<8x32xf32>
    %88 = arith.mulf %85, %72 : vector<8x32xf32>
    %89 = arith.mulf %84, %86 : vector<8x32xf32>
    %90 = arith.addf %88, %89 : vector<8x32xf32>
    %91 = math.tanh %90 : vector<8x32xf32>
    %92 = arith.mulf %87, %91 : vector<8x32xf32>
    %c40 = arith.constant 40 : index
    %c0_24 = arith.constant 0 : index
    %93 = vector.load %arg4[%c40, %c0_24] : memref<64x256xf32, #tpu.memory_space<vmem>>, vector<8x128xf32>
    %cst_25 = arith.constant dense<0.000000e+00> : vector<8x128xf32>
    %94 = tpu.matmul %92, %7, %cst_25 {dimension_numbers = #tpu.dot_dimension_numbers<[1], [0], [0], [1], [0, 0, 1, 1], [], []>, precision = #tpu.contract_precision<fp32>} : vector<8x32xf32>, vector<32x128xf32>, vector<8x128xf32> -> vector<8x128xf32>
    %95 = arith.addf %93, %94 : vector<8x128xf32>
    %96 = arith.negf %95 : vector<8x128xf32>
    %97 = math.exp %96 : vector<8x128xf32>
    %cst_26 = arith.constant 1.000000e+00 : f32
    %98 = vector.broadcast %cst_26 : f32 to vector<8x128xf32>
    %99 = arith.addf %98, %97 : vector<8x128xf32>
    %100 = arith.divf %98, %99 : vector<8x128xf32>
    %101 = math.tanh %95 : vector<8x128xf32>
    %102 = vector.extract_strided_slice %100 {offsets = [0, 0], sizes = [8, 32], strides = [1, 1]} : vector<8x128xf32> to vector<8x32xf32>
    %103 = vector.extract_strided_slice %100 {offsets = [0, 32], sizes = [8, 32], strides = [1, 1]} : vector<8x128xf32> to vector<8x32xf32>
    %104 = vector.extract_strided_slice %101 {offsets = [0, 64], sizes = [8, 32], strides = [1, 1]} : vector<8x128xf32> to vector<8x32xf32>
    %105 = vector.extract_strided_slice %100 {offsets = [0, 96], sizes = [8, 32], strides = [1, 1]} : vector<8x128xf32> to vector<8x32xf32>
    %106 = arith.mulf %103, %90 : vector<8x32xf32>
    %107 = arith.mulf %102, %104 : vector<8x32xf32>
    %108 = arith.addf %106, %107 : vector<8x32xf32>
    %109 = math.tanh %108 : vector<8x32xf32>
    %110 = arith.mulf %105, %109 : vector<8x32xf32>
    %c48 = arith.constant 48 : index
    %c0_27 = arith.constant 0 : index
    %111 = vector.load %arg4[%c48, %c0_27] : memref<64x256xf32, #tpu.memory_space<vmem>>, vector<8x128xf32>
    %cst_28 = arith.constant dense<0.000000e+00> : vector<8x128xf32>
    %112 = tpu.matmul %110, %7, %cst_28 {dimension_numbers = #tpu.dot_dimension_numbers<[1], [0], [0], [1], [0, 0, 1, 1], [], []>, precision = #tpu.contract_precision<fp32>} : vector<8x32xf32>, vector<32x128xf32>, vector<8x128xf32> -> vector<8x128xf32>
    %113 = arith.addf %111, %112 : vector<8x128xf32>
    %114 = arith.negf %113 : vector<8x128xf32>
    %115 = math.exp %114 : vector<8x128xf32>
    %cst_29 = arith.constant 1.000000e+00 : f32
    %116 = vector.broadcast %cst_29 : f32 to vector<8x128xf32>
    %117 = arith.addf %116, %115 : vector<8x128xf32>
    %118 = arith.divf %116, %117 : vector<8x128xf32>
    %119 = math.tanh %113 : vector<8x128xf32>
    %120 = vector.extract_strided_slice %118 {offsets = [0, 0], sizes = [8, 32], strides = [1, 1]} : vector<8x128xf32> to vector<8x32xf32>
    %121 = vector.extract_strided_slice %118 {offsets = [0, 32], sizes = [8, 32], strides = [1, 1]} : vector<8x128xf32> to vector<8x32xf32>
    %122 = vector.extract_strided_slice %119 {offsets = [0, 64], sizes = [8, 32], strides = [1, 1]} : vector<8x128xf32> to vector<8x32xf32>
    %123 = vector.extract_strided_slice %118 {offsets = [0, 96], sizes = [8, 32], strides = [1, 1]} : vector<8x128xf32> to vector<8x32xf32>
    %124 = arith.mulf %121, %108 : vector<8x32xf32>
    %125 = arith.mulf %120, %122 : vector<8x32xf32>
    %126 = arith.addf %124, %125 : vector<8x32xf32>
    %127 = math.tanh %126 : vector<8x32xf32>
    %128 = arith.mulf %123, %127 : vector<8x32xf32>
    %c56 = arith.constant 56 : index
    %c0_30 = arith.constant 0 : index
    %129 = vector.load %arg4[%c56, %c0_30] : memref<64x256xf32, #tpu.memory_space<vmem>>, vector<8x128xf32>
    %cst_31 = arith.constant dense<0.000000e+00> : vector<8x128xf32>
    %130 = tpu.matmul %128, %7, %cst_31 {dimension_numbers = #tpu.dot_dimension_numbers<[1], [0], [0], [1], [0, 0, 1, 1], [], []>, precision = #tpu.contract_precision<fp32>} : vector<8x32xf32>, vector<32x128xf32>, vector<8x128xf32> -> vector<8x128xf32>
    %131 = arith.addf %129, %130 : vector<8x128xf32>
    %132 = arith.negf %131 : vector<8x128xf32>
    %133 = math.exp %132 : vector<8x128xf32>
    %cst_32 = arith.constant 1.000000e+00 : f32
    %134 = vector.broadcast %cst_32 : f32 to vector<8x128xf32>
    %135 = arith.addf %134, %133 : vector<8x128xf32>
    %136 = arith.divf %134, %135 : vector<8x128xf32>
    %137 = math.tanh %131 : vector<8x128xf32>
    %138 = vector.extract_strided_slice %136 {offsets = [0, 0], sizes = [8, 32], strides = [1, 1]} : vector<8x128xf32> to vector<8x32xf32>
    %139 = vector.extract_strided_slice %136 {offsets = [0, 32], sizes = [8, 32], strides = [1, 1]} : vector<8x128xf32> to vector<8x32xf32>
    %140 = vector.extract_strided_slice %137 {offsets = [0, 64], sizes = [8, 32], strides = [1, 1]} : vector<8x128xf32> to vector<8x32xf32>
    %141 = vector.extract_strided_slice %136 {offsets = [0, 96], sizes = [8, 32], strides = [1, 1]} : vector<8x128xf32> to vector<8x32xf32>
    %142 = arith.mulf %139, %126 : vector<8x32xf32>
    %143 = arith.mulf %138, %140 : vector<8x32xf32>
    %144 = arith.addf %142, %143 : vector<8x32xf32>
    %145 = math.tanh %144 : vector<8x32xf32>
    %146 = arith.mulf %141, %145 : vector<8x32xf32>
    %c56_33 = arith.constant 56 : index
    %c128 = arith.constant 128 : index
    %147 = vector.load %arg4[%c56_33, %c128] : memref<64x256xf32, #tpu.memory_space<vmem>>, vector<8x128xf32>
    %148 = arith.negf %147 : vector<8x128xf32>
    %149 = math.exp %148 : vector<8x128xf32>
    %cst_34 = arith.constant 1.000000e+00 : f32
    %150 = vector.broadcast %cst_34 : f32 to vector<8x128xf32>
    %151 = arith.addf %150, %149 : vector<8x128xf32>
    %152 = arith.divf %150, %151 : vector<8x128xf32>
    %153 = math.tanh %147 : vector<8x128xf32>
    %154 = vector.extract_strided_slice %152 {offsets = [0, 0], sizes = [8, 32], strides = [1, 1]} : vector<8x128xf32> to vector<8x32xf32>
    %155 = vector.extract_strided_slice %153 {offsets = [0, 64], sizes = [8, 32], strides = [1, 1]} : vector<8x128xf32> to vector<8x32xf32>
    %156 = vector.extract_strided_slice %152 {offsets = [0, 96], sizes = [8, 32], strides = [1, 1]} : vector<8x128xf32> to vector<8x32xf32>
    %157 = arith.mulf %154, %155 : vector<8x32xf32>
    %158 = math.tanh %157 : vector<8x32xf32>
    %159 = arith.mulf %156, %158 : vector<8x32xf32>
    %160 = tpu.concatenate %146, %159 in 1 : vector<8x32xf32>, vector<8x32xf32> -> vector<8x64xf32>
    %c40_35 = arith.constant 40 : index
    %c0_36 = arith.constant 0 : index
    %161 = vector.load %arg2[%c40_35, %c0_36] : memref<128x256xf32, #tpu.memory_space<vmem>>, vector<64x32xf32>
    %c104 = arith.constant 104 : index
    %c0_37 = arith.constant 0 : index
    %162 = vector.load %arg2[%c104, %c0_37] : memref<128x256xf32, #tpu.memory_space<vmem>>, vector<1x32xf32>
    %cst_38 = arith.constant dense<0.000000e+00> : vector<8x32xf32>
    %163 = tpu.matmul %160, %161, %cst_38 {dimension_numbers = #tpu.dot_dimension_numbers<[1], [0], [0], [1], [0, 0, 1, 1], [], []>, precision = #tpu.contract_precision<fp32>} : vector<8x64xf32>, vector<64x32xf32>, vector<8x32xf32> -> vector<8x32xf32>
    %164 = vector.broadcast %162 : vector<1x32xf32> to vector<8x32xf32>
    %165 = arith.addf %163, %164 : vector<8x32xf32>
    %c112 = arith.constant 112 : index
    %c0_39 = arith.constant 0 : index
    %166 = vector.load %arg2[%c112, %c0_39] : memref<128x256xf32, #tpu.memory_space<vmem>>, vector<1x32xf32>
    %c120 = arith.constant 120 : index
    %c0_40 = arith.constant 0 : index
    %167 = vector.load %arg2[%c120, %c0_40] : memref<128x256xf32, #tpu.memory_space<vmem>>, vector<1x1xf32>
    %168 = vector.broadcast %166 : vector<1x32xf32> to vector<8x32xf32>
    %169 = arith.mulf %165, %168 : vector<8x32xf32>
    %cst_41 = arith.constant dense<0.000000e+00> : vector<8xf32>
    %170 = vector.multi_reduction <add>, %169, %cst_41 [1] : vector<8x32xf32> to vector<8xf32>
    %171 = vector.shape_cast %170 : vector<8xf32> to vector<8x1xf32>
    %172 = vector.broadcast %167 : vector<1x1xf32> to vector<8x1xf32>
    %173 = arith.addf %171, %172 : vector<8x1xf32>
    %c0_42 = arith.constant 0 : index
    %c0_43 = arith.constant 0 : index
    %174 = vector.load %arg3[%c0_42, %c0_43] : memref<8x1xf32, #tpu.memory_space<vmem>>, vector<8x1xf32>
    tpu.vector_store %arg3[%c0_42, %c0_43], %173 {strides = array<i32>} : memref<8x1xf32, #tpu.memory_space<vmem>>, vector<8x1xf32>,
    return
  }
}

</mosaic_0001>

<llo_original>
// kernel: tpu_custom_call.1
$region0: #{tpu_custom_call.1}
  #allocation0 [shape = 'u32[]', space=smem, size = 0x4, offset = 0x4, fixed_abs, tag = 'smem constant byte address 0x4 - core index']
  #allocation1 [shape = 'u32[144,128]{1,0:T(1,128)}', space=vmem, size = 0x12000, scoped, tag = 'internal scratch']
  #allocation2 [shape = 'f32[64,256]{1,0:T(8,128)}', space=vmem, size = 0x10000, scoped, tag = 'scratch operand']
  %s0 = inlined_call_operand.vmem [shape: f32[64,16], index: 0, kind: input, shape index: {}]
  %s1 = inlined_call_operand.vmem [shape: f32[16,256], index: 1, kind: input, shape index: {}]
  %s2 = inlined_call_operand.hbm [shape: f32[128,256], index: 2, kind: input, shape index: {}]
  %s3 = inlined_call_operand.vmem [shape: f32[8,1], index: 3, kind: output, shape index: {}]
  %s4 = sld [smem:[#allocation0]]
  $region26: #{tpu_custom_call.1} parent=0
    _
  %s6 = ssub.s32 1, %s4
  %s7 = scalar_select 0, %s6, %s4
  $region1: #{tpu_custom_call.1} parent=0
    #allocation3 [shape = 'u8[131072]{0}', space=vmem, size = 0x20000, scoped, tag = 'input window, operand 2, single buffered']
    #allocation4 [shape = 's32[1]{0}', space=sflag, size = 0x4, scoped, tag = 'scoped memory for tpu_custom_call.1']
    %8 = vsyncpa [#allocation4], 0
    // Predicated region
    $region2: #{tpu_custom_call.1} parent=1 // pred_check
      _
    $region3: #{tpu_custom_call.1} parent=1 // pred_check_branch
      %10 = sbr.rel (0) target = $region5
    $region4: #{tpu_custom_call.1} parent=1 // pred_region
      _
    $region5: #{tpu_custom_call.1} parent=1 // pred_fallthru
      _
    // Predicated region
    $region6: #{tpu_custom_call.1} parent=1 // pred_check
      _
    $region7: #{tpu_custom_call.1} parent=1 // pred_check_branch
      %12 = sbr.rel (0) target = $region9
    $region8: #{tpu_custom_call.1} parent=1 // pred_region
      _
    $region9: #{tpu_custom_call.1} parent=1 // pred_fallthru
      _
    // Predicated region
    $region10: #{tpu_custom_call.1} parent=1 // pred_check
      _
    $region11: #{tpu_custom_call.1} parent=1 // pred_check_branch
      %14 = sbr.rel (0) target = $region13
    $region12: #{tpu_custom_call.1} parent=1 // pred_region
      %s16 = ssub.s32 4096, 4096
      %17 = vsyncadd [#allocation4], %s16
      %s18 = sshll.u32 [#allocation3], 4
      %s19 = int_to_ptr.vmem [resolvable:$true] %s18
      %24 = dma.hbm_to_vmem [thread:$0]  %s2, 4096, %s19, [#allocation4], 256, 256, 16
    $region13: #{tpu_custom_call.1} parent=1 // pred_fallthru
      _
    // Predicated region
    $region14: #{tpu_custom_call.1} parent=1 // pred_check
      _
    $region15: #{tpu_custom_call.1} parent=1 // pred_check_branch
      %26 = sbr.rel (0) target = $region17
    $region16: #{tpu_custom_call.1} parent=1 // pred_region
      %27 = dma.done [#allocation4], 4096
    $region17: #{tpu_custom_call.1} parent=1 // pred_fallthru
      _
    %s28 = scalar_lea.vmem [#allocation3], 64
    %v29 = vld [vmem:[%s28] ss:$8 sm:$0x3]
    %v30 = vld [vmem:[%s0] sm:$0xff]
    %v31 = vld [vmem:[%s0 + $0x8] sm:$0xff]
    %v32 = vld [vmem:[%s0 + $0x10] sm:$0xff]
    %v33 = vld [vmem:[%s0 + $0x18] sm:$0xff]
    %v34 = vld [vmem:[%s0 + $0x20] sm:$0xff]
    %v35 = vld [vmem:[%s0 + $0x28] sm:$0xff]
    %v36 = vld [vmem:[%s0 + $0x30] sm:$0xff]
    %v37 = vld [vmem:[%s0 + $0x38] sm:$0xff]
    %v38 = vld [vmem:[%s1] sm:$0xff]
    %v39 = vld [vmem:[%s1 + $0x8] sm:$0xff]
    %v40 = vld [vmem:[%s1 + $0x10] sm:$0xff]
    %v41 = vld [vmem:[%s1 + $0x18] sm:$0xff]
    %v43 = vlaneseq
    %v44 = vshrl.u32 %v43, 7
    %v45 = vsub.s32 0, %v44
    %v46 = vrot.slane %v29, %v45
    %v47 = vlaneseq
    %v48 = vshrl.u32 %v47, 7
    %v49 = vsub.s32 1, %v48
    %v50 = vrot.slane %v29, %v49
    %vm53 = vcmask 130048
    %v55 = vsel %vm53, %v30, 0
    %v58 = vsel %vm53, %v31, 0
    %v61 = vsel %vm53, %v32, 0
    %v64 = vsel %vm53, %v33, 0
    %v67 = vsel %vm53, %v34, 0
    %v70 = vsel %vm53, %v35, 0
    %v73 = vsel %vm53, %v36, 0
    %v76 = vsel %vm53, %v37, 0
    %78 = vmatprep.subr.mxu0 0.0
    %79 = vmatpush1.msra.mxu0 0.0
    %80 = vmatprep.subr.mxu0 0.0
    %81 = vmatpush1.msra.mxu0 0.0
    %82 = vmatprep.subr.mxu0 0.0
    %83 = vmatpush1.msra.mxu0 0.0
    %84 = vmatprep.subr.mxu0 0.0
    %85 = vmatpush1.msra.mxu0 0.0
    %86 = vmatprep.subr.mxu0 0.0
    %87 = vmatpush1.msra.mxu0 0.0
    %88 = vmatprep.subr.mxu0 0.0
    %89 = vmatpush1.msra.mxu0 0.0
    %90 = vmatprep.subr.mxu0 0.0
    %91 = vmatpush1.msra.mxu0 0.0
    %92 = vmatprep.subr.mxu0 0.0
    %93 = vmatpush1.msra.mxu0 0.0
    %94 = vmatprep.subr.mxu0 0.0
    %95 = vmatpush1.msra.mxu0 0.0
    %96 = vmatprep.subr.mxu0 0.0
    %97 = vmatpush1.msra.mxu0 0.0
    %98 = vmatprep.subr.mxu0 0.0
    %99 = vmatpush1.msra.mxu0 0.0
    %100 = vmatprep.subr.mxu0 0.0
    %101 = vmatpush1.msra.mxu0 0.0
    %102 = vmatprep.subr.mxu0 0.0
    %103 = vmatpush1.msra.mxu0 0.0
    %104 = vmatprep.subr.mxu0 0.0
    %105 = vmatpush1.msra.mxu0 0.0
    %v106 = vand.u32 %v41, 4294901760
    %107 = vmatprep.subr.mxu0 %v106
    %v108 = vand.u32 %v40, 4294901760
    %109 = vmatpush1.msra.mxu0 %v108
    %v110 = vand.u32 %v39, 4294901760
    %111 = vmatprep.subr.mxu0 %v110
    %v112 = vand.u32 %v38, 4294901760
    %113 = vmatpush1.msra.mxu0 %v112
    %114 = vmatprep.subr.mxu0 0.0
    %115 = vmatpush2.msra.mxu0 0.0
    %116 = vmatprep.subr.mxu0 0.0
    %117 = vmatpush2.msra.mxu0 0.0
    %118 = vmatprep.subr.mxu0 0.0
    %119 = vmatpush2.msra.mxu0 0.0
    %120 = vmatprep.subr.mxu0 0.0
    %121 = vmatpush2.msra.mxu0 0.0
    %122 = vmatprep.subr.mxu0 0.0
    %123 = vmatpush2.msra.mxu0 0.0
    %124 = vmatprep.subr.mxu0 0.0
    %125 = vmatpush2.msra.mxu0 0.0
    %126 = vmatprep.subr.mxu0 0.0
    %127 = vmatpush2.msra.mxu0 0.0
    %128 = vmatprep.subr.mxu0 0.0
    %129 = vmatpush2.msra.mxu0 0.0
    %130 = vmatprep.subr.mxu0 0.0
    %131 = vmatpush2.msra.mxu0 0.0
    %132 = vmatprep.subr.mxu0 0.0
    %133 = vmatpush2.msra.mxu0 0.0
    %134 = vmatprep.subr.mxu0 0.0
    %135 = vmatpush2.msra.mxu0 0.0
    %136 = vmatprep.subr.mxu0 0.0
    %137 = vmatpush2.msra.mxu0 0.0
    %138 = vmatprep.subr.mxu0 0.0
    %139 = vmatpush2.msra.mxu0 0.0
    %140 = vmatprep.subr.mxu0 0.0
    %141 = vmatpush2.msra.mxu0 0.0
    %142 = vmatprep.subr.mxu0 0.0
    %143 = vmatpush2.msra.mxu0 0.0
    %144 = vmatprep.subr.mxu0 0.0
    %145 = vmatpush2.msra.mxu0 0.0
    %146 = vmatprep.mubr.f32.mxu0 0.0
    %v147 = vand.u32 %v55, 4294901760
    %v148 = vsub.f32 %v55, %v147
    %v149 = vand.u32 %v148, 4294901760
    %v150 = vsub.f32 %v148, %v149
    %v151 = vand.u32 %v150, 4294901760
    %152 = vmatmul.mubr.f32.gmra.mxu0 %v151
    %v153 = vpop.f32.mrf.mxu0
    %v154 = vadd.f32 %v46, %v153
    %v155 = vpop.f32.mrf.mxu0
    %v156 = vadd.f32 %v50, %v155
    %157 = vmatprep.mubr.f32.mxu0 0.0
    %v158 = vand.u32 %v58, 4294901760
    %v159 = vsub.f32 %v58, %v158
    %v160 = vand.u32 %v159, 4294901760
    %v161 = vsub.f32 %v159, %v160
    %v162 = vand.u32 %v161, 4294901760
    %163 = vmatmul.mubr.f32.gmra.mxu0 %v162
    %v164 = vpop.f32.mrf.mxu0
    %v165 = vadd.f32 %v46, %v164
    %v166 = vpop.f32.mrf.mxu0
    %v167 = vadd.f32 %v50, %v166
    %168 = vmatprep.mubr.f32.mxu0 0.0
    %v169 = vand.u32 %v61, 4294901760
    %v170 = vsub.f32 %v61, %v169
    %v171 = vand.u32 %v170, 4294901760
    %v172 = vsub.f32 %v170, %v171
    %v173 = vand.u32 %v172, 4294901760
    %174 = vmatmul.mubr.f32.gmra.mxu0 %v173
    %v175 = vpop.f32.mrf.mxu0
    %v176 = vadd.f32 %v46, %v175
    %v177 = vpop.f32.mrf.mxu0
    %v178 = vadd.f32 %v50, %v177
    %179 = vmatprep.mubr.f32.mxu0 0.0
    %v180 = vand.u32 %v64, 4294901760
    %v181 = vsub.f32 %v64, %v180
    %v182 = vand.u32 %v181, 4294901760
    %v183 = vsub.f32 %v181, %v182
    %v184 = vand.u32 %v183, 4294901760
    %185 = vmatmul.mubr.f32.gmra.mxu0 %v184
    %v186 = vpop.f32.mrf.mxu0
    %v187 = vadd.f32 %v46, %v186
    %v188 = vpop.f32.mrf.mxu0
    %v189 = vadd.f32 %v50, %v188
    %190 = vmatprep.mubr.f32.mxu0 0.0
    %v191 = vand.u32 %v67, 4294901760
    %v192 = vsub.f32 %v67, %v191
    %v193 = vand.u32 %v192, 4294901760
    %v194 = vsub.f32 %v192, %v193
    %v195 = vand.u32 %v194, 4294901760
    %196 = vmatmul.mubr.f32.gmra.mxu0 %v195
    %v197 = vpop.f32.mrf.mxu0
    %v198 = vadd.f32 %v46, %v197
    %v199 = vpop.f32.mrf.mxu0
    %v200 = vadd.f32 %v50, %v199
    %201 = vmatprep.mubr.f32.mxu0 0.0
    %v202 = vand.u32 %v70, 4294901760
    %v203 = vsub.f32 %v70, %v202
    %v204 = vand.u32 %v203, 4294901760
    %v205 = vsub.f32 %v203, %v204
    %v206 = vand.u32 %v205, 4294901760
    %207 = vmatmul.mubr.f32.gmra.mxu0 %v206
    %v208 = vpop.f32.mrf.mxu0
    %v209 = vadd.f32 %v46, %v208
    %v210 = vpop.f32.mrf.mxu0
    %v211 = vadd.f32 %v50, %v210
    %212 = vmatprep.mubr.f32.mxu0 0.0
    %v213 = vand.u32 %v73, 4294901760
    %v214 = vsub.f32 %v73, %v213
    %v215 = vand.u32 %v214, 4294901760
    %v216 = vsub.f32 %v214, %v215
    %v217 = vand.u32 %v216, 4294901760
    %218 = vmatmul.mubr.f32.gmra.mxu0 %v217
    %v219 = vpop.f32.mrf.mxu0
    %v220 = vadd.f32 %v46, %v219
    %v221 = vpop.f32.mrf.mxu0
    %v222 = vadd.f32 %v50, %v221
    %223 = vmatprep.mubr.f32.mxu0 0.0
    %v224 = vand.u32 %v76, 4294901760
    %v225 = vsub.f32 %v76, %v224
    %v226 = vand.u32 %v225, 4294901760
    %v227 = vsub.f32 %v225, %v226
    %v228 = vand.u32 %v227, 4294901760
    %229 = vmatmul.mubr.f32.gmra.mxu0 %v228
    %v230 = vpop.f32.mrf.mxu0
    %v231 = vadd.f32 %v46, %v230
    %v232 = vpop.f32.mrf.mxu0
    %v233 = vadd.f32 %v50, %v232
    %234 = vdwg.mxu0
    %235 = vmatprep.subr.mxu0 0.0
    %236 = vmatpush1.msra.mxu0 0.0
    %237 = vmatprep.subr.mxu0 0.0
    %238 = vmatpush1.msra.mxu0 0.0
    %239 = vmatprep.subr.mxu0 0.0
    %240 = vmatpush1.msra.mxu0 0.0
    %241 = vmatprep.subr.mxu0 0.0
    %242 = vmatpush1.msra.mxu0 0.0
    %243 = vmatprep.subr.mxu0 0.0
    %244 = vmatpush1.msra.mxu0 0.0
    %245 = vmatprep.subr.mxu0 0.0
    %246 = vmatpush1.msra.mxu0 0.0
    %247 = vmatprep.subr.mxu0 0.0
    %248 = vmatpush1.msra.mxu0 0.0
    %249 = vmatprep.subr.mxu0 0.0
    %250 = vmatpush1.msra.mxu0 0.0
    %251 = vmatprep.subr.mxu0 0.0
    %252 = vmatpush1.msra.mxu0 0.0
    %253 = vmatprep.subr.mxu0 0.0
    %254 = vmatpush1.msra.mxu0 0.0
    %255 = vmatprep.subr.mxu0 0.0
    %256 = vmatpush1.msra.mxu0 0.0
    %257 = vmatprep.subr.mxu0 0.0
    %258 = vmatpush1.msra.mxu0 0.0
    %259 = vmatprep.subr.mxu0 0.0
    %260 = vmatpush1.msra.mxu0 0.0
    %261 = vmatprep.subr.mxu0 0.0
    %262 = vmatpush1.msra.mxu0 0.0
    %v263 = vand.u32 %v41, 4294901760
    %v264 = vsub.f32 %v41, %v263
    %v265 = vand.u32 %v264, 4294901760
    %v266 = vsub.f32 %v264, %v265
    %v267 = vand.u32 %v266, 4294901760
    %268 = vmatprep.subr.mxu0 %v267
    %v269 = vand.u32 %v40, 4294901760
    %v270 = vsub.f32 %v40, %v269
    %v271 = vand.u32 %v270, 4294901760
    %v272 = vsub.f32 %v270, %v271
    %v273 = vand.u32 %v272, 4294901760
    %274 = vmatpush1.msra.mxu0 %v273
    %v275 = vand.u32 %v39, 4294901760
    %v276 = vsub.f32 %v39, %v275
    %v277 = vand.u32 %v276, 4294901760
    %v278 = vsub.f32 %v276, %v277
    %v279 = vand.u32 %v278, 4294901760
    %280 = vmatprep.subr.mxu0 %v279
    %v281 = vand.u32 %v38, 4294901760
    %v282 = vsub.f32 %v38, %v281
    %v283 = vand.u32 %v282, 4294901760
    %v284 = vsub.f32 %v282, %v283
    %v285 = vand.u32 %v284, 4294901760
    %286 = vmatpush1.msra.mxu0 %v285
    %287 = vmatprep.subr.mxu0 0.0
    %288 = vmatpush2.msra.mxu0 0.0
    %289 = vmatprep.subr.mxu0 0.0
    %290 = vmatpush2.msra.mxu0 0.0
    %291 = vmatprep.subr.mxu0 0.0
    %292 = vmatpush2.msra.mxu0 0.0
    %293 = vmatprep.subr.mxu0 0.0
    %294 = vmatpush2.msra.mxu0 0.0
    %295 = vmatprep.subr.mxu0 0.0
    %296 = vmatpush2.msra.mxu0 0.0
    %297 = vmatprep.subr.mxu0 0.0
    %298 = vmatpush2.msra.mxu0 0.0
    %299 = vmatprep.subr.mxu0 0.0
    %300 = vmatpush2.msra.mxu0 0.0
    %301 = vmatprep.subr.mxu0 0.0
    %302 = vmatpush2.msra.mxu0 0.0
    %303 = vmatprep.subr.mxu0 0.0
    %304 = vmatpush2.msra.mxu0 0.0
    %305 = vmatprep.subr.mxu0 0.0
    %306 = vmatpush2.msra.mxu0 0.0
    %307 = vmatprep.subr.mxu0 0.0
    %308 = vmatpush2.msra.mxu0 0.0
    %309 = vmatprep.subr.mxu0 0.0
    %310 = vmatpush2.msra.mxu0 0.0
    %311 = vmatprep.subr.mxu0 0.0
    %312 = vmatpush2.msra.mxu0 0.0
    %313 = vmatprep.subr.mxu0 0.0
    %314 = vmatpush2.msra.mxu0 0.0
    %315 = vmatprep.subr.mxu0 0.0
    %316 = vmatpush2.msra.mxu0 0.0
    %317 = vmatprep.subr.mxu0 0.0
    %318 = vmatpush2.msra.mxu0 0.0
    %319 = vmatprep.mubr.f32.mxu0 0.0
    %v320 = vand.u32 %v55, 4294901760
    %321 = vmatmul.mubr.f32.gmra.mxu0 %v320
    %v322 = vpop.f32.mrf.mxu0
    %v323 = vadd.f32 %v154, %v322
    %v324 = vpop.f32.mrf.mxu0
    %v325 = vadd.f32 %v156, %v324
    %326 = vmatprep.mubr.f32.mxu0 0.0
    %v327 = vand.u32 %v58, 4294901760
    %328 = vmatmul.mubr.f32.gmra.mxu0 %v327
    %v329 = vpop.f32.mrf.mxu0
    %v330 = vadd.f32 %v165, %v329
    %v331 = vpop.f32.mrf.mxu0
    %v332 = vadd.f32 %v167, %v331
    %333 = vmatprep.mubr.f32.mxu0 0.0
    %v334 = vand.u32 %v61, 4294901760
    %335 = vmatmul.mubr.f32.gmra.mxu0 %v334
    %v336 = vpop.f32.mrf.mxu0
    %v337 = vadd.f32 %v176, %v336
    %v338 = vpop.f32.mrf.mxu0
    %v339 = vadd.f32 %v178, %v338
    %340 = vmatprep.mubr.f32.mxu0 0.0
    %v341 = vand.u32 %v64, 4294901760
    %342 = vmatmul.mubr.f32.gmra.mxu0 %v341
    %v343 = vpop.f32.mrf.mxu0
    %v344 = vadd.f32 %v187, %v343
    %v345 = vpop.f32.mrf.mxu0
    %v346 = vadd.f32 %v189, %v345
    %347 = vmatprep.mubr.f32.mxu0 0.0
    %v348 = vand.u32 %v67, 4294901760
    %349 = vmatmul.mubr.f32.gmra.mxu0 %v348
    %v350 = vpop.f32.mrf.mxu0
    %v351 = vadd.f32 %v198, %v350
    %v352 = vpop.f32.mrf.mxu0
    %v353 = vadd.f32 %v200, %v352
    %354 = vmatprep.mubr.f32.mxu0 0.0
    %v355 = vand.u32 %v70, 4294901760
    %356 = vmatmul.mubr.f32.gmra.mxu0 %v355
    %v357 = vpop.f32.mrf.mxu0
    %v358 = vadd.f32 %v209, %v357
    %v359 = vpop.f32.mrf.mxu0
    %v360 = vadd.f32 %v211, %v359
    %361 = vmatprep.mubr.f32.mxu0 0.0
    %v362 = vand.u32 %v73, 4294901760
    %363 = vmatmul.mubr.f32.gmra.mxu0 %v362
    %v364 = vpop.f32.mrf.mxu0
    %v365 = vadd.f32 %v220, %v364
    %v366 = vpop.f32.mrf.mxu0
    %v367 = vadd.f32 %v222, %v366
    %368 = vmatprep.mubr.f32.mxu0 0.0
    %v369 = vand.u32 %v76, 4294901760
    %370 = vmatmul.mubr.f32.gmra.mxu0 %v369
    %v371 = vpop.f32.mrf.mxu0
    %v372 = vadd.f32 %v231, %v371
    %v373 = vpop.f32.mrf.mxu0
    %v374 = vadd.f32 %v233, %v373
    %375 = vdwg.mxu0
    %376 = vmatprep.subr.mxu0 0.0
    %377 = vmatpush1.msra.mxu0 0.0
    %378 = vmatprep.subr.mxu0 0.0
    %379 = vmatpush1.msra.mxu0 0.0
    %380 = vmatprep.subr.mxu0 0.0
    %381 = vmatpush1.msra.mxu0 0.0
    %382 = vmatprep.subr.mxu0 0.0
    %383 = vmatpush1.msra.mxu0 0.0
    %384 = vmatprep.subr.mxu0 0.0
    %385 = vmatpush1.msra.mxu0 0.0
    %386 = vmatprep.subr.mxu0 0.0
    %387 = vmatpush1.msra.mxu0 0.0
    %388 = vmatprep.subr.mxu0 0.0
    %389 = vmatpush1.msra.mxu0 0.0
    %390 = vmatprep.subr.mxu0 0.0
    %391 = vmatpush1.msra.mxu0 0.0
    %392 = vmatprep.subr.mxu0 0.0
    %393 = vmatpush1.msra.mxu0 0.0
    %394 = vmatprep.subr.mxu0 0.0
    %395 = vmatpush1.msra.mxu0 0.0
    %396 = vmatprep.subr.mxu0 0.0
    %397 = vmatpush1.msra.mxu0 0.0
    %398 = vmatprep.subr.mxu0 0.0
    %399 = vmatpush1.msra.mxu0 0.0
    %400 = vmatprep.subr.mxu0 0.0
    %401 = vmatpush1.msra.mxu0 0.0
    %402 = vmatprep.subr.mxu0 0.0
    %403 = vmatpush1.msra.mxu0 0.0
    %v404 = vand.u32 %v41, 4294901760
    %v405 = vsub.f32 %v41, %v404
    %406 = vmatprep.subr.mxu0 %v405
    %v407 = vand.u32 %v40, 4294901760
    %v408 = vsub.f32 %v40, %v407
    %409 = vmatpush1.msra.mxu0 %v408
    %v410 = vand.u32 %v39, 4294901760
    %v411 = vsub.f32 %v39, %v410
    %412 = vmatprep.subr.mxu0 %v411
    %v413 = vand.u32 %v38, 4294901760
    %v414 = vsub.f32 %v38, %v413
    %415 = vmatpush1.msra.mxu0 %v414
    %416 = vmatprep.subr.mxu0 0.0
    %417 = vmatpush2.msra.mxu0 0.0
    %418 = vmatprep.subr.mxu0 0.0
    %419 = vmatpush2.msra.mxu0 0.0
    %420 = vmatprep.subr.mxu0 0.0
    %421 = vmatpush2.msra.mxu0 0.0
    %422 = vmatprep.subr.mxu0 0.0
    %423 = vmatpush2.msra.mxu0 0.0
    %424 = vmatprep.subr.mxu0 0.0
    %425 = vmatpush2.msra.mxu0 0.0
    %426 = vmatprep.subr.mxu0 0.0
    %427 = vmatpush2.msra.mxu0 0.0
    %428 = vmatprep.subr.mxu0 0.0
    %429 = vmatpush2.msra.mxu0 0.0
    %430 = vmatprep.subr.mxu0 0.0
    %431 = vmatpush2.msra.mxu0 0.0
    %432 = vmatprep.subr.mxu0 0.0
    %433 = vmatpush2.msra.mxu0 0.0
    %434 = vmatprep.subr.mxu0 0.0
    %435 = vmatpush2.msra.mxu0 0.0
    %436 = vmatprep.subr.mxu0 0.0
    %437 = vmatpush2.msra.mxu0 0.0
    %438 = vmatprep.subr.mxu0 0.0
    %439 = vmatpush2.msra.mxu0 0.0
    %440 = vmatprep.subr.mxu0 0.0
    %441 = vmatpush2.msra.mxu0 0.0
    %442 = vmatprep.subr.mxu0 0.0
    %443 = vmatpush2.msra.mxu0 0.0
    %444 = vmatprep.subr.mxu0 0.0
    %445 = vmatpush2.msra.mxu0 0.0
    %446 = vmatprep.subr.mxu0 0.0
    %447 = vmatpush2.msra.mxu0 0.0
    %448 = vmatprep.mubr.f32.mxu0 0.0
    %v449 = vand.u32 %v55, 4294901760
    %v450 = vsub.f32 %v55, %v449
    %451 = vmatmul.mubr.f32.gmra.mxu0 %v450
    %v452 = vpop.f32.mrf.mxu0
    %v453 = vadd.f32 %v323, %v452
    %v454 = vpop.f32.mrf.mxu0
    %v455 = vadd.f32 %v325, %v454
    %456 = vmatprep.mubr.f32.mxu0 0.0
    %v457 = vand.u32 %v58, 4294901760
    %v458 = vsub.f32 %v58, %v457
    %459 = vmatmul.mubr.f32.gmra.mxu0 %v458
    %v460 = vpop.f32.mrf.mxu0
    %v461 = vadd.f32 %v330, %v460
    %v462 = vpop.f32.mrf.mxu0
    %v463 = vadd.f32 %v332, %v462
    %464 = vmatprep.mubr.f32.mxu0 0.0
    %v465 = vand.u32 %v61, 4294901760
    %v466 = vsub.f32 %v61, %v465
    %467 = vmatmul.mubr.f32.gmra.mxu0 %v466
    %v468 = vpop.f32.mrf.mxu0
    %v469 = vadd.f32 %v337, %v468
    %v470 = vpop.f32.mrf.mxu0
    %v471 = vadd.f32 %v339, %v470
    %472 = vmatprep.mubr.f32.mxu0 0.0
    %v473 = vand.u32 %v64, 4294901760
    %v474 = vsub.f32 %v64, %v473
    %475 = vmatmul.mubr.f32.gmra.mxu0 %v474
    %v476 = vpop.f32.mrf.mxu0
    %v477 = vadd.f32 %v344, %v476
    %v478 = vpop.f32.mrf.mxu0
    %v479 = vadd.f32 %v346, %v478
    %480 = vmatprep.mubr.f32.mxu0 0.0
    %v481 = vand.u32 %v67, 4294901760
    %v482 = vsub.f32 %v67, %v481
    %483 = vmatmul.mubr.f32.gmra.mxu0 %v482
    %v484 = vpop.f32.mrf.mxu0
    %v485 = vadd.f32 %v351, %v484
    %v486 = vpop.f32.mrf.mxu0
    %v487 = vadd.f32 %v353, %v486
    %488 = vmatprep.mubr.f32.mxu0 0.0
    %v489 = vand.u32 %v70, 4294901760
    %v490 = vsub.f32 %v70, %v489
    %491 = vmatmul.mubr.f32.gmra.mxu0 %v490
    %v492 = vpop.f32.mrf.mxu0
    %v493 = vadd.f32 %v358, %v492
    %v494 = vpop.f32.mrf.mxu0
    %v495 = vadd.f32 %v360, %v494
    %496 = vmatprep.mubr.f32.mxu0 0.0
    %v497 = vand.u32 %v73, 4294901760
    %v498 = vsub.f32 %v73, %v497
    %499 = vmatmul.mubr.f32.gmra.mxu0 %v498
    %v500 = vpop.f32.mrf.mxu0
    %v501 = vadd.f32 %v365, %v500
    %v502 = vpop.f32.mrf.mxu0
    %v503 = vadd.f32 %v367, %v502
    %504 = vmatprep.mubr.f32.mxu0 0.0
    %v505 = vand.u32 %v76, 4294901760
    %v506 = vsub.f32 %v76, %v505
    %507 = vmatmul.mubr.f32.gmra.mxu0 %v506
    %v508 = vpop.f32.mrf.mxu0
    %v509 = vadd.f32 %v372, %v508
    %v510 = vpop.f32.mrf.mxu0
    %v511 = vadd.f32 %v374, %v510
    %512 = vdwg.mxu0
    %513 = vmatprep.subr.mxu0 0.0
    %514 = vmatpush1.msra.mxu0 0.0
    %515 = vmatprep.subr.mxu0 0.0
    %516 = vmatpush1.msra.mxu0 0.0
    %517 = vmatprep.subr.mxu0 0.0
    %518 = vmatpush1.msra.mxu0 0.0
    %519 = vmatprep.subr.mxu0 0.0
    %520 = vmatpush1.msra.mxu0 0.0
    %521 = vmatprep.subr.mxu0 0.0
    %522 = vmatpush1.msra.mxu0 0.0
    %523 = vmatprep.subr.mxu0 0.0
    %524 = vmatpush1.msra.mxu0 0.0
    %525 = vmatprep.subr.mxu0 0.0
    %526 = vmatpush1.msra.mxu0 0.0
    %527 = vmatprep.subr.mxu0 0.0
    %528 = vmatpush1.msra.mxu0 0.0
    %529 = vmatprep.subr.mxu0 0.0
    %530 = vmatpush1.msra.mxu0 0.0
    %531 = vmatprep.subr.mxu0 0.0
    %532 = vmatpush1.msra.mxu0 0.0
    %533 = vmatprep.subr.mxu0 0.0
    %534 = vmatpush1.msra.mxu0 0.0
    %535 = vmatprep.subr.mxu0 0.0
    %536 = vmatpush1.msra.mxu0 0.0
    %537 = vmatprep.subr.mxu0 0.0
    %538 = vmatpush1.msra.mxu0 0.0
    %539 = vmatprep.subr.mxu0 0.0
    %540 = vmatpush1.msra.mxu0 0.0
    %v541 = vand.u32 %v41, 4294901760
    %542 = vmatprep.subr.mxu0 %v541
    %v543 = vand.u32 %v40, 4294901760
    %544 = vmatpush1.msra.mxu0 %v543
    %v545 = vand.u32 %v39, 4294901760
    %546 = vmatprep.subr.mxu0 %v545
    %v547 = vand.u32 %v38, 4294901760
    %548 = vmatpush1.msra.mxu0 %v547
    %549 = vmatprep.subr.mxu0 0.0
    %550 = vmatpush2.msra.mxu0 0.0
    %551 = vmatprep.subr.mxu0 0.0
    %552 = vmatpush2.msra.mxu0 0.0
    %553 = vmatprep.subr.mxu0 0.0
    %554 = vmatpush2.msra.mxu0 0.0
    %555 = vmatprep.subr.mxu0 0.0
    %556 = vmatpush2.msra.mxu0 0.0
    %557 = vmatprep.subr.mxu0 0.0
    %558 = vmatpush2.msra.mxu0 0.0
    %559 = vmatprep.subr.mxu0 0.0
    %560 = vmatpush2.msra.mxu0 0.0
    %561 = vmatprep.subr.mxu0 0.0
    %562 = vmatpush2.msra.mxu0 0.0
    %563 = vmatprep.subr.mxu0 0.0
    %564 = vmatpush2.msra.mxu0 0.0
    %565 = vmatprep.subr.mxu0 0.0
    %566 = vmatpush2.msra.mxu0 0.0
    %567 = vmatprep.subr.mxu0 0.0
    %568 = vmatpush2.msra.mxu0 0.0
    %569 = vmatprep.subr.mxu0 0.0
    %570 = vmatpush2.msra.mxu0 0.0
    %571 = vmatprep.subr.mxu0 0.0
    %572 = vmatpush2.msra.mxu0 0.0
    %573 = vmatprep.subr.mxu0 0.0
    %574 = vmatpush2.msra.mxu0 0.0
    %575 = vmatprep.subr.mxu0 0.0
    %576 = vmatpush2.msra.mxu0 0.0
    %577 = vmatprep.subr.mxu0 0.0
    %578 = vmatpush2.msra.mxu0 0.0
    %579 = vmatprep.subr.mxu0 0.0
    %580 = vmatpush2.msra.mxu0 0.0
    %581 = vmatprep.mubr.f32.mxu0 0.0
    %v582 = vand.u32 %v55, 4294901760
    %v583 = vsub.f32 %v55, %v582
    %v584 = vand.u32 %v583, 4294901760
    %585 = vmatmul.mubr.f32.gmra.mxu0 %v584
    %v586 = vpop.f32.mrf.mxu0
    %v587 = vadd.f32 %v453, %v586
    %v588 = vpop.f32.mrf.mxu0
    %v589 = vadd.f32 %v455, %v588
    %590 = vmatprep.mubr.f32.mxu0 0.0
    %v591 = vand.u32 %v58, 4294901760
    %v592 = vsub.f32 %v58, %v591
    %v593 = vand.u32 %v592, 4294901760
    %594 = vmatmul.mubr.f32.gmra.mxu0 %v593
    %v595 = vpop.f32.mrf.mxu0
    %v596 = vadd.f32 %v461, %v595
    %v597 = vpop.f32.mrf.mxu0
    %v598 = vadd.f32 %v463, %v597
    %599 = vmatprep.mubr.f32.mxu0 0.0
    %v600 = vand.u32 %v61, 4294901760
    %v601 = vsub.f32 %v61, %v600
    %v602 = vand.u32 %v601, 4294901760
    %603 = vmatmul.mubr.f32.gmra.mxu0 %v602
    %v604 = vpop.f32.mrf.mxu0
    %v605 = vadd.f32 %v469, %v604
    %v606 = vpop.f32.mrf.mxu0
    %v607 = vadd.f32 %v471, %v606
    %608 = vmatprep.mubr.f32.mxu0 0.0
    %v609 = vand.u32 %v64, 4294901760
    %v610 = vsub.f32 %v64, %v609
    %v611 = vand.u32 %v610, 4294901760
    %612 = vmatmul.mubr.f32.gmra.mxu0 %v611
    %v613 = vpop.f32.mrf.mxu0
    %v614 = vadd.f32 %v477, %v613
    %v615 = vpop.f32.mrf.mxu0
    %v616 = vadd.f32 %v479, %v615
    %617 = vmatprep.mubr.f32.mxu0 0.0
    %v618 = vand.u32 %v67, 4294901760
    %v619 = vsub.f32 %v67, %v618
    %v620 = vand.u32 %v619, 4294901760
    %621 = vmatmul.mubr.f32.gmra.mxu0 %v620
    %v622 = vpop.f32.mrf.mxu0
    %v623 = vadd.f32 %v485, %v622
    %v624 = vpop.f32.mrf.mxu0
    %v625 = vadd.f32 %v487, %v624
    %626 = vmatprep.mubr.f32.mxu0 0.0
    %v627 = vand.u32 %v70, 4294901760
    %v628 = vsub.f32 %v70, %v627
    %v629 = vand.u32 %v628, 4294901760
    %630 = vmatmul.mubr.f32.gmra.mxu0 %v629
    %v631 = vpop.f32.mrf.mxu0
    %v632 = vadd.f32 %v493, %v631
    %v633 = vpop.f32.mrf.mxu0
    %v634 = vadd.f32 %v495, %v633
    %635 = vmatprep.mubr.f32.mxu0 0.0
    %v636 = vand.u32 %v73, 4294901760
    %v637 = vsub.f32 %v73, %v636
    %v638 = vand.u32 %v637, 4294901760
    %639 = vmatmul.mubr.f32.gmra.mxu0 %v638
    %v640 = vpop.f32.mrf.mxu0
    %v641 = vadd.f32 %v501, %v640
    %v642 = vpop.f32.mrf.mxu0
    %v643 = vadd.f32 %v503, %v642
    %644 = vmatprep.mubr.f32.mxu0 0.0
    %v645 = vand.u32 %v76, 4294901760
    %v646 = vsub.f32 %v76, %v645
    %v647 = vand.u32 %v646, 4294901760
    %648 = vmatmul.mubr.f32.gmra.mxu0 %v647
    %v649 = vpop.f32.mrf.mxu0
    %v650 = vadd.f32 %v509, %v649
    %v651 = vpop.f32.mrf.mxu0
    %v652 = vadd.f32 %v511, %v651
    %653 = vdwg.mxu0
    %654 = vmatprep.subr.mxu0 0.0
    %655 = vmatpush1.msra.mxu0 0.0
    %656 = vmatprep.subr.mxu0 0.0
    %657 = vmatpush1.msra.mxu0 0.0
    %658 = vmatprep.subr.mxu0 0.0
    %659 = vmatpush1.msra.mxu0 0.0
    %660 = vmatprep.subr.mxu0 0.0
    %661 = vmatpush1.msra.mxu0 0.0
    %662 = vmatprep.subr.mxu0 0.0
    %663 = vmatpush1.msra.mxu0 0.0
    %664 = vmatprep.subr.mxu0 0.0
    %665 = vmatpush1.msra.mxu0 0.0
    %666 = vmatprep.subr.mxu0 0.0
    %667 = vmatpush1.msra.mxu0 0.0
    %668 = vmatprep.subr.mxu0 0.0
    %669 = vmatpush1.msra.mxu0 0.0
    %670 = vmatprep.subr.mxu0 0.0
    %671 = vmatpush1.msra.mxu0 0.0
    %672 = vmatprep.subr.mxu0 0.0
    %673 = vmatpush1.msra.mxu0 0.0
    %674 = vmatprep.subr.mxu0 0.0
    %675 = vmatpush1.msra.mxu0 0.0
    %676 = vmatprep.subr.mxu0 0.0
    %677 = vmatpush1.msra.mxu0 0.0
    %678 = vmatprep.subr.mxu0 0.0
    %679 = vmatpush1.msra.mxu0 0.0
    %680 = vmatprep.subr.mxu0 0.0
    %681 = vmatpush1.msra.mxu0 0.0
    %v682 = vand.u32 %v41, 4294901760
    %v683 = vsub.f32 %v41, %v682
    %v684 = vand.u32 %v683, 4294901760
    %685 = vmatprep.subr.mxu0 %v684
    %v686 = vand.u32 %v40, 4294901760
    %v687 = vsub.f32 %v40, %v686
    %v688 = vand.u32 %v687, 4294901760
    %689 = vmatpush1.msra.mxu0 %v688
    %v690 = vand.u32 %v39, 4294901760
    %v691 = vsub.f32 %v39, %v690
    %v692 = vand.u32 %v691, 4294901760
    %693 = vmatprep.subr.mxu0 %v692
    %v694 = vand.u32 %v38, 4294901760
    %v695 = vsub.f32 %v38, %v694
    %v696 = vand.u32 %v695, 4294901760
    %697 = vmatpush1.msra.mxu0 %v696
    %698 = vmatprep.subr.mxu0 0.0
    %699 = vmatpush2.msra.mxu0 0.0
    %700 = vmatprep.subr.mxu0 0.0
    %701 = vmatpush2.msra.mxu0 0.0
    %702 = vmatprep.subr.mxu0 0.0
    %703 = vmatpush2.msra.mxu0 0.0
    %704 = vmatprep.subr.mxu0 0.0
    %705 = vmatpush2.msra.mxu0 0.0
    %706 = vmatprep.subr.mxu0 0.0
    %707 = vmatpush2.msra.mxu0 0.0
    %708 = vmatprep.subr.mxu0 0.0
    %709 = vmatpush2.msra.mxu0 0.0
    %710 = vmatprep.subr.mxu0 0.0
    %711 = vmatpush2.msra.mxu0 0.0
    %712 = vmatprep.subr.mxu0 0.0
    %713 = vmatpush2.msra.mxu0 0.0
    %714 = vmatprep.subr.mxu0 0.0
    %715 = vmatpush2.msra.mxu0 0.0
    %716 = vmatprep.subr.mxu0 0.0
    %717 = vmatpush2.msra.mxu0 0.0
    %718 = vmatprep.subr.mxu0 0.0
    %719 = vmatpush2.msra.mxu0 0.0
    %720 = vmatprep.subr.mxu0 0.0
    %721 = vmatpush2.msra.mxu0 0.0
    %722 = vmatprep.subr.mxu0 0.0
    %723 = vmatpush2.msra.mxu0 0.0
    %724 = vmatprep.subr.mxu0 0.0
    %725 = vmatpush2.msra.mxu0 0.0
    %726 = vmatprep.subr.mxu0 0.0
    %727 = vmatpush2.msra.mxu0 0.0
    %728 = vmatprep.subr.mxu0 0.0
    %729 = vmatpush2.msra.mxu0 0.0
    %730 = vmatprep.mubr.f32.mxu0 0.0
    %v731 = vand.u32 %v55, 4294901760
    %732 = vmatmul.mubr.f32.gmra.mxu0 %v731
    %v733 = vpop.f32.mrf.mxu0
    %v734 = vadd.f32 %v587, %v733
    %v735 = vpop.f32.mrf.mxu0
    %v736 = vadd.f32 %v589, %v735
    %737 = vmatprep.mubr.f32.mxu0 0.0
    %v738 = vand.u32 %v58, 4294901760
    %739 = vmatmul.mubr.f32.gmra.mxu0 %v738
    %v740 = vpop.f32.mrf.mxu0
    %v741 = vadd.f32 %v596, %v740
    %v742 = vpop.f32.mrf.mxu0
    %v743 = vadd.f32 %v598, %v742
    %744 = vmatprep.mubr.f32.mxu0 0.0
    %v745 = vand.u32 %v61, 4294901760
    %746 = vmatmul.mubr.f32.gmra.mxu0 %v745
    %v747 = vpop.f32.mrf.mxu0
    %v748 = vadd.f32 %v605, %v747
    %v749 = vpop.f32.mrf.mxu0
    %v750 = vadd.f32 %v607, %v749
    %751 = vmatprep.mubr.f32.mxu0 0.0
    %v752 = vand.u32 %v64, 4294901760
    %753 = vmatmul.mubr.f32.gmra.mxu0 %v752
    %v754 = vpop.f32.mrf.mxu0
    %v755 = vadd.f32 %v614, %v754
    %v756 = vpop.f32.mrf.mxu0
    %v757 = vadd.f32 %v616, %v756
    %758 = vmatprep.mubr.f32.mxu0 0.0
    %v759 = vand.u32 %v67, 4294901760
    %760 = vmatmul.mubr.f32.gmra.mxu0 %v759
    %v761 = vpop.f32.mrf.mxu0
    %v762 = vadd.f32 %v623, %v761
    %v763 = vpop.f32.mrf.mxu0
    %v764 = vadd.f32 %v625, %v763
    %765 = vmatprep.mubr.f32.mxu0 0.0
    %v766 = vand.u32 %v70, 4294901760
    %767 = vmatmul.mubr.f32.gmra.mxu0 %v766
    %v768 = vpop.f32.mrf.mxu0
    %v769 = vadd.f32 %v632, %v768
    %v770 = vpop.f32.mrf.mxu0
    %v771 = vadd.f32 %v634, %v770
    %772 = vmatprep.mubr.f32.mxu0 0.0
    %v773 = vand.u32 %v73, 4294901760
    %774 = vmatmul.mubr.f32.gmra.mxu0 %v773
    %v775 = vpop.f32.mrf.mxu0
    %v776 = vadd.f32 %v641, %v775
    %v777 = vpop.f32.mrf.mxu0
    %v778 = vadd.f32 %v643, %v777
    %779 = vmatprep.mubr.f32.mxu0 0.0
    %v780 = vand.u32 %v76, 4294901760
    %781 = vmatmul.mubr.f32.gmra.mxu0 %v780
    %v782 = vpop.f32.mrf.mxu0
    %v783 = vadd.f32 %v650, %v782
    %v784 = vpop.f32.mrf.mxu0
    %v785 = vadd.f32 %v652, %v784
    %786 = vdwg.mxu0
    %787 = vmatprep.subr.mxu0 0.0
    %788 = vmatpush1.msra.mxu0 0.0
    %789 = vmatprep.subr.mxu0 0.0
    %790 = vmatpush1.msra.mxu0 0.0
    %791 = vmatprep.subr.mxu0 0.0
    %792 = vmatpush1.msra.mxu0 0.0
    %793 = vmatprep.subr.mxu0 0.0
    %794 = vmatpush1.msra.mxu0 0.0
    %795 = vmatprep.subr.mxu0 0.0
    %796 = vmatpush1.msra.mxu0 0.0
    %797 = vmatprep.subr.mxu0 0.0
    %798 = vmatpush1.msra.mxu0 0.0
    %799 = vmatprep.subr.mxu0 0.0
    %800 = vmatpush1.msra.mxu0 0.0
    %801 = vmatprep.subr.mxu0 0.0
    %802 = vmatpush1.msra.mxu0 0.0
    %803 = vmatprep.subr.mxu0 0.0
    %804 = vmatpush1.msra.mxu0 0.0
    %805 = vmatprep.subr.mxu0 0.0
    %806 = vmatpush1.msra.mxu0 0.0
    %807 = vmatprep.subr.mxu0 0.0
    %808 = vmatpush1.msra.mxu0 0.0
    %809 = vmatprep.subr.mxu0 0.0
    %810 = vmatpush1.msra.mxu0 0.0
    %811 = vmatprep.subr.mxu0 0.0
    %812 = vmatpush1.msra.mxu0 0.0
    %813 = vmatprep.subr.mxu0 0.0
    %814 = vmatpush1.msra.mxu0 0.0
    %v815 = vand.u32 %v41, 4294901760
    %816 = vmatprep.subr.mxu0 %v815
    %v817 = vand.u32 %v40, 4294901760
    %818 = vmatpush1.msra.mxu0 %v817
    %v819 = vand.u32 %v39, 4294901760
    %820 = vmatprep.subr.mxu0 %v819
    %v821 = vand.u32 %v38, 4294901760
    %822 = vmatpush1.msra.mxu0 %v821
    %823 = vmatprep.subr.mxu0 0.0
    %824 = vmatpush2.msra.mxu0 0.0
    %825 = vmatprep.subr.mxu0 0.0
    %826 = vmatpush2.msra.mxu0 0.0
    %827 = vmatprep.subr.mxu0 0.0
    %828 = vmatpush2.msra.mxu0 0.0
    %829 = vmatprep.subr.mxu0 0.0
    %830 = vmatpush2.msra.mxu0 0.0
    %831 = vmatprep.subr.mxu0 0.0
    %832 = vmatpush2.msra.mxu0 0.0
    %833 = vmatprep.subr.mxu0 0.0
    %834 = vmatpush2.msra.mxu0 0.0
    %835 = vmatprep.subr.mxu0 0.0
    %836 = vmatpush2.msra.mxu0 0.0
    %837 = vmatprep.subr.mxu0 0.0
    %838 = vmatpush2.msra.mxu0 0.0
    %839 = vmatprep.subr.mxu0 0.0
    %840 = vmatpush2.msra.mxu0 0.0
    %841 = vmatprep.subr.mxu0 0.0
    %842 = vmatpush2.msra.mxu0 0.0
    %843 = vmatprep.subr.mxu0 0.0
    %844 = vmatpush2.msra.mxu0 0.0
    %845 = vmatprep.subr.mxu0 0.0
    %846 = vmatpush2.msra.mxu0 0.0
    %847 = vmatprep.subr.mxu0 0.0
    %848 = vmatpush2.msra.mxu0 0.0
    %849 = vmatprep.subr.mxu0 0.0
    %850 = vmatpush2.msra.mxu0 0.0
    %851 = vmatprep.subr.mxu0 0.0
    %852 = vmatpush2.msra.mxu0 0.0
    %853 = vmatprep.subr.mxu0 0.0
    %854 = vmatpush2.msra.mxu0 0.0
    %855 = vmatprep.mubr.f32.mxu0 0.0
    %v856 = vand.u32 %v55, 4294901760
    %857 = vmatmul.mubr.f32.gmra.mxu0 %v856
    %v858 = vpop.f32.mrf.mxu0
    %v859 = vadd.f32 %v734, %v858
    %v860 = vpop.f32.mrf.mxu0
    %v861 = vadd.f32 %v736, %v860
    %862 = vmatprep.mubr.f32.mxu0 0.0
    %v863 = vand.u32 %v58, 4294901760
    %864 = vmatmul.mubr.f32.gmra.mxu0 %v863
    %v865 = vpop.f32.mrf.mxu0
    %v866 = vadd.f32 %v741, %v865
    %v867 = vpop.f32.mrf.mxu0
    %v868 = vadd.f32 %v743, %v867
    %869 = vmatprep.mubr.f32.mxu0 0.0
    %v870 = vand.u32 %v61, 4294901760
    %871 = vmatmul.mubr.f32.gmra.mxu0 %v870
    %v872 = vpop.f32.mrf.mxu0
    %v873 = vadd.f32 %v748, %v872
    %v874 = vpop.f32.mrf.mxu0
    %v875 = vadd.f32 %v750, %v874
    %876 = vmatprep.mubr.f32.mxu0 0.0
    %v877 = vand.u32 %v64, 4294901760
    %878 = vmatmul.mubr.f32.gmra.mxu0 %v877
    %v879 = vpop.f32.mrf.mxu0
    %v880 = vadd.f32 %v755, %v879
    %v881 = vpop.f32.mrf.mxu0
    %v882 = vadd.f32 %v757, %v881
    %883 = vmatprep.mubr.f32.mxu0 0.0
    %v884 = vand.u32 %v67, 4294901760
    %885 = vmatmul.mubr.f32.gmra.mxu0 %v884
    %v886 = vpop.f32.mrf.mxu0
    %v887 = vadd.f32 %v762, %v886
    %v888 = vpop.f32.mrf.mxu0
    %v889 = vadd.f32 %v764, %v888
    %890 = vmatprep.mubr.f32.mxu0 0.0
    %v891 = vand.u32 %v70, 4294901760
    %892 = vmatmul.mubr.f32.gmra.mxu0 %v891
    %v893 = vpop.f32.mrf.mxu0
    %v894 = vadd.f32 %v769, %v893
    %v895 = vpop.f32.mrf.mxu0
    %v896 = vadd.f32 %v771, %v895
    %897 = vmatprep.mubr.f32.mxu0 0.0
    %v898 = vand.u32 %v73, 4294901760
    %899 = vmatmul.mubr.f32.gmra.mxu0 %v898
    %v900 = vpop.f32.mrf.mxu0
    %v901 = vadd.f32 %v776, %v900
    %v902 = vpop.f32.mrf.mxu0
    %v903 = vadd.f32 %v778, %v902
    %904 = vmatprep.mubr.f32.mxu0 0.0
    %v905 = vand.u32 %v76, 4294901760
    %906 = vmatmul.mubr.f32.gmra.mxu0 %v905
    %v907 = vpop.f32.mrf.mxu0
    %v908 = vadd.f32 %v783, %v907
    %v909 = vpop.f32.mrf.mxu0
    %v910 = vadd.f32 %v785, %v909
    %911 = vdwg.mxu0
    %912 = vst [vmem:[#allocation2] sm:$0xff] %v859
    %913 = vst [vmem:[#allocation2 + $0x8] sm:$0xff] %v861
    %914 = vst [vmem:[#allocation2 + $0x10] sm:$0xff] %v866
    %915 = vst [vmem:[#allocation2 + $0x18] sm:$0xff] %v868
    %916 = vst [vmem:[#allocation2 + $0x20] sm:$0xff] %v873
    %917 = vst [vmem:[#allocation2 + $0x28] sm:$0xff] %v875
    %918 = vst [vmem:[#allocation2 + $0x30] sm:$0xff] %v880
    %919 = vst [vmem:[#allocation2 + $0x38] sm:$0xff] %v882
    %920 = vst [vmem:[#allocation2 + $0x40] sm:$0xff] %v887
    %921 = vst [vmem:[#allocation2 + $0x48] sm:$0xff] %v889
    %922 = vst [vmem:[#allocation2 + $0x50] sm:$0xff] %v894
    %923 = vst [vmem:[#allocation2 + $0x58] sm:$0xff] %v896
    %924 = vst [vmem:[#allocation2 + $0x60] sm:$0xff] %v901
    %925 = vst [vmem:[#allocation2 + $0x68] sm:$0xff] %v903
    %926 = vst [vmem:[#allocation2 + $0x70] sm:$0xff] %v908
    %927 = vst [vmem:[#allocation2 + $0x78] sm:$0xff] %v910
    %v928 = vld [vmem:[#allocation3] sm:$0xff]
    %v929 = vld [vmem:[#allocation3 + $0x10] sm:$0xff]
    %v930 = vld [vmem:[#allocation3 + $0x20] sm:$0xff]
    %v931 = vld [vmem:[#allocation3 + $0x30] sm:$0xff]
    %v932 = vld [vmem:[#allocation2] sm:$0xff]
    %v933 = vxor.u32 %v932, 2147483648
    %v934 = vmul.f32 %v933, 1.442695
    %v935 = vpow.pop %v934
    %v936 = vadd.f32 %v935, 1.0
    %v937 = vrcp.pop %v936
    %v938 = vmul.f32 1.0, %v937
    %v939 = vtanh.pop %v932
    %941 = vrot.lane.b32.xlu0 %v939, 64
    %v942 = vpop.permute.xlu0 %941
    %v944 = vmul.f32 %v938, %v942
    %v945 = vtanh.pop %v944
    %947 = vrot.lane.b32.xlu0 %v945, 96
    %v948 = vpop.permute.xlu0 %947
    %v950 = vmul.f32 %v938, %v948
    %v951 = vld [vmem:[#allocation2 + $0x10] sm:$0xff]
    %953 = vrot.lane.b32.xlu0 %v950, 32
    %v954 = vpop.permute.xlu0 %953
    %vm955 = vcmask 261120
    %v956 = vsel %vm955, %v954, 0
    %958 = vmatprep.subr.mxu0 0.0
    %959 = vmatpush1.msra.mxu0 0.0
    %960 = vmatprep.subr.mxu0 0.0
    %961 = vmatpush1.msra.mxu0 0.0
    %962 = vmatprep.subr.mxu0 0.0
    %963 = vmatpush1.msra.mxu0 0.0
    %964 = vmatprep.subr.mxu0 0.0
    %965 = vmatpush1.msra.mxu0 0.0
    %966 = vmatprep.subr.mxu0 0.0
    %967 = vmatpush1.msra.mxu0 0.0
    %968 = vmatprep.subr.mxu0 0.0
    %969 = vmatpush1.msra.mxu0 0.0
    %970 = vmatprep.subr.mxu0 0.0
    %971 = vmatpush1.msra.mxu0 0.0
    %972 = vmatprep.subr.mxu0 0.0
    %973 = vmatpush1.msra.mxu0 0.0
    %974 = vmatprep.subr.mxu0 0.0
    %975 = vmatpush1.msra.mxu0 0.0
    %976 = vmatprep.subr.mxu0 0.0
    %977 = vmatpush1.msra.mxu0 0.0
    %978 = vmatprep.subr.mxu0 0.0
    %979 = vmatpush1.msra.mxu0 0.0
    %980 = vmatprep.subr.mxu0 0.0
    %981 = vmatpush1.msra.mxu0 0.0
    %982 = vmatprep.subr.mxu0 0.0
    %v983 = vand.u32 %v931, 4294901760
    %984 = vmatpush1.msra.mxu0 %v983
    %985 = vmatprep.subr.mxu0 0.0
    %v986 = vand.u32 %v930, 4294901760
    %987 = vmatpush1.msra.mxu0 %v986
    %988 = vmatprep.subr.mxu0 0.0
    %v989 = vand.u32 %v929, 4294901760
    %990 = vmatpush1.msra.mxu0 %v989
    %991 = vmatprep.subr.mxu0 0.0
    %v992 = vand.u32 %v928, 4294901760
    %993 = vmatpush1.msra.mxu0 %v992
    %994 = vmatprep.subr.mxu0 0.0
    %995 = vmatpush2.msra.mxu0 0.0
    %996 = vmatprep.subr.mxu0 0.0
    %997 = vmatpush2.msra.mxu0 0.0
    %998 = vmatprep.subr.mxu0 0.0
    %999 = vmatpush2.msra.mxu0 0.0
    %1000 = vmatprep.subr.mxu0 0.0
    %1001 = vmatpush2.msra.mxu0 0.0
    %1002 = vmatprep.subr.mxu0 0.0
    %1003 = vmatpush2.msra.mxu0 0.0
    %1004 = vmatprep.subr.mxu0 0.0
    %1005 = vmatpush2.msra.mxu0 0.0
    %1006 = vmatprep.subr.mxu0 0.0
    %1007 = vmatpush2.msra.mxu0 0.0
    %1008 = vmatprep.subr.mxu0 0.0
    %1009 = vmatpush2.msra.mxu0 0.0
    %1010 = vmatprep.subr.mxu0 0.0
    %1011 = vmatpush2.msra.mxu0 0.0
    %1012 = vmatprep.subr.mxu0 0.0
    %1013 = vmatpush2.msra.mxu0 0.0
    %1014 = vmatprep.subr.mxu0 0.0
    %1015 = vmatpush2.msra.mxu0 0.0
    %1016 = vmatprep.subr.mxu0 0.0
    %1017 = vmatpush2.msra.mxu0 0.0
    %1018 = vmatprep.subr.mxu0 0.0
    %1019 = vmatpush2.msra.mxu0 0.0
    %1020 = vmatprep.subr.mxu0 0.0
    %1021 = vmatpush2.msra.mxu0 0.0
    %1022 = vmatprep.subr.mxu0 0.0
    %1023 = vmatpush2.msra.mxu0 0.0
    %1024 = vmatprep.subr.mxu0 0.0
    %1025 = vmatpush2.msra.mxu0 0.0
    %1026 = vmatprep.mubr.f32.mxu0 0.0
    %v1027 = vand.u32 %v956, 4294901760
    %v1028 = vsub.f32 %v956, %v1027
    %v1029 = vand.u32 %v1028, 4294901760
    %v1030 = vsub.f32 %v1028, %v1029
    %v1031 = vand.u32 %v1030, 4294901760
    %1032 = vmatmul.mubr.f32.gmra.mxu0 %v1031
    %v1033 = vpop.f32.mrf.mxu0
    %v1034 = vadd.f32 0.0, %v1033
    %v1035 = vpop.f32.mrf.mxu0
    %1036 = vdwg.mxu0
    %1037 = vmatprep.subr.mxu0 0.0
    %1038 = vmatpush1.msra.mxu0 0.0
    %1039 = vmatprep.subr.mxu0 0.0
    %1040 = vmatpush1.msra.mxu0 0.0
    %1041 = vmatprep.subr.mxu0 0.0
    %1042 = vmatpush1.msra.mxu0 0.0
    %1043 = vmatprep.subr.mxu0 0.0
    %1044 = vmatpush1.msra.mxu0 0.0
    %1045 = vmatprep.subr.mxu0 0.0
    %1046 = vmatpush1.msra.mxu0 0.0
    %1047 = vmatprep.subr.mxu0 0.0
    %1048 = vmatpush1.msra.mxu0 0.0
    %1049 = vmatprep.subr.mxu0 0.0
    %1050 = vmatpush1.msra.mxu0 0.0
    %1051 = vmatprep.subr.mxu0 0.0
    %1052 = vmatpush1.msra.mxu0 0.0
    %1053 = vmatprep.subr.mxu0 0.0
    %1054 = vmatpush1.msra.mxu0 0.0
    %1055 = vmatprep.subr.mxu0 0.0
    %1056 = vmatpush1.msra.mxu0 0.0
    %1057 = vmatprep.subr.mxu0 0.0
    %1058 = vmatpush1.msra.mxu0 0.0
    %1059 = vmatprep.subr.mxu0 0.0
    %1060 = vmatpush1.msra.mxu0 0.0
    %1061 = vmatprep.subr.mxu0 0.0
    %v1062 = vand.u32 %v931, 4294901760
    %v1063 = vsub.f32 %v931, %v1062
    %v1064 = vand.u32 %v1063, 4294901760
    %v1065 = vsub.f32 %v1063, %v1064
    %v1066 = vand.u32 %v1065, 4294901760
    %1067 = vmatpush1.msra.mxu0 %v1066
    %1068 = vmatprep.subr.mxu0 0.0
    %v1069 = vand.u32 %v930, 4294901760
    %v1070 = vsub.f32 %v930, %v1069
    %v1071 = vand.u32 %v1070, 4294901760
    %v1072 = vsub.f32 %v1070, %v1071
    %v1073 = vand.u32 %v1072, 4294901760
    %1074 = vmatpush1.msra.mxu0 %v1073
    %1075 = vmatprep.subr.mxu0 0.0
    %v1076 = vand.u32 %v929, 4294901760
    %v1077 = vsub.f32 %v929, %v1076
    %v1078 = vand.u32 %v1077, 4294901760
    %v1079 = vsub.f32 %v1077, %v1078
    %v1080 = vand.u32 %v1079, 4294901760
    %1081 = vmatpush1.msra.mxu0 %v1080
    %1082 = vmatprep.subr.mxu0 0.0
    %v1083 = vand.u32 %v928, 4294901760
    %v1084 = vsub.f32 %v928, %v1083
    %v1085 = vand.u32 %v1084, 4294901760
    %v1086 = vsub.f32 %v1084, %v1085
    %v1087 = vand.u32 %v1086, 4294901760
    %1088 = vmatpush1.msra.mxu0 %v1087
    %1089 = vmatprep.subr.mxu0 0.0
    %1090 = vmatpush2.msra.mxu0 0.0
    %1091 = vmatprep.subr.mxu0 0.0
    %1092 = vmatpush2.msra.mxu0 0.0
    %1093 = vmatprep.subr.mxu0 0.0
    %1094 = vmatpush2.msra.mxu0 0.0
    %1095 = vmatprep.subr.mxu0 0.0
    %1096 = vmatpush2.msra.mxu0 0.0
    %1097 = vmatprep.subr.mxu0 0.0
    %1098 = vmatpush2.msra.mxu0 0.0
    %1099 = vmatprep.subr.mxu0 0.0
    %1100 = vmatpush2.msra.mxu0 0.0
    %1101 = vmatprep.subr.mxu0 0.0
    %1102 = vmatpush2.msra.mxu0 0.0
    %1103 = vmatprep.subr.mxu0 0.0
    %1104 = vmatpush2.msra.mxu0 0.0
    %1105 = vmatprep.subr.mxu0 0.0
    %1106 = vmatpush2.msra.mxu0 0.0
    %1107 = vmatprep.subr.mxu0 0.0
    %1108 = vmatpush2.msra.mxu0 0.0
    %1109 = vmatprep.subr.mxu0 0.0
    %1110 = vmatpush2.msra.mxu0 0.0
    %1111 = vmatprep.subr.mxu0 0.0
    %1112 = vmatpush2.msra.mxu0 0.0
    %1113 = vmatprep.subr.mxu0 0.0
    %1114 = vmatpush2.msra.mxu0 0.0
    %1115 = vmatprep.subr.mxu0 0.0
    %1116 = vmatpush2.msra.mxu0 0.0
    %1117 = vmatprep.subr.mxu0 0.0
    %1118 = vmatpush2.msra.mxu0 0.0
    %1119 = vmatprep.subr.mxu0 0.0
    %1120 = vmatpush2.msra.mxu0 0.0
    %1121 = vmatprep.mubr.f32.mxu0 0.0
    %v1122 = vand.u32 %v956, 4294901760
    %1123 = vmatmul.mubr.f32.gmra.mxu0 %v1122
    %v1124 = vpop.f32.mrf.mxu0
    %v1125 = vadd.f32 %v1034, %v1124
    %v1126 = vpop.f32.mrf.mxu0
    %1127 = vdwg.mxu0
    %1128 = vmatprep.subr.mxu0 0.0
    %1129 = vmatpush1.msra.mxu0 0.0
    %1130 = vmatprep.subr.mxu0 0.0
    %1131 = vmatpush1.msra.mxu0 0.0
    %1132 = vmatprep.subr.mxu0 0.0
    %1133 = vmatpush1.msra.mxu0 0.0
    %1134 = vmatprep.subr.mxu0 0.0
    %1135 = vmatpush1.msra.mxu0 0.0
    %1136 = vmatprep.subr.mxu0 0.0
    %1137 = vmatpush1.msra.mxu0 0.0
    %1138 = vmatprep.subr.mxu0 0.0
    %1139 = vmatpush1.msra.mxu0 0.0
    %1140 = vmatprep.subr.mxu0 0.0
    %1141 = vmatpush1.msra.mxu0 0.0
    %1142 = vmatprep.subr.mxu0 0.0
    %1143 = vmatpush1.msra.mxu0 0.0
    %1144 = vmatprep.subr.mxu0 0.0
    %1145 = vmatpush1.msra.mxu0 0.0
    %1146 = vmatprep.subr.mxu0 0.0
    %1147 = vmatpush1.msra.mxu0 0.0
    %1148 = vmatprep.subr.mxu0 0.0
    %1149 = vmatpush1.msra.mxu0 0.0
    %1150 = vmatprep.subr.mxu0 0.0
    %1151 = vmatpush1.msra.mxu0 0.0
    %1152 = vmatprep.subr.mxu0 0.0
    %v1153 = vand.u32 %v931, 4294901760
    %v1154 = vsub.f32 %v931, %v1153
    %1155 = vmatpush1.msra.mxu0 %v1154
    %1156 = vmatprep.subr.mxu0 0.0
    %v1157 = vand.u32 %v930, 4294901760
    %v1158 = vsub.f32 %v930, %v1157
    %1159 = vmatpush1.msra.mxu0 %v1158
    %1160 = vmatprep.subr.mxu0 0.0
    %v1161 = vand.u32 %v929, 4294901760
    %v1162 = vsub.f32 %v929, %v1161
    %1163 = vmatpush1.msra.mxu0 %v1162
    %1164 = vmatprep.subr.mxu0 0.0
    %v1165 = vand.u32 %v928, 4294901760
    %v1166 = vsub.f32 %v928, %v1165
    %1167 = vmatpush1.msra.mxu0 %v1166
    %1168 = vmatprep.subr.mxu0 0.0
    %1169 = vmatpush2.msra.mxu0 0.0
    %1170 = vmatprep.subr.mxu0 0.0
    %1171 = vmatpush2.msra.mxu0 0.0
    %1172 = vmatprep.subr.mxu0 0.0
    %1173 = vmatpush2.msra.mxu0 0.0
    %1174 = vmatprep.subr.mxu0 0.0
    %1175 = vmatpush2.msra.mxu0 0.0
    %1176 = vmatprep.subr.mxu0 0.0
    %1177 = vmatpush2.msra.mxu0 0.0
    %1178 = vmatprep.subr.mxu0 0.0
    %1179 = vmatpush2.msra.mxu0 0.0
    %1180 = vmatprep.subr.mxu0 0.0
    %1181 = vmatpush2.msra.mxu0 0.0
    %1182 = vmatprep.subr.mxu0 0.0
    %1183 = vmatpush2.msra.mxu0 0.0
    %1184 = vmatprep.subr.mxu0 0.0
    %1185 = vmatpush2.msra.mxu0 0.0
    %1186 = vmatprep.subr.mxu0 0.0
    %1187 = vmatpush2.msra.mxu0 0.0
    %1188 = vmatprep.subr.mxu0 0.0
    %1189 = vmatpush2.msra.mxu0 0.0
    %1190 = vmatprep.subr.mxu0 0.0
    %1191 = vmatpush2.msra.mxu0 0.0
    %1192 = vmatprep.subr.mxu0 0.0
    %1193 = vmatpush2.msra.mxu0 0.0
    %1194 = vmatprep.subr.mxu0 0.0
    %1195 = vmatpush2.msra.mxu0 0.0
    %1196 = vmatprep.subr.mxu0 0.0
    %1197 = vmatpush2.msra.mxu0 0.0
    %1198 = vmatprep.subr.mxu0 0.0
    %1199 = vmatpush2.msra.mxu0 0.0
    %1200 = vmatprep.mubr.f32.mxu0 0.0
    %v1201 = vand.u32 %v956, 4294901760
    %v1202 = vsub.f32 %v956, %v1201
    %1203 = vmatmul.mubr.f32.gmra.mxu0 %v1202
    %v1204 = vpop.f32.mrf.mxu0
    %v1205 = vadd.f32 %v1125, %v1204
    %v1206 = vpop.f32.mrf.mxu0
    %1207 = vdwg.mxu0
    %1208 = vmatprep.subr.mxu0 0.0
    %1209 = vmatpush1.msra.mxu0 0.0
    %1210 = vmatprep.subr.mxu0 0.0
    %1211 = vmatpush1.msra.mxu0 0.0
    %1212 = vmatprep.subr.mxu0 0.0
    %1213 = vmatpush1.msra.mxu0 0.0
    %1214 = vmatprep.subr.mxu0 0.0
    %1215 = vmatpush1.msra.mxu0 0.0
    %1216 = vmatprep.subr.mxu0 0.0
    %1217 = vmatpush1.msra.mxu0 0.0
    %1218 = vmatprep.subr.mxu0 0.0
    %1219 = vmatpush1.msra.mxu0 0.0
    %1220 = vmatprep.subr.mxu0 0.0
    %1221 = vmatpush1.msra.mxu0 0.0
    %1222 = vmatprep.subr.mxu0 0.0
    %1223 = vmatpush1.msra.mxu0 0.0
    %1224 = vmatprep.subr.mxu0 0.0
    %1225 = vmatpush1.msra.mxu0 0.0
    %1226 = vmatprep.subr.mxu0 0.0
    %1227 = vmatpush1.msra.mxu0 0.0
    %1228 = vmatprep.subr.mxu0 0.0
    %1229 = vmatpush1.msra.mxu0 0.0
    %1230 = vmatprep.subr.mxu0 0.0
    %1231 = vmatpush1.msra.mxu0 0.0
    %1232 = vmatprep.subr.mxu0 0.0
    %v1233 = vand.u32 %v931, 4294901760
    %1234 = vmatpush1.msra.mxu0 %v1233
    %1235 = vmatprep.subr.mxu0 0.0
    %v1236 = vand.u32 %v930, 4294901760
    %1237 = vmatpush1.msra.mxu0 %v1236
    %1238 = vmatprep.subr.mxu0 0.0
    %v1239 = vand.u32 %v929, 4294901760
    %1240 = vmatpush1.msra.mxu0 %v1239
    %1241 = vmatprep.subr.mxu0 0.0
    %v1242 = vand.u32 %v928, 4294901760
    %1243 = vmatpush1.msra.mxu0 %v1242
    %1244 = vmatprep.subr.mxu0 0.0
    %1245 = vmatpush2.msra.mxu0 0.0
    %1246 = vmatprep.subr.mxu0 0.0
    %1247 = vmatpush2.msra.mxu0 0.0
    %1248 = vmatprep.subr.mxu0 0.0
    %1249 = vmatpush2.msra.mxu0 0.0
    %1250 = vmatprep.subr.mxu0 0.0
    %1251 = vmatpush2.msra.mxu0 0.0
    %1252 = vmatprep.subr.mxu0 0.0
    %1253 = vmatpush2.msra.mxu0 0.0
    %1254 = vmatprep.subr.mxu0 0.0
    %1255 = vmatpush2.msra.mxu0 0.0
    %1256 = vmatprep.subr.mxu0 0.0
    %1257 = vmatpush2.msra.mxu0 0.0
    %1258 = vmatprep.subr.mxu0 0.0
    %1259 = vmatpush2.msra.mxu0 0.0
    %1260 = vmatprep.subr.mxu0 0.0
    %1261 = vmatpush2.msra.mxu0 0.0
    %1262 = vmatprep.subr.mxu0 0.0
    %1263 = vmatpush2.msra.mxu0 0.0
    %1264 = vmatprep.subr.mxu0 0.0
    %1265 = vmatpush2.msra.mxu0 0.0
    %1266 = vmatprep.subr.mxu0 0.0
    %1267 = vmatpush2.msra.mxu0 0.0
    %1268 = vmatprep.subr.mxu0 0.0
    %1269 = vmatpush2.msra.mxu0 0.0
    %1270 = vmatprep.subr.mxu0 0.0
    %1271 = vmatpush2.msra.mxu0 0.0
    %1272 = vmatprep.subr.mxu0 0.0
    %1273 = vmatpush2.msra.mxu0 0.0
    %1274 = vmatprep.subr.mxu0 0.0
    %1275 = vmatpush2.msra.mxu0 0.0
    %1276 = vmatprep.mubr.f32.mxu0 0.0
    %v1277 = vand.u32 %v956, 4294901760
    %v1278 = vsub.f32 %v956, %v1277
    %v1279 = vand.u32 %v1278, 4294901760
    %1280 = vmatmul.mubr.f32.gmra.mxu0 %v1279
    %v1281 = vpop.f32.mrf.mxu0
    %v1282 = vadd.f32 %v1205, %v1281
    %v1283 = vpop.f32.mrf.mxu0
    %1284 = vdwg.mxu0
    %1285 = vmatprep.subr.mxu0 0.0
    %1286 = vmatpush1.msra.mxu0 0.0
    %1287 = vmatprep.subr.mxu0 0.0
    %1288 = vmatpush1.msra.mxu0 0.0
    %1289 = vmatprep.subr.mxu0 0.0
    %1290 = vmatpush1.msra.mxu0 0.0
    %1291 = vmatprep.subr.mxu0 0.0
    %1292 = vmatpush1.msra.mxu0 0.0
    %1293 = vmatprep.subr.mxu0 0.0
    %1294 = vmatpush1.msra.mxu0 0.0
    %1295 = vmatprep.subr.mxu0 0.0
    %1296 = vmatpush1.msra.mxu0 0.0
    %1297 = vmatprep.subr.mxu0 0.0
    %1298 = vmatpush1.msra.mxu0 0.0
    %1299 = vmatprep.subr.mxu0 0.0
    %1300 = vmatpush1.msra.mxu0 0.0
    %1301 = vmatprep.subr.mxu0 0.0
    %1302 = vmatpush1.msra.mxu0 0.0
    %1303 = vmatprep.subr.mxu0 0.0
    %1304 = vmatpush1.msra.mxu0 0.0
    %1305 = vmatprep.subr.mxu0 0.0
    %1306 = vmatpush1.msra.mxu0 0.0
    %1307 = vmatprep.subr.mxu0 0.0
    %1308 = vmatpush1.msra.mxu0 0.0
    %1309 = vmatprep.subr.mxu0 0.0
    %v1310 = vand.u32 %v931, 4294901760
    %v1311 = vsub.f32 %v931, %v1310
    %v1312 = vand.u32 %v1311, 4294901760
    %1313 = vmatpush1.msra.mxu0 %v1312
    %1314 = vmatprep.subr.mxu0 0.0
    %v1315 = vand.u32 %v930, 4294901760
    %v1316 = vsub.f32 %v930, %v1315
    %v1317 = vand.u32 %v1316, 4294901760
    %1318 = vmatpush1.msra.mxu0 %v1317
    %1319 = vmatprep.subr.mxu0 0.0
    %v1320 = vand.u32 %v929, 4294901760
    %v1321 = vsub.f32 %v929, %v1320
    %v1322 = vand.u32 %v1321, 4294901760
    %1323 = vmatpush1.msra.mxu0 %v1322
    %1324 = vmatprep.subr.mxu0 0.0
    %v1325 = vand.u32 %v928, 4294901760
    %v1326 = vsub.f32 %v928, %v1325
    %v1327 = vand.u32 %v1326, 4294901760
    %1328 = vmatpush1.msra.mxu0 %v1327
    %1329 = vmatprep.subr.mxu0 0.0
    %1330 = vmatpush2.msra.mxu0 0.0
    %1331 = vmatprep.subr.mxu0 0.0
    %1332 = vmatpush2.msra.mxu0 0.0
    %1333 = vmatprep.subr.mxu0 0.0
    %1334 = vmatpush2.msra.mxu0 0.0
    %1335 = vmatprep.subr.mxu0 0.0
    %1336 = vmatpush2.msra.mxu0 0.0
    %1337 = vmatprep.subr.mxu0 0.0
    %1338 = vmatpush2.msra.mxu0 0.0
    %1339 = vmatprep.subr.mxu0 0.0
    %1340 = vmatpush2.msra.mxu0 0.0
    %1341 = vmatprep.subr.mxu0 0.0
    %1342 = vmatpush2.msra.mxu0 0.0
    %1343 = vmatprep.subr.mxu0 0.0
    %1344 = vmatpush2.msra.mxu0 0.0
    %1345 = vmatprep.subr.mxu0 0.0
    %1346 = vmatpush2.msra.mxu0 0.0
    %1347 = vmatprep.subr.mxu0 0.0
    %1348 = vmatpush2.msra.mxu0 0.0
    %1349 = vmatprep.subr.mxu0 0.0
    %1350 = vmatpush2.msra.mxu0 0.0
    %1351 = vmatprep.subr.mxu0 0.0
    %1352 = vmatpush2.msra.mxu0 0.0
    %1353 = vmatprep.subr.mxu0 0.0
    %1354 = vmatpush2.msra.mxu0 0.0
    %1355 = vmatprep.subr.mxu0 0.0
    %1356 = vmatpush2.msra.mxu0 0.0
    %1357 = vmatprep.subr.mxu0 0.0
    %1358 = vmatpush2.msra.mxu0 0.0
    %1359 = vmatprep.subr.mxu0 0.0
    %1360 = vmatpush2.msra.mxu0 0.0
    %1361 = vmatprep.mubr.f32.mxu0 0.0
    %v1362 = vand.u32 %v956, 4294901760
    %1363 = vmatmul.mubr.f32.gmra.mxu0 %v1362
    %v1364 = vpop.f32.mrf.mxu0
    %v1365 = vadd.f32 %v1282, %v1364
    %v1366 = vpop.f32.mrf.mxu0
    %1367 = vdwg.mxu0
    %1368 = vmatprep.subr.mxu0 0.0
    %1369 = vmatpush1.msra.mxu0 0.0
    %1370 = vmatprep.subr.mxu0 0.0
    %1371 = vmatpush1.msra.mxu0 0.0
    %1372 = vmatprep.subr.mxu0 0.0
    %1373 = vmatpush1.msra.mxu0 0.0
    %1374 = vmatprep.subr.mxu0 0.0
    %1375 = vmatpush1.msra.mxu0 0.0
    %1376 = vmatprep.subr.mxu0 0.0
    %1377 = vmatpush1.msra.mxu0 0.0
    %1378 = vmatprep.subr.mxu0 0.0
    %1379 = vmatpush1.msra.mxu0 0.0
    %1380 = vmatprep.subr.mxu0 0.0
    %1381 = vmatpush1.msra.mxu0 0.0
    %1382 = vmatprep.subr.mxu0 0.0
    %1383 = vmatpush1.msra.mxu0 0.0
    %1384 = vmatprep.subr.mxu0 0.0
    %1385 = vmatpush1.msra.mxu0 0.0
    %1386 = vmatprep.subr.mxu0 0.0
    %1387 = vmatpush1.msra.mxu0 0.0
    %1388 = vmatprep.subr.mxu0 0.0
    %1389 = vmatpush1.msra.mxu0 0.0
    %1390 = vmatprep.subr.mxu0 0.0
    %1391 = vmatpush1.msra.mxu0 0.0
    %1392 = vmatprep.subr.mxu0 0.0
    %v1393 = vand.u32 %v931, 4294901760
    %1394 = vmatpush1.msra.mxu0 %v1393
    %1395 = vmatprep.subr.mxu0 0.0
    %v1396 = vand.u32 %v930, 4294901760
    %1397 = vmatpush1.msra.mxu0 %v1396
    %1398 = vmatprep.subr.mxu0 0.0
    %v1399 = vand.u32 %v929, 4294901760
    %1400 = vmatpush1.msra.mxu0 %v1399
    %1401 = vmatprep.subr.mxu0 0.0
    %v1402 = vand.u32 %v928, 4294901760
    %1403 = vmatpush1.msra.mxu0 %v1402
    %1404 = vmatprep.subr.mxu0 0.0
    %1405 = vmatpush2.msra.mxu0 0.0
    %1406 = vmatprep.subr.mxu0 0.0
    %1407 = vmatpush2.msra.mxu0 0.0
    %1408 = vmatprep.subr.mxu0 0.0
    %1409 = vmatpush2.msra.mxu0 0.0
    %1410 = vmatprep.subr.mxu0 0.0
    %1411 = vmatpush2.msra.mxu0 0.0
    %1412 = vmatprep.subr.mxu0 0.0
    %1413 = vmatpush2.msra.mxu0 0.0
    %1414 = vmatprep.subr.mxu0 0.0
    %1415 = vmatpush2.msra.mxu0 0.0
    %1416 = vmatprep.subr.mxu0 0.0
    %1417 = vmatpush2.msra.mxu0 0.0
    %1418 = vmatprep.subr.mxu0 0.0
    %1419 = vmatpush2.msra.mxu0 0.0
    %1420 = vmatprep.subr.mxu0 0.0
    %1421 = vmatpush2.msra.mxu0 0.0
    %1422 = vmatprep.subr.mxu0 0.0
    %1423 = vmatpush2.msra.mxu0 0.0
    %1424 = vmatprep.subr.mxu0 0.0
    %1425 = vmatpush2.msra.mxu0 0.0
    %1426 = vmatprep.subr.mxu0 0.0
    %1427 = vmatpush2.msra.mxu0 0.0
    %1428 = vmatprep.subr.mxu0 0.0
    %1429 = vmatpush2.msra.mxu0 0.0
    %1430 = vmatprep.subr.mxu0 0.0
    %1431 = vmatpush2.msra.mxu0 0.0
    %1432 = vmatprep.subr.mxu0 0.0
    %1433 = vmatpush2.msra.mxu0 0.0
    %1434 = vmatprep.subr.mxu0 0.0
    %1435 = vmatpush2.msra.mxu0 0.0
    %1436 = vmatprep.mubr.f32.mxu0 0.0
    %v1437 = vand.u32 %v956, 4294901760
    %1438 = vmatmul.mubr.f32.gmra.mxu0 %v1437
    %v1439 = vpop.f32.mrf.mxu0
    %v1440 = vadd.f32 %v1365, %v1439
    %v1441 = vpop.f32.mrf.mxu0
    %1442 = vdwg.mxu0
    %v1443 = vadd.f32 %v951, %v1440
    %v1444 = vxor.u32 %v1443, 2147483648
    %v1445 = vmul.f32 %v1444, 1.442695
    %v1446 = vpow.pop %v1445
    %v1447 = vadd.f32 %v1446, 1.0
    %v1448 = vrcp.pop %v1447
    %v1449 = vmul.f32 1.0, %v1448
    %v1450 = vtanh.pop %v1443
    %1452 = vrot.lane.b32.xlu0 %v944, 32
    %v1453 = vpop.permute.xlu0 %1452
    %v1455 = vmul.f32 %v1449, %v1453
    %1457 = vrot.lane.b32.xlu0 %v1450, 64
    %v1458 = vpop.permute.xlu0 %1457
    %v1460 = vmul.f32 %v1449, %v1458
    %1462 = vrot.lane.b32.xlu0 %v1460, 32
    %v1463 = vpop.permute.xlu0 %1462
    %v1465 = vadd.f32 %v1455, %v1463
    %v1466 = vtanh.pop %v1465
    %1468 = vrot.lane.b32.xlu0 %v1466, 64
    %v1469 = vpop.permute.xlu0 %1468
    %v1471 = vmul.f32 %v1449, %v1469
    %v1472 = vld [vmem:[#allocation2 + $0x20] sm:$0xff]
    %1474 = vrot.lane.b32.xlu0 %v1471, 32
    %v1475 = vpop.permute.xlu0 %1474
    %v1476 = vsel %vm955, %v1475, 0
    %1478 = vmatprep.subr.mxu0 0.0
    %1479 = vmatpush1.msra.mxu0 0.0
    %1480 = vmatprep.subr.mxu0 0.0
    %1481 = vmatpush1.msra.mxu0 0.0
    %1482 = vmatprep.subr.mxu0 0.0
    %1483 = vmatpush1.msra.mxu0 0.0
    %1484 = vmatprep.subr.mxu0 0.0
    %1485 = vmatpush1.msra.mxu0 0.0
    %1486 = vmatprep.subr.mxu0 0.0
    %1487 = vmatpush1.msra.mxu0 0.0
    %1488 = vmatprep.subr.mxu0 0.0
    %1489 = vmatpush1.msra.mxu0 0.0
    %1490 = vmatprep.subr.mxu0 0.0
    %1491 = vmatpush1.msra.mxu0 0.0
    %1492 = vmatprep.subr.mxu0 0.0
    %1493 = vmatpush1.msra.mxu0 0.0
    %1494 = vmatprep.subr.mxu0 0.0
    %1495 = vmatpush1.msra.mxu0 0.0
    %1496 = vmatprep.subr.mxu0 0.0
    %1497 = vmatpush1.msra.mxu0 0.0
    %1498 = vmatprep.subr.mxu0 0.0
    %1499 = vmatpush1.msra.mxu0 0.0
    %1500 = vmatprep.subr.mxu0 0.0
    %1501 = vmatpush1.msra.mxu0 0.0
    %1502 = vmatprep.subr.mxu0 0.0
    %v1503 = vand.u32 %v931, 4294901760
    %1504 = vmatpush1.msra.mxu0 %v1503
    %1505 = vmatprep.subr.mxu0 0.0
    %v1506 = vand.u32 %v930, 4294901760
    %1507 = vmatpush1.msra.mxu0 %v1506
    %1508 = vmatprep.subr.mxu0 0.0
    %v1509 = vand.u32 %v929, 4294901760
    %1510 = vmatpush1.msra.mxu0 %v1509
    %1511 = vmatprep.subr.mxu0 0.0
    %v1512 = vand.u32 %v928, 4294901760
    %1513 = vmatpush1.msra.mxu0 %v1512
    %1514 = vmatprep.subr.mxu0 0.0
    %1515 = vmatpush2.msra.mxu0 0.0
    %1516 = vmatprep.subr.mxu0 0.0
    %1517 = vmatpush2.msra.mxu0 0.0
    %1518 = vmatprep.subr.mxu0 0.0
    %1519 = vmatpush2.msra.mxu0 0.0
    %1520 = vmatprep.subr.mxu0 0.0
    %1521 = vmatpush2.msra.mxu0 0.0
    %1522 = vmatprep.subr.mxu0 0.0
    %1523 = vmatpush2.msra.mxu0 0.0
    %1524 = vmatprep.subr.mxu0 0.0
    %1525 = vmatpush2.msra.mxu0 0.0
    %1526 = vmatprep.subr.mxu0 0.0
    %1527 = vmatpush2.msra.mxu0 0.0
    %1528 = vmatprep.subr.mxu0 0.0
    %1529 = vmatpush2.msra.mxu0 0.0
    %1530 = vmatprep.subr.mxu0 0.0
    %1531 = vmatpush2.msra.mxu0 0.0
    %1532 = vmatprep.subr.mxu0 0.0
    %1533 = vmatpush2.msra.mxu0 0.0
    %1534 = vmatprep.subr.mxu0 0.0
    %1535 = vmatpush2.msra.mxu0 0.0
    %1536 = vmatprep.subr.mxu0 0.0
    %1537 = vmatpush2.msra.mxu0 0.0
    %1538 = vmatprep.subr.mxu0 0.0
    %1539 = vmatpush2.msra.mxu0 0.0
    %1540 = vmatprep.subr.mxu0 0.0
    %1541 = vmatpush2.msra.mxu0 0.0
    %1542 = vmatprep.subr.mxu0 0.0
    %1543 = vmatpush2.msra.mxu0 0.0
    %1544 = vmatprep.subr.mxu0 0.0
    %1545 = vmatpush2.msra.mxu0 0.0
    %1546 = vmatprep.mubr.f32.mxu0 0.0
    %v1547 = vand.u32 %v1476, 4294901760
    %v1548 = vsub.f32 %v1476, %v1547
    %v1549 = vand.u32 %v1548, 4294901760
    %v1550 = vsub.f32 %v1548, %v1549
    %v1551 = vand.u32 %v1550, 4294901760
    %1552 = vmatmul.mubr.f32.gmra.mxu0 %v1551
    %v1553 = vpop.f32.mrf.mxu0
    %v1554 = vadd.f32 0.0, %v1553
    %v1555 = vpop.f32.mrf.mxu0
    %1556 = vdwg.mxu0
    %1557 = vmatprep.subr.mxu0 0.0
    %1558 = vmatpush1.msra.mxu0 0.0
    %1559 = vmatprep.subr.mxu0 0.0
    %1560 = vmatpush1.msra.mxu0 0.0
    %1561 = vmatprep.subr.mxu0 0.0
    %1562 = vmatpush1.msra.mxu0 0.0
    %1563 = vmatprep.subr.mxu0 0.0
    %1564 = vmatpush1.msra.mxu0 0.0
    %1565 = vmatprep.subr.mxu0 0.0
    %1566 = vmatpush1.msra.mxu0 0.0
    %1567 = vmatprep.subr.mxu0 0.0
    %1568 = vmatpush1.msra.mxu0 0.0
    %1569 = vmatprep.subr.mxu0 0.0
    %1570 = vmatpush1.msra.mxu0 0.0
    %1571 = vmatprep.subr.mxu0 0.0
    %1572 = vmatpush1.msra.mxu0 0.0
    %1573 = vmatprep.subr.mxu0 0.0
    %1574 = vmatpush1.msra.mxu0 0.0
    %1575 = vmatprep.subr.mxu0 0.0
    %1576 = vmatpush1.msra.mxu0 0.0
    %1577 = vmatprep.subr.mxu0 0.0
    %1578 = vmatpush1.msra.mxu0 0.0
    %1579 = vmatprep.subr.mxu0 0.0
    %1580 = vmatpush1.msra.mxu0 0.0
    %1581 = vmatprep.subr.mxu0 0.0
    %v1582 = vand.u32 %v931, 4294901760
    %v1583 = vsub.f32 %v931, %v1582
    %v1584 = vand.u32 %v1583, 4294901760
    %v1585 = vsub.f32 %v1583, %v1584
    %v1586 = vand.u32 %v1585, 4294901760
    %1587 = vmatpush1.msra.mxu0 %v1586
    %1588 = vmatprep.subr.mxu0 0.0
    %v1589 = vand.u32 %v930, 4294901760
    %v1590 = vsub.f32 %v930, %v1589
    %v1591 = vand.u32 %v1590, 4294901760
    %v1592 = vsub.f32 %v1590, %v1591
    %v1593 = vand.u32 %v1592, 4294901760
    %1594 = vmatpush1.msra.mxu0 %v1593
    %1595 = vmatprep.subr.mxu0 0.0
    %v1596 = vand.u32 %v929, 4294901760
    %v1597 = vsub.f32 %v929, %v1596
    %v1598 = vand.u32 %v1597, 4294901760
    %v1599 = vsub.f32 %v1597, %v1598
    %v1600 = vand.u32 %v1599, 4294901760
    %1601 = vmatpush1.msra.mxu0 %v1600
    %1602 = vmatprep.subr.mxu0 0.0
    %v1603 = vand.u32 %v928, 4294901760
    %v1604 = vsub.f32 %v928, %v1603
    %v1605 = vand.u32 %v1604, 4294901760
    %v1606 = vsub.f32 %v1604, %v1605
    %v1607 = vand.u32 %v1606, 4294901760
    %1608 = vmatpush1.msra.mxu0 %v1607
    %1609 = vmatprep.subr.mxu0 0.0
    %1610 = vmatpush2.msra.mxu0 0.0
    %1611 = vmatprep.subr.mxu0 0.0
    %1612 = vmatpush2.msra.mxu0 0.0
    %1613 = vmatprep.subr.mxu0 0.0
    %1614 = vmatpush2.msra.mxu0 0.0
    %1615 = vmatprep.subr.mxu0 0.0
    %1616 = vmatpush2.msra.mxu0 0.0
    %1617 = vmatprep.subr.mxu0 0.0
    %1618 = vmatpush2.msra.mxu0 0.0
    %1619 = vmatprep.subr.mxu0 0.0
    %1620 = vmatpush2.msra.mxu0 0.0
    %1621 = vmatprep.subr.mxu0 0.0
    %1622 = vmatpush2.msra.mxu0 0.0
    %1623 = vmatprep.subr.mxu0 0.0
    %1624 = vmatpush2.msra.mxu0 0.0
    %1625 = vmatprep.subr.mxu0 0.0
    %1626 = vmatpush2.msra.mxu0 0.0
    %1627 = vmatprep.subr.mxu0 0.0
    %1628 = vmatpush2.msra.mxu0 0.0
    %1629 = vmatprep.subr.mxu0 0.0
    %1630 = vmatpush2.msra.mxu0 0.0
    %1631 = vmatprep.subr.mxu0 0.0
    %1632 = vmatpush2.msra.mxu0 0.0
    %1633 = vmatprep.subr.mxu0 0.0
    %1634 = vmatpush2.msra.mxu0 0.0
    %1635 = vmatprep.subr.mxu0 0.0
    %1636 = vmatpush2.msra.mxu0 0.0
    %1637 = vmatprep.subr.mxu0 0.0
    %1638 = vmatpush2.msra.mxu0 0.0
    %1639 = vmatprep.subr.mxu0 0.0
    %1640 = vmatpush2.msra.mxu0 0.0
    %1641 = vmatprep.mubr.f32.mxu0 0.0
    %v1642 = vand.u32 %v1476, 4294901760
    %1643 = vmatmul.mubr.f32.gmra.mxu0 %v1642
    %v1644 = vpop.f32.mrf.mxu0
    %v1645 = vadd.f32 %v1554, %v1644
    %v1646 = vpop.f32.mrf.mxu0
    %1647 = vdwg.mxu0
    %1648 = vmatprep.subr.mxu0 0.0
    %1649 = vmatpush1.msra.mxu0 0.0
    %1650 = vmatprep.subr.mxu0 0.0
    %1651 = vmatpush1.msra.mxu0 0.0
    %1652 = vmatprep.subr.mxu0 0.0
    %1653 = vmatpush1.msra.mxu0 0.0
    %1654 = vmatprep.subr.mxu0 0.0
    %1655 = vmatpush1.msra.mxu0 0.0
    %1656 = vmatprep.subr.mxu0 0.0
    %1657 = vmatpush1.msra.mxu0 0.0
    %1658 = vmatprep.subr.mxu0 0.0
    %1659 = vmatpush1.msra.mxu0 0.0
    %1660 = vmatprep.subr.mxu0 0.0
    %1661 = vmatpush1.msra.mxu0 0.0
    %1662 = vmatprep.subr.mxu0 0.0
    %1663 = vmatpush1.msra.mxu0 0.0
    %1664 = vmatprep.subr.mxu0 0.0
    %1665 = vmatpush1.msra.mxu0 0.0
    %1666 = vmatprep.subr.mxu0 0.0
    %1667 = vmatpush1.msra.mxu0 0.0
    %1668 = vmatprep.subr.mxu0 0.0
    %1669 = vmatpush1.msra.mxu0 0.0
    %1670 = vmatprep.subr.mxu0 0.0
    %1671 = vmatpush1.msra.mxu0 0.0
    %1672 = vmatprep.subr.mxu0 0.0
    %v1673 = vand.u32 %v931, 4294901760
    %v1674 = vsub.f32 %v931, %v1673
    %1675 = vmatpush1.msra.mxu0 %v1674
    %1676 = vmatprep.subr.mxu0 0.0
    %v1677 = vand.u32 %v930, 4294901760
    %v1678 = vsub.f32 %v930, %v1677
    %1679 = vmatpush1.msra.mxu0 %v1678
    %1680 = vmatprep.subr.mxu0 0.0
    %v1681 = vand.u32 %v929, 4294901760
    %v1682 = vsub.f32 %v929, %v1681
    %1683 = vmatpush1.msra.mxu0 %v1682
    %1684 = vmatprep.subr.mxu0 0.0
    %v1685 = vand.u32 %v928, 4294901760
    %v1686 = vsub.f32 %v928, %v1685
    %1687 = vmatpush1.msra.mxu0 %v1686
    %1688 = vmatprep.subr.mxu0 0.0
    %1689 = vmatpush2.msra.mxu0 0.0
    %1690 = vmatprep.subr.mxu0 0.0
    %1691 = vmatpush2.msra.mxu0 0.0
    %1692 = vmatprep.subr.mxu0 0.0
    %1693 = vmatpush2.msra.mxu0 0.0
    %1694 = vmatprep.subr.mxu0 0.0
    %1695 = vmatpush2.msra.mxu0 0.0
    %1696 = vmatprep.subr.mxu0 0.0
    %1697 = vmatpush2.msra.mxu0 0.0
    %1698 = vmatprep.subr.mxu0 0.0
    %1699 = vmatpush2.msra.mxu0 0.0
    %1700 = vmatprep.subr.mxu0 0.0
    %1701 = vmatpush2.msra.mxu0 0.0
    %1702 = vmatprep.subr.mxu0 0.0
    %1703 = vmatpush2.msra.mxu0 0.0
    %1704 = vmatprep.subr.mxu0 0.0
    %1705 = vmatpush2.msra.mxu0 0.0
    %1706 = vmatprep.subr.mxu0 0.0
    %1707 = vmatpush2.msra.mxu0 0.0
    %1708 = vmatprep.subr.mxu0 0.0
    %1709 = vmatpush2.msra.mxu0 0.0
    %1710 = vmatprep.subr.mxu0 0.0
    %1711 = vmatpush2.msra.mxu0 0.0
    %1712 = vmatprep.subr.mxu0 0.0
    %1713 = vmatpush2.msra.mxu0 0.0
    %1714 = vmatprep.subr.mxu0 0.0
    %1715 = vmatpush2.msra.mxu0 0.0
    %1716 = vmatprep.subr.mxu0 0.0
    %1717 = vmatpush2.msra.mxu0 0.0
    %1718 = vmatprep.subr.mxu0 0.0
    %1719 = vmatpush2.msra.mxu0 0.0
    %1720 = vmatprep.mubr.f32.mxu0 0.0
    %v1721 = vand.u32 %v1476, 4294901760
    %v1722 = vsub.f32 %v1476, %v1721
    %1723 = vmatmul.mubr.f32.gmra.mxu0 %v1722
    %v1724 = vpop.f32.mrf.mxu0
    %v1725 = vadd.f32 %v1645, %v1724
    %v1726 = vpop.f32.mrf.mxu0
    %1727 = vdwg.mxu0
    %1728 = vmatprep.subr.mxu0 0.0
    %1729 = vmatpush1.msra.mxu0 0.0
    %1730 = vmatprep.subr.mxu0 0.0
    %1731 = vmatpush1.msra.mxu0 0.0
    %1732 = vmatprep.subr.mxu0 0.0
    %1733 = vmatpush1.msra.mxu0 0.0
    %1734 = vmatprep.subr.mxu0 0.0
    %1735 = vmatpush1.msra.mxu0 0.0
    %1736 = vmatprep.subr.mxu0 0.0
    %1737 = vmatpush1.msra.mxu0 0.0
    %1738 = vmatprep.subr.mxu0 0.0
    %1739 = vmatpush1.msra.mxu0 0.0
    %1740 = vmatprep.subr.mxu0 0.0
    %1741 = vmatpush1.msra.mxu0 0.0
    %1742 = vmatprep.subr.mxu0 0.0
    %1743 = vmatpush1.msra.mxu0 0.0
    %1744 = vmatprep.subr.mxu0 0.0
    %1745 = vmatpush1.msra.mxu0 0.0
    %1746 = vmatprep.subr.mxu0 0.0
    %1747 = vmatpush1.msra.mxu0 0.0
    %1748 = vmatprep.subr.mxu0 0.0
    %1749 = vmatpush1.msra.mxu0 0.0
    %1750 = vmatprep.subr.mxu0 0.0
    %1751 = vmatpush1.msra.mxu0 0.0
    %1752 = vmatprep.subr.mxu0 0.0
    %v1753 = vand.u32 %v931, 4294901760
    %1754 = vmatpush1.msra.mxu0 %v1753
    %1755 = vmatprep.subr.mxu0 0.0
    %v1756 = vand.u32 %v930, 4294901760
    %1757 = vmatpush1.msra.mxu0 %v1756
    %1758 = vmatprep.subr.mxu0 0.0
    %v1759 = vand.u32 %v929, 4294901760
    %1760 = vmatpush1.msra.mxu0 %v1759
    %1761 = vmatprep.subr.mxu0 0.0
    %v1762 = vand.u32 %v928, 4294901760
    %1763 = vmatpush1.msra.mxu0 %v1762
    %1764 = vmatprep.subr.mxu0 0.0
    %1765 = vmatpush2.msra.mxu0 0.0
    %1766 = vmatprep.subr.mxu0 0.0
    %1767 = vmatpush2.msra.mxu0 0.0
    %1768 = vmatprep.subr.mxu0 0.0
    %1769 = vmatpush2.msra.mxu0 0.0
    %1770 = vmatprep.subr.mxu0 0.0
    %1771 = vmatpush2.msra.mxu0 0.0
    %1772 = vmatprep.subr.mxu0 0.0
    %1773 = vmatpush2.msra.mxu0 0.0
    %1774 = vmatprep.subr.mxu0 0.0
    %1775 = vmatpush2.msra.mxu0 0.0
    %1776 = vmatprep.subr.mxu0 0.0
    %1777 = vmatpush2.msra.mxu0 0.0
    %1778 = vmatprep.subr.mxu0 0.0
    %1779 = vmatpush2.msra.mxu0 0.0
    %1780 = vmatprep.subr.mxu0 0.0
    %1781 = vmatpush2.msra.mxu0 0.0
    %1782 = vmatprep.subr.mxu0 0.0
    %1783 = vmatpush2.msra.mxu0 0.0
    %1784 = vmatprep.subr.mxu0 0.0
    %1785 = vmatpush2.msra.mxu0 0.0
    %1786 = vmatprep.subr.mxu0 0.0
    %1787 = vmatpush2.msra.mxu0 0.0
    %1788 = vmatprep.subr.mxu0 0.0
    %1789 = vmatpush2.msra.mxu0 0.0
    %1790 = vmatprep.subr.mxu0 0.0
    %1791 = vmatpush2.msra.mxu0 0.0
    %1792 = vmatprep.subr.mxu0 0.0
    %1793 = vmatpush2.msra.mxu0 0.0
    %1794 = vmatprep.subr.mxu0 0.0
    %1795 = vmatpush2.msra.mxu0 0.0
    %1796 = vmatprep.mubr.f32.mxu0 0.0
    %v1797 = vand.u32 %v1476, 4294901760
    %v1798 = vsub.f32 %v1476, %v1797
    %v1799 = vand.u32 %v1798, 4294901760
    %1800 = vmatmul.mubr.f32.gmra.mxu0 %v1799
    %v1801 = vpop.f32.mrf.mxu0
    %v1802 = vadd.f32 %v1725, %v1801
    %v1803 = vpop.f32.mrf.mxu0
    %1804 = vdwg.mxu0
    %1805 = vmatprep.subr.mxu0 0.0
    %1806 = vmatpush1.msra.mxu0 0.0
    %1807 = vmatprep.subr.mxu0 0.0
    %1808 = vmatpush1.msra.mxu0 0.0
    %1809 = vmatprep.subr.mxu0 0.0
    %1810 = vmatpush1.msra.mxu0 0.0
    %1811 = vmatprep.subr.mxu0 0.0
    %1812 = vmatpush1.msra.mxu0 0.0
    %1813 = vmatprep.subr.mxu0 0.0
    %1814 = vmatpush1.msra.mxu0 0.0
    %1815 = vmatprep.subr.mxu0 0.0
    %1816 = vmatpush1.msra.mxu0 0.0
    %1817 = vmatprep.subr.mxu0 0.0
    %1818 = vmatpush1.msra.mxu0 0.0
    %1819 = vmatprep.subr.mxu0 0.0
    %1820 = vmatpush1.msra.mxu0 0.0
    %1821 = vmatprep.subr.mxu0 0.0
    %1822 = vmatpush1.msra.mxu0 0.0
    %1823 = vmatprep.subr.mxu0 0.0
    %1824 = vmatpush1.msra.mxu0 0.0
    %1825 = vmatprep.subr.mxu0 0.0
    %1826 = vmatpush1.msra.mxu0 0.0
    %1827 = vmatprep.subr.mxu0 0.0
    %1828 = vmatpush1.msra.mxu0 0.0
    %1829 = vmatprep.subr.mxu0 0.0
    %v1830 = vand.u32 %v931, 4294901760
    %v1831 = vsub.f32 %v931, %v1830
    %v1832 = vand.u32 %v1831, 4294901760
    %1833 = vmatpush1.msra.mxu0 %v1832
    %1834 = vmatprep.subr.mxu0 0.0
    %v1835 = vand.u32 %v930, 4294901760
    %v1836 = vsub.f32 %v930, %v1835
    %v1837 = vand.u32 %v1836, 4294901760
    %1838 = vmatpush1.msra.mxu0 %v1837
    %1839 = vmatprep.subr.mxu0 0.0
    %v1840 = vand.u32 %v929, 4294901760
    %v1841 = vsub.f32 %v929, %v1840
    %v1842 = vand.u32 %v1841, 4294901760
    %1843 = vmatpush1.msra.mxu0 %v1842
    %1844 = vmatprep.subr.mxu0 0.0
    %v1845 = vand.u32 %v928, 4294901760
    %v1846 = vsub.f32 %v928, %v1845
    %v1847 = vand.u32 %v1846, 4294901760
    %1848 = vmatpush1.msra.mxu0 %v1847
    %1849 = vmatprep.subr.mxu0 0.0
    %1850 = vmatpush2.msra.mxu0 0.0
    %1851 = vmatprep.subr.mxu0 0.0
    %1852 = vmatpush2.msra.mxu0 0.0
    %1853 = vmatprep.subr.mxu0 0.0
    %1854 = vmatpush2.msra.mxu0 0.0
    %1855 = vmatprep.subr.mxu0 0.0
    %1856 = vmatpush2.msra.mxu0 0.0
    %1857 = vmatprep.subr.mxu0 0.0
    %1858 = vmatpush2.msra.mxu0 0.0
    %1859 = vmatprep.subr.mxu0 0.0
    %1860 = vmatpush2.msra.mxu0 0.0
    %1861 = vmatprep.subr.mxu0 0.0
    %1862 = vmatpush2.msra.mxu0 0.0
    %1863 = vmatprep.subr.mxu0 0.0
    %1864 = vmatpush2.msra.mxu0 0.0
    %1865 = vmatprep.subr.mxu0 0.0
    %1866 = vmatpush2.msra.mxu0 0.0
    %1867 = vmatprep.subr.mxu0 0.0
    %1868 = vmatpush2.msra.mxu0 0.0
    %1869 = vmatprep.subr.mxu0 0.0
    %1870 = vmatpush2.msra.mxu0 0.0
    %1871 = vmatprep.subr.mxu0 0.0
    %1872 = vmatpush2.msra.mxu0 0.0
    %1873 = vmatprep.subr.mxu0 0.0
    %1874 = vmatpush2.msra.mxu0 0.0
    %1875 = vmatprep.subr.mxu0 0.0
    %1876 = vmatpush2.msra.mxu0 0.0
    %1877 = vmatprep.subr.mxu0 0.0
    %1878 = vmatpush2.msra.mxu0 0.0
    %1879 = vmatprep.subr.mxu0 0.0
    %1880 = vmatpush2.msra.mxu0 0.0
    %1881 = vmatprep.mubr.f32.mxu0 0.0
    %v1882 = vand.u32 %v1476, 4294901760
    %1883 = vmatmul.mubr.f32.gmra.mxu0 %v1882
    %v1884 = vpop.f32.mrf.mxu0
    %v1885 = vadd.f32 %v1802, %v1884
    %v1886 = vpop.f32.mrf.mxu0
    %1887 = vdwg.mxu0
    %1888 = vmatprep.subr.mxu0 0.0
    %1889 = vmatpush1.msra.mxu0 0.0
    %1890 = vmatprep.subr.mxu0 0.0
    %1891 = vmatpush1.msra.mxu0 0.0
    %1892 = vmatprep.subr.mxu0 0.0
    %1893 = vmatpush1.msra.mxu0 0.0
    %1894 = vmatprep.subr.mxu0 0.0
    %1895 = vmatpush1.msra.mxu0 0.0
    %1896 = vmatprep.subr.mxu0 0.0
    %1897 = vmatpush1.msra.mxu0 0.0
    %1898 = vmatprep.subr.mxu0 0.0
    %1899 = vmatpush1.msra.mxu0 0.0
    %1900 = vmatprep.subr.mxu0 0.0
    %1901 = vmatpush1.msra.mxu0 0.0
    %1902 = vmatprep.subr.mxu0 0.0
    %1903 = vmatpush1.msra.mxu0 0.0
    %1904 = vmatprep.subr.mxu0 0.0
    %1905 = vmatpush1.msra.mxu0 0.0
    %1906 = vmatprep.subr.mxu0 0.0
    %1907 = vmatpush1.msra.mxu0 0.0
    %1908 = vmatprep.subr.mxu0 0.0
    %1909 = vmatpush1.msra.mxu0 0.0
    %1910 = vmatprep.subr.mxu0 0.0
    %1911 = vmatpush1.msra.mxu0 0.0
    %1912 = vmatprep.subr.mxu0 0.0
    %v1913 = vand.u32 %v931, 4294901760
    %1914 = vmatpush1.msra.mxu0 %v1913
    %1915 = vmatprep.subr.mxu0 0.0
    %v1916 = vand.u32 %v930, 4294901760
    %1917 = vmatpush1.msra.mxu0 %v1916
    %1918 = vmatprep.subr.mxu0 0.0
    %v1919 = vand.u32 %v929, 4294901760
    %1920 = vmatpush1.msra.mxu0 %v1919
    %1921 = vmatprep.subr.mxu0 0.0
    %v1922 = vand.u32 %v928, 4294901760
    %1923 = vmatpush1.msra.mxu0 %v1922
    %1924 = vmatprep.subr.mxu0 0.0
    %1925 = vmatpush2.msra.mxu0 0.0
    %1926 = vmatprep.subr.mxu0 0.0
    %1927 = vmatpush2.msra.mxu0 0.0
    %1928 = vmatprep.subr.mxu0 0.0
    %1929 = vmatpush2.msra.mxu0 0.0
    %1930 = vmatprep.subr.mxu0 0.0
    %1931 = vmatpush2.msra.mxu0 0.0
    %1932 = vmatprep.subr.mxu0 0.0
    %1933 = vmatpush2.msra.mxu0 0.0
    %1934 = vmatprep.subr.mxu0 0.0
    %1935 = vmatpush2.msra.mxu0 0.0
    %1936 = vmatprep.subr.mxu0 0.0
    %1937 = vmatpush2.msra.mxu0 0.0
    %1938 = vmatprep.subr.mxu0 0.0
    %1939 = vmatpush2.msra.mxu0 0.0
    %1940 = vmatprep.subr.mxu0 0.0
    %1941 = vmatpush2.msra.mxu0 0.0
    %1942 = vmatprep.subr.mxu0 0.0
    %1943 = vmatpush2.msra.mxu0 0.0
    %1944 = vmatprep.subr.mxu0 0.0
    %1945 = vmatpush2.msra.mxu0 0.0
    %1946 = vmatprep.subr.mxu0 0.0
    %1947 = vmatpush2.msra.mxu0 0.0
    %1948 = vmatprep.subr.mxu0 0.0
    %1949 = vmatpush2.msra.mxu0 0.0
    %1950 = vmatprep.subr.mxu0 0.0
    %1951 = vmatpush2.msra.mxu0 0.0
    %1952 = vmatprep.subr.mxu0 0.0
    %1953 = vmatpush2.msra.mxu0 0.0
    %1954 = vmatprep.subr.mxu0 0.0
    %1955 = vmatpush2.msra.mxu0 0.0
    %1956 = vmatprep.mubr.f32.mxu0 0.0
    %v1957 = vand.u32 %v1476, 4294901760
    %1958 = vmatmul.mubr.f32.gmra.mxu0 %v1957
    %v1959 = vpop.f32.mrf.mxu0
    %v1960 = vadd.f32 %v1885, %v1959
    %v1961 = vpop.f32.mrf.mxu0
    %1962 = vdwg.mxu0
    %v1963 = vadd.f32 %v1472, %v1960
    %v1964 = vxor.u32 %v1963, 2147483648
    %v1965 = vmul.f32 %v1964, 1.442695
    %v1966 = vpow.pop %v1965
    %v1967 = vadd.f32 %v1966, 1.0
    %v1968 = vrcp.pop %v1967
    %v1969 = vmul.f32 1.0, %v1968
    %v1970 = vtanh.pop %v1963
    %v1971 = vmul.f32 %v1969, %v1465
    %1973 = vrot.lane.b32.xlu0 %v1970, 64
    %v1974 = vpop.permute.xlu0 %1973
    %v1976 = vmul.f32 %v1969, %v1974
    %1978 = vrot.lane.b32.xlu0 %v1976, 32
    %v1979 = vpop.permute.xlu0 %1978
    %v1981 = vadd.f32 %v1971, %v1979
    %v1982 = vtanh.pop %v1981
    %1984 = vrot.lane.b32.xlu0 %v1982, 64
    %v1985 = vpop.permute.xlu0 %1984
    %v1987 = vmul.f32 %v1969, %v1985
    %v1988 = vld [vmem:[#allocation2 + $0x30] sm:$0xff]
    %1990 = vrot.lane.b32.xlu0 %v1987, 32
    %v1991 = vpop.permute.xlu0 %1990
    %v1992 = vsel %vm955, %v1991, 0
    %1994 = vmatprep.subr.mxu0 0.0
    %1995 = vmatpush1.msra.mxu0 0.0
    %1996 = vmatprep.subr.mxu0 0.0
    %1997 = vmatpush1.msra.mxu0 0.0
    %1998 = vmatprep.subr.mxu0 0.0
    %1999 = vmatpush1.msra.mxu0 0.0
    %2000 = vmatprep.subr.mxu0 0.0
    %2001 = vmatpush1.msra.mxu0 0.0
    %2002 = vmatprep.subr.mxu0 0.0
    %2003 = vmatpush1.msra.mxu0 0.0
    %2004 = vmatprep.subr.mxu0 0.0
    %2005 = vmatpush1.msra.mxu0 0.0
    %2006 = vmatprep.subr.mxu0 0.0
    %2007 = vmatpush1.msra.mxu0 0.0
    %2008 = vmatprep.subr.mxu0 0.0
    %2009 = vmatpush1.msra.mxu0 0.0
    %2010 = vmatprep.subr.mxu0 0.0
    %2011 = vmatpush1.msra.mxu0 0.0
    %2012 = vmatprep.subr.mxu0 0.0
    %2013 = vmatpush1.msra.mxu0 0.0
    %2014 = vmatprep.subr.mxu0 0.0
    %2015 = vmatpush1.msra.mxu0 0.0
    %2016 = vmatprep.subr.mxu0 0.0
    %2017 = vmatpush1.msra.mxu0 0.0
    %2018 = vmatprep.subr.mxu0 0.0
    %v2019 = vand.u32 %v931, 4294901760
    %2020 = vmatpush1.msra.mxu0 %v2019
    %2021 = vmatprep.subr.mxu0 0.0
    %v2022 = vand.u32 %v930, 4294901760
    %2023 = vmatpush1.msra.mxu0 %v2022
    %2024 = vmatprep.subr.mxu0 0.0
    %v2025 = vand.u32 %v929, 4294901760
    %2026 = vmatpush1.msra.mxu0 %v2025
    %2027 = vmatprep.subr.mxu0 0.0
    %v2028 = vand.u32 %v928, 4294901760
    %2029 = vmatpush1.msra.mxu0 %v2028
    %2030 = vmatprep.subr.mxu0 0.0
    %2031 = vmatpush2.msra.mxu0 0.0
    %2032 = vmatprep.subr.mxu0 0.0
    %2033 = vmatpush2.msra.mxu0 0.0
    %2034 = vmatprep.subr.mxu0 0.0
    %2035 = vmatpush2.msra.mxu0 0.0
    %2036 = vmatprep.subr.mxu0 0.0
    %2037 = vmatpush2.msra.mxu0 0.0
    %2038 = vmatprep.subr.mxu0 0.0
    %2039 = vmatpush2.msra.mxu0 0.0
    %2040 = vmatprep.subr.mxu0 0.0
    %2041 = vmatpush2.msra.mxu0 0.0
    %2042 = vmatprep.subr.mxu0 0.0
    %2043 = vmatpush2.msra.mxu0 0.0
    %2044 = vmatprep.subr.mxu0 0.0
    %2045 = vmatpush2.msra.mxu0 0.0
    %2046 = vmatprep.subr.mxu0 0.0
    %2047 = vmatpush2.msra.mxu0 0.0
    %2048 = vmatprep.subr.mxu0 0.0
    %2049 = vmatpush2.msra.mxu0 0.0
    %2050 = vmatprep.subr.mxu0 0.0
    %2051 = vmatpush2.msra.mxu0 0.0
    %2052 = vmatprep.subr.mxu0 0.0
    %2053 = vmatpush2.msra.mxu0 0.0
    %2054 = vmatprep.subr.mxu0 0.0
    %2055 = vmatpush2.msra.mxu0 0.0
    %2056 = vmatprep.subr.mxu0 0.0
    %2057 = vmatpush2.msra.mxu0 0.0
    %2058 = vmatprep.subr.mxu0 0.0
    %2059 = vmatpush2.msra.mxu0 0.0
    %2060 = vmatprep.subr.mxu0 0.0
    %2061 = vmatpush2.msra.mxu0 0.0
    %2062 = vmatprep.mubr.f32.mxu0 0.0
    %v2063 = vand.u32 %v1992, 4294901760
    %v2064 = vsub.f32 %v1992, %v2063
    %v2065 = vand.u32 %v2064, 4294901760
    %v2066 = vsub.f32 %v2064, %v2065
    %v2067 = vand.u32 %v2066, 4294901760
    %2068 = vmatmul.mubr.f32.gmra.mxu0 %v2067
    %v2069 = vpop.f32.mrf.mxu0
    %v2070 = vadd.f32 0.0, %v2069
    %v2071 = vpop.f32.mrf.mxu0
    %2072 = vdwg.mxu0
    %2073 = vmatprep.subr.mxu0 0.0
    %2074 = vmatpush1.msra.mxu0 0.0
    %2075 = vmatprep.subr.mxu0 0.0
    %2076 = vmatpush1.msra.mxu0 0.0
    %2077 = vmatprep.subr.mxu0 0.0
    %2078 = vmatpush1.msra.mxu0 0.0
    %2079 = vmatprep.subr.mxu0 0.0
    %2080 = vmatpush1.msra.mxu0 0.0
    %2081 = vmatprep.subr.mxu0 0.0
    %2082 = vmatpush1.msra.mxu0 0.0
    %2083 = vmatprep.subr.mxu0 0.0
    %2084 = vmatpush1.msra.mxu0 0.0
    %2085 = vmatprep.subr.mxu0 0.0
    %2086 = vmatpush1.msra.mxu0 0.0
    %2087 = vmatprep.subr.mxu0 0.0
    %2088 = vmatpush1.msra.mxu0 0.0
    %2089 = vmatprep.subr.mxu0 0.0
    %2090 = vmatpush1.msra.mxu0 0.0
    %2091 = vmatprep.subr.mxu0 0.0
    %2092 = vmatpush1.msra.mxu0 0.0
    %2093 = vmatprep.subr.mxu0 0.0
    %2094 = vmatpush1.msra.mxu0 0.0
    %2095 = vmatprep.subr.mxu0 0.0
    %2096 = vmatpush1.msra.mxu0 0.0
    %2097 = vmatprep.subr.mxu0 0.0
    %v2098 = vand.u32 %v931, 4294901760
    %v2099 = vsub.f32 %v931, %v2098
    %v2100 = vand.u32 %v2099, 4294901760
    %v2101 = vsub.f32 %v2099, %v2100
    %v2102 = vand.u32 %v2101, 4294901760
    %2103 = vmatpush1.msra.mxu0 %v2102
    %2104 = vmatprep.subr.mxu0 0.0
    %v2105 = vand.u32 %v930, 4294901760
    %v2106 = vsub.f32 %v930, %v2105
    %v2107 = vand.u32 %v2106, 4294901760
    %v2108 = vsub.f32 %v2106, %v2107
    %v2109 = vand.u32 %v2108, 4294901760
    %2110 = vmatpush1.msra.mxu0 %v2109
    %2111 = vmatprep.subr.mxu0 0.0
    %v2112 = vand.u32 %v929, 4294901760
    %v2113 = vsub.f32 %v929, %v2112
    %v2114 = vand.u32 %v2113, 4294901760
    %v2115 = vsub.f32 %v2113, %v2114
    %v2116 = vand.u32 %v2115, 4294901760
    %2117 = vmatpush1.msra.mxu0 %v2116
    %2118 = vmatprep.subr.mxu0 0.0
    %v2119 = vand.u32 %v928, 4294901760
    %v2120 = vsub.f32 %v928, %v2119
    %v2121 = vand.u32 %v2120, 4294901760
    %v2122 = vsub.f32 %v2120, %v2121
    %v2123 = vand.u32 %v2122, 4294901760
    %2124 = vmatpush1.msra.mxu0 %v2123
    %2125 = vmatprep.subr.mxu0 0.0
    %2126 = vmatpush2.msra.mxu0 0.0
    %2127 = vmatprep.subr.mxu0 0.0
    %2128 = vmatpush2.msra.mxu0 0.0
    %2129 = vmatprep.subr.mxu0 0.0
    %2130 = vmatpush2.msra.mxu0 0.0
    %2131 = vmatprep.subr.mxu0 0.0
    %2132 = vmatpush2.msra.mxu0 0.0
    %2133 = vmatprep.subr.mxu0 0.0
    %2134 = vmatpush2.msra.mxu0 0.0
    %2135 = vmatprep.subr.mxu0 0.0
    %2136 = vmatpush2.msra.mxu0 0.0
    %2137 = vmatprep.subr.mxu0 0.0
    %2138 = vmatpush2.msra.mxu0 0.0
    %2139 = vmatprep.subr.mxu0 0.0
    %2140 = vmatpush2.msra.mxu0 0.0
    %2141 = vmatprep.subr.mxu0 0.0
    %2142 = vmatpush2.msra.mxu0 0.0
    %2143 = vmatprep.subr.mxu0 0.0
    %2144 = vmatpush2.msra.mxu0 0.0
    %2145 = vmatprep.subr.mxu0 0.0
    %2146 = vmatpush2.msra.mxu0 0.0
    %2147 = vmatprep.subr.mxu0 0.0
    %2148 = vmatpush2.msra.mxu0 0.0
    %2149 = vmatprep.subr.mxu0 0.0
    %2150 = vmatpush2.msra.mxu0 0.0
    %2151 = vmatprep.subr.mxu0 0.0
    %2152 = vmatpush2.msra.mxu0 0.0
    %2153 = vmatprep.subr.mxu0 0.0
    %2154 = vmatpush2.msra.mxu0 0.0
    %2155 = vmatprep.subr.mxu0 0.0
    %2156 = vmatpush2.msra.mxu0 0.0
    %2157 = vmatprep.mubr.f32.mxu0 0.0
    %v2158 = vand.u32 %v1992, 4294901760
    %2159 = vmatmul.mubr.f32.gmra.mxu0 %v2158
    %v2160 = vpop.f32.mrf.mxu0
    %v2161 = vadd.f32 %v2070, %v2160
    %v2162 = vpop.f32.mrf.mxu0
    %2163 = vdwg.mxu0
    %2164 = vmatprep.subr.mxu0 0.0
    %2165 = vmatpush1.msra.mxu0 0.0
    %2166 = vmatprep.subr.mxu0 0.0
    %2167 = vmatpush1.msra.mxu0 0.0
    %2168 = vmatprep.subr.mxu0 0.0
    %2169 = vmatpush1.msra.mxu0 0.0
    %2170 = vmatprep.subr.mxu0 0.0
    %2171 = vmatpush1.msra.mxu0 0.0
    %2172 = vmatprep.subr.mxu0 0.0
    %2173 = vmatpush1.msra.mxu0 0.0
    %2174 = vmatprep.subr.mxu0 0.0
    %2175 = vmatpush1.msra.mxu0 0.0
    %2176 = vmatprep.subr.mxu0 0.0
    %2177 = vmatpush1.msra.mxu0 0.0
    %2178 = vmatprep.subr.mxu0 0.0
    %2179 = vmatpush1.msra.mxu0 0.0
    %2180 = vmatprep.subr.mxu0 0.0
    %2181 = vmatpush1.msra.mxu0 0.0
    %2182 = vmatprep.subr.mxu0 0.0
    %2183 = vmatpush1.msra.mxu0 0.0
    %2184 = vmatprep.subr.mxu0 0.0
    %2185 = vmatpush1.msra.mxu0 0.0
    %2186 = vmatprep.subr.mxu0 0.0
    %2187 = vmatpush1.msra.mxu0 0.0
    %2188 = vmatprep.subr.mxu0 0.0
    %v2189 = vand.u32 %v931, 4294901760
    %v2190 = vsub.f32 %v931, %v2189
    %2191 = vmatpush1.msra.mxu0 %v2190
    %2192 = vmatprep.subr.mxu0 0.0
    %v2193 = vand.u32 %v930, 4294901760
    %v2194 = vsub.f32 %v930, %v2193
    %2195 = vmatpush1.msra.mxu0 %v2194
    %2196 = vmatprep.subr.mxu0 0.0
    %v2197 = vand.u32 %v929, 4294901760
    %v2198 = vsub.f32 %v929, %v2197
    %2199 = vmatpush1.msra.mxu0 %v2198
    %2200 = vmatprep.subr.mxu0 0.0
    %v2201 = vand.u32 %v928, 4294901760
    %v2202 = vsub.f32 %v928, %v2201
    %2203 = vmatpush1.msra.mxu0 %v2202
    %2204 = vmatprep.subr.mxu0 0.0
    %2205 = vmatpush2.msra.mxu0 0.0
    %2206 = vmatprep.subr.mxu0 0.0
    %2207 = vmatpush2.msra.mxu0 0.0
    %2208 = vmatprep.subr.mxu0 0.0
    %2209 = vmatpush2.msra.mxu0 0.0
    %2210 = vmatprep.subr.mxu0 0.0
    %2211 = vmatpush2.msra.mxu0 0.0
    %2212 = vmatprep.subr.mxu0 0.0
    %2213 = vmatpush2.msra.mxu0 0.0
    %2214 = vmatprep.subr.mxu0 0.0
    %2215 = vmatpush2.msra.mxu0 0.0
    %2216 = vmatprep.subr.mxu0 0.0
    %2217 = vmatpush2.msra.mxu0 0.0
    %2218 = vmatprep.subr.mxu0 0.0
    %2219 = vmatpush2.msra.mxu0 0.0
    %2220 = vmatprep.subr.mxu0 0.0
    %2221 = vmatpush2.msra.mxu0 0.0
    %2222 = vmatprep.subr.mxu0 0.0
    %2223 = vmatpush2.msra.mxu0 0.0
    %2224 = vmatprep.subr.mxu0 0.0
    %2225 = vmatpush2.msra.mxu0 0.0
    %2226 = vmatprep.subr.mxu0 0.0
    %2227 = vmatpush2.msra.mxu0 0.0
    %2228 = vmatprep.subr.mxu0 0.0
    %2229 = vmatpush2.msra.mxu0 0.0
    %2230 = vmatprep.subr.mxu0 0.0
    %2231 = vmatpush2.msra.mxu0 0.0
    %2232 = vmatprep.subr.mxu0 0.0
    %2233 = vmatpush2.msra.mxu0 0.0
    %2234 = vmatprep.subr.mxu0 0.0
    %2235 = vmatpush2.msra.mxu0 0.0
    %2236 = vmatprep.mubr.f32.mxu0 0.0
    %v2237 = vand.u32 %v1992, 4294901760
    %v2238 = vsub.f32 %v1992, %v2237
    %2239 = vmatmul.mubr.f32.gmra.mxu0 %v2238
    %v2240 = vpop.f32.mrf.mxu0
    %v2241 = vadd.f32 %v2161, %v2240
    %v2242 = vpop.f32.mrf.mxu0
    %2243 = vdwg.mxu0
    %2244 = vmatprep.subr.mxu0 0.0
    %2245 = vmatpush1.msra.mxu0 0.0
    %2246 = vmatprep.subr.mxu0 0.0
    %2247 = vmatpush1.msra.mxu0 0.0
    %2248 = vmatprep.subr.mxu0 0.0
    %2249 = vmatpush1.msra.mxu0 0.0
    %2250 = vmatprep.subr.mxu0 0.0
    %2251 = vmatpush1.msra.mxu0 0.0
    %2252 = vmatprep.subr.mxu0 0.0
    %2253 = vmatpush1.msra.mxu0 0.0
    %2254 = vmatprep.subr.mxu0 0.0
    %2255 = vmatpush1.msra.mxu0 0.0
    %2256 = vmatprep.subr.mxu0 0.0
    %2257 = vmatpush1.msra.mxu0 0.0
    %2258 = vmatprep.subr.mxu0 0.0
    %2259 = vmatpush1.msra.mxu0 0.0
    %2260 = vmatprep.subr.mxu0 0.0
    %2261 = vmatpush1.msra.mxu0 0.0
    %2262 = vmatprep.subr.mxu0 0.0
    %2263 = vmatpush1.msra.mxu0 0.0
    %2264 = vmatprep.subr.mxu0 0.0
    %2265 = vmatpush1.msra.mxu0 0.0
    %2266 = vmatprep.subr.mxu0 0.0
    %2267 = vmatpush1.msra.mxu0 0.0
    %2268 = vmatprep.subr.mxu0 0.0
    %v2269 = vand.u32 %v931, 4294901760
    %2270 = vmatpush1.msra.mxu0 %v2269
    %2271 = vmatprep.subr.mxu0 0.0
    %v2272 = vand.u32 %v930, 4294901760
    %2273 = vmatpush1.msra.mxu0 %v2272
    %2274 = vmatprep.subr.mxu0 0.0
    %v2275 = vand.u32 %v929, 4294901760
    %2276 = vmatpush1.msra.mxu0 %v2275
    %2277 = vmatprep.subr.mxu0 0.0
    %v2278 = vand.u32 %v928, 4294901760
    %2279 = vmatpush1.msra.mxu0 %v2278
    %2280 = vmatprep.subr.mxu0 0.0
    %2281 = vmatpush2.msra.mxu0 0.0
    %2282 = vmatprep.subr.mxu0 0.0
    %2283 = vmatpush2.msra.mxu0 0.0
    %2284 = vmatprep.subr.mxu0 0.0
    %2285 = vmatpush2.msra.mxu0 0.0
    %2286 = vmatprep.subr.mxu0 0.0
    %2287 = vmatpush2.msra.mxu0 0.0
    %2288 = vmatprep.subr.mxu0 0.0
    %2289 = vmatpush2.msra.mxu0 0.0
    %2290 = vmatprep.subr.mxu0 0.0
    %2291 = vmatpush2.msra.mxu0 0.0
    %2292 = vmatprep.subr.mxu0 0.0
    %2293 = vmatpush2.msra.mxu0 0.0
    %2294 = vmatprep.subr.mxu0 0.0
    %2295 = vmatpush2.msra.mxu0 0.0
    %2296 = vmatprep.subr.mxu0 0.0
    %2297 = vmatpush2.msra.mxu0 0.0
    %2298 = vmatprep.subr.mxu0 0.0
    %2299 = vmatpush2.msra.mxu0 0.0
    %2300 = vmatprep.subr.mxu0 0.0
    %2301 = vmatpush2.msra.mxu0 0.0
    %2302 = vmatprep.subr.mxu0 0.0
    %2303 = vmatpush2.msra.mxu0 0.0
    %2304 = vmatprep.subr.mxu0 0.0
    %2305 = vmatpush2.msra.mxu0 0.0
    %2306 = vmatprep.subr.mxu0 0.0
    %2307 = vmatpush2.msra.mxu0 0.0
    %2308 = vmatprep.subr.mxu0 0.0
    %2309 = vmatpush2.msra.mxu0 0.0
    %2310 = vmatprep.subr.mxu0 0.0
    %2311 = vmatpush2.msra.mxu0 0.0
    %2312 = vmatprep.mubr.f32.mxu0 0.0
    %v2313 = vand.u32 %v1992, 4294901760
    %v2314 = vsub.f32 %v1992, %v2313
    %v2315 = vand.u32 %v2314, 4294901760
    %2316 = vmatmul.mubr.f32.gmra.mxu0 %v2315
    %v2317 = vpop.f32.mrf.mxu0
    %v2318 = vadd.f32 %v2241, %v2317
    %v2319 = vpop.f32.mrf.mxu0
    %2320 = vdwg.mxu0
    %2321 = vmatprep.subr.mxu0 0.0
    %2322 = vmatpush1.msra.mxu0 0.0
    %2323 = vmatprep.subr.mxu0 0.0
    %2324 = vmatpush1.msra.mxu0 0.0
    %2325 = vmatprep.subr.mxu0 0.0
    %2326 = vmatpush1.msra.mxu0 0.0
    %2327 = vmatprep.subr.mxu0 0.0
    %2328 = vmatpush1.msra.mxu0 0.0
    %2329 = vmatprep.subr.mxu0 0.0
    %2330 = vmatpush1.msra.mxu0 0.0
    %2331 = vmatprep.subr.mxu0 0.0
    %2332 = vmatpush1.msra.mxu0 0.0
    %2333 = vmatprep.subr.mxu0 0.0
    %2334 = vmatpush1.msra.mxu0 0.0
    %2335 = vmatprep.subr.mxu0 0.0
    %2336 = vmatpush1.msra.mxu0 0.0
    %2337 = vmatprep.subr.mxu0 0.0
    %2338 = vmatpush1.msra.mxu0 0.0
    %2339 = vmatprep.subr.mxu0 0.0
    %2340 = vmatpush1.msra.mxu0 0.0
    %2341 = vmatprep.subr.mxu0 0.0
    %2342 = vmatpush1.msra.mxu0 0.0
    %2343 = vmatprep.subr.mxu0 0.0
    %2344 = vmatpush1.msra.mxu0 0.0
    %2345 = vmatprep.subr.mxu0 0.0
    %v2346 = vand.u32 %v931, 4294901760
    %v2347 = vsub.f32 %v931, %v2346
    %v2348 = vand.u32 %v2347, 4294901760
    %2349 = vmatpush1.msra.mxu0 %v2348
    %2350 = vmatprep.subr.mxu0 0.0
    %v2351 = vand.u32 %v930, 4294901760
    %v2352 = vsub.f32 %v930, %v2351
    %v2353 = vand.u32 %v2352, 4294901760
    %2354 = vmatpush1.msra.mxu0 %v2353
    %2355 = vmatprep.subr.mxu0 0.0
    %v2356 = vand.u32 %v929, 4294901760
    %v2357 = vsub.f32 %v929, %v2356
    %v2358 = vand.u32 %v2357, 4294901760
    %2359 = vmatpush1.msra.mxu0 %v2358
    %2360 = vmatprep.subr.mxu0 0.0
    %v2361 = vand.u32 %v928, 4294901760
    %v2362 = vsub.f32 %v928, %v2361
    %v2363 = vand.u32 %v2362, 4294901760
    %2364 = vmatpush1.msra.mxu0 %v2363
    %2365 = vmatprep.subr.mxu0 0.0
    %2366 = vmatpush2.msra.mxu0 0.0
    %2367 = vmatprep.subr.mxu0 0.0
    %2368 = vmatpush2.msra.mxu0 0.0
    %2369 = vmatprep.subr.mxu0 0.0
    %2370 = vmatpush2.msra.mxu0 0.0
    %2371 = vmatprep.subr.mxu0 0.0
    %2372 = vmatpush2.msra.mxu0 0.0
    %2373 = vmatprep.subr.mxu0 0.0
    %2374 = vmatpush2.msra.mxu0 0.0
    %2375 = vmatprep.subr.mxu0 0.0
    %2376 = vmatpush2.msra.mxu0 0.0
    %2377 = vmatprep.subr.mxu0 0.0
    %2378 = vmatpush2.msra.mxu0 0.0
    %2379 = vmatprep.subr.mxu0 0.0
    %2380 = vmatpush2.msra.mxu0 0.0
    %2381 = vmatprep.subr.mxu0 0.0
    %2382 = vmatpush2.msra.mxu0 0.0
    %2383 = vmatprep.subr.mxu0 0.0
    %2384 = vmatpush2.msra.mxu0 0.0
    %2385 = vmatprep.subr.mxu0 0.0
    %2386 = vmatpush2.msra.mxu0 0.0
    %2387 = vmatprep.subr.mxu0 0.0
    %2388 = vmatpush2.msra.mxu0 0.0
    %2389 = vmatprep.subr.mxu0 0.0
    %2390 = vmatpush2.msra.mxu0 0.0
    %2391 = vmatprep.subr.mxu0 0.0
    %2392 = vmatpush2.msra.mxu0 0.0
    %2393 = vmatprep.subr.mxu0 0.0
    %2394 = vmatpush2.msra.mxu0 0.0
    %2395 = vmatprep.subr.mxu0 0.0
    %2396 = vmatpush2.msra.mxu0 0.0
    %2397 = vmatprep.mubr.f32.mxu0 0.0
    %v2398 = vand.u32 %v1992, 4294901760
    %2399 = vmatmul.mubr.f32.gmra.mxu0 %v2398
    %v2400 = vpop.f32.mrf.mxu0
    %v2401 = vadd.f32 %v2318, %v2400
    %v2402 = vpop.f32.mrf.mxu0
    %2403 = vdwg.mxu0
    %2404 = vmatprep.subr.mxu0 0.0
    %2405 = vmatpush1.msra.mxu0 0.0
    %2406 = vmatprep.subr.mxu0 0.0
    %2407 = vmatpush1.msra.mxu0 0.0
    %2408 = vmatprep.subr.mxu0 0.0
    %2409 = vmatpush1.msra.mxu0 0.0
    %2410 = vmatprep.subr.mxu0 0.0
    %2411 = vmatpush1.msra.mxu0 0.0
    %2412 = vmatprep.subr.mxu0 0.0
    %2413 = vmatpush1.msra.mxu0 0.0
    %2414 = vmatprep.subr.mxu0 0.0
    %2415 = vmatpush1.msra.mxu0 0.0
    %2416 = vmatprep.subr.mxu0 0.0
    %2417 = vmatpush1.msra.mxu0 0.0
    %2418 = vmatprep.subr.mxu0 0.0
    %2419 = vmatpush1.msra.mxu0 0.0
    %2420 = vmatprep.subr.mxu0 0.0
    %2421 = vmatpush1.msra.mxu0 0.0
    %2422 = vmatprep.subr.mxu0 0.0
    %2423 = vmatpush1.msra.mxu0 0.0
    %2424 = vmatprep.subr.mxu0 0.0
    %2425 = vmatpush1.msra.mxu0 0.0
    %2426 = vmatprep.subr.mxu0 0.0
    %2427 = vmatpush1.msra.mxu0 0.0
    %2428 = vmatprep.subr.mxu0 0.0
    %v2429 = vand.u32 %v931, 4294901760
    %2430 = vmatpush1.msra.mxu0 %v2429
    %2431 = vmatprep.subr.mxu0 0.0
    %v2432 = vand.u32 %v930, 4294901760
    %2433 = vmatpush1.msra.mxu0 %v2432
    %2434 = vmatprep.subr.mxu0 0.0
    %v2435 = vand.u32 %v929, 4294901760
    %2436 = vmatpush1.msra.mxu0 %v2435
    %2437 = vmatprep.subr.mxu0 0.0
    %v2438 = vand.u32 %v928, 4294901760
    %2439 = vmatpush1.msra.mxu0 %v2438
    %2440 = vmatprep.subr.mxu0 0.0
    %2441 = vmatpush2.msra.mxu0 0.0
    %2442 = vmatprep.subr.mxu0 0.0
    %2443 = vmatpush2.msra.mxu0 0.0
    %2444 = vmatprep.subr.mxu0 0.0
    %2445 = vmatpush2.msra.mxu0 0.0
    %2446 = vmatprep.subr.mxu0 0.0
    %2447 = vmatpush2.msra.mxu0 0.0
    %2448 = vmatprep.subr.mxu0 0.0
    %2449 = vmatpush2.msra.mxu0 0.0
    %2450 = vmatprep.subr.mxu0 0.0
    %2451 = vmatpush2.msra.mxu0 0.0
    %2452 = vmatprep.subr.mxu0 0.0
    %2453 = vmatpush2.msra.mxu0 0.0
    %2454 = vmatprep.subr.mxu0 0.0
    %2455 = vmatpush2.msra.mxu0 0.0
    %2456 = vmatprep.subr.mxu0 0.0
    %2457 = vmatpush2.msra.mxu0 0.0
    %2458 = vmatprep.subr.mxu0 0.0
    %2459 = vmatpush2.msra.mxu0 0.0
    %2460 = vmatprep.subr.mxu0 0.0
    %2461 = vmatpush2.msra.mxu0 0.0
    %2462 = vmatprep.subr.mxu0 0.0
    %2463 = vmatpush2.msra.mxu0 0.0
    %2464 = vmatprep.subr.mxu0 0.0
    %2465 = vmatpush2.msra.mxu0 0.0
    %2466 = vmatprep.subr.mxu0 0.0
    %2467 = vmatpush2.msra.mxu0 0.0
    %2468 = vmatprep.subr.mxu0 0.0
    %2469 = vmatpush2.msra.mxu0 0.0
    %2470 = vmatprep.subr.mxu0 0.0
    %2471 = vmatpush2.msra.mxu0 0.0
    %2472 = vmatprep.mubr.f32.mxu0 0.0
    %v2473 = vand.u32 %v1992, 4294901760
    %2474 = vmatmul.mubr.f32.gmra.mxu0 %v2473
    %v2475 = vpop.f32.mrf.mxu0
    %v2476 = vadd.f32 %v2401, %v2475
    %v2477 = vpop.f32.mrf.mxu0
    %2478 = vdwg.mxu0
    %v2479 = vadd.f32 %v1988, %v2476
    %v2480 = vxor.u32 %v2479, 2147483648
    %v2481 = vmul.f32 %v2480, 1.442695
    %v2482 = vpow.pop %v2481
    %v2483 = vadd.f32 %v2482, 1.0
    %v2484 = vrcp.pop %v2483
    %v2485 = vmul.f32 1.0, %v2484
    %v2486 = vtanh.pop %v2479
    %v2487 = vmul.f32 %v2485, %v1981
    %2489 = vrot.lane.b32.xlu0 %v2486, 64
    %v2490 = vpop.permute.xlu0 %2489
    %v2492 = vmul.f32 %v2485, %v2490
    %2494 = vrot.lane.b32.xlu0 %v2492, 32
    %v2495 = vpop.permute.xlu0 %2494
    %v2497 = vadd.f32 %v2487, %v2495
    %v2498 = vtanh.pop %v2497
    %2500 = vrot.lane.b32.xlu0 %v2498, 64
    %v2501 = vpop.permute.xlu0 %2500
    %v2503 = vmul.f32 %v2485, %v2501
    %v2504 = vld [vmem:[#allocation2 + $0x40] sm:$0xff]
    %2506 = vrot.lane.b32.xlu0 %v2503, 32
    %v2507 = vpop.permute.xlu0 %2506
    %v2508 = vsel %vm955, %v2507, 0
    %2510 = vmatprep.subr.mxu0 0.0
    %2511 = vmatpush1.msra.mxu0 0.0
    %2512 = vmatprep.subr.mxu0 0.0
    %2513 = vmatpush1.msra.mxu0 0.0
    %2514 = vmatprep.subr.mxu0 0.0
    %2515 = vmatpush1.msra.mxu0 0.0
    %2516 = vmatprep.subr.mxu0 0.0
    %2517 = vmatpush1.msra.mxu0 0.0
    %2518 = vmatprep.subr.mxu0 0.0
    %2519 = vmatpush1.msra.mxu0 0.0
    %2520 = vmatprep.subr.mxu0 0.0
    %2521 = vmatpush1.msra.mxu0 0.0
    %2522 = vmatprep.subr.mxu0 0.0
    %2523 = vmatpush1.msra.mxu0 0.0
    %2524 = vmatprep.subr.mxu0 0.0
    %2525 = vmatpush1.msra.mxu0 0.0
    %2526 = vmatprep.subr.mxu0 0.0
    %2527 = vmatpush1.msra.mxu0 0.0
    %2528 = vmatprep.subr.mxu0 0.0
    %2529 = vmatpush1.msra.mxu0 0.0
    %2530 = vmatprep.subr.mxu0 0.0
    %2531 = vmatpush1.msra.mxu0 0.0
    %2532 = vmatprep.subr.mxu0 0.0
    %2533 = vmatpush1.msra.mxu0 0.0
    %2534 = vmatprep.subr.mxu0 0.0
    %v2535 = vand.u32 %v931, 4294901760
    %2536 = vmatpush1.msra.mxu0 %v2535
    %2537 = vmatprep.subr.mxu0 0.0
    %v2538 = vand.u32 %v930, 4294901760
    %2539 = vmatpush1.msra.mxu0 %v2538
    %2540 = vmatprep.subr.mxu0 0.0
    %v2541 = vand.u32 %v929, 4294901760
    %2542 = vmatpush1.msra.mxu0 %v2541
    %2543 = vmatprep.subr.mxu0 0.0
    %v2544 = vand.u32 %v928, 4294901760
    %2545 = vmatpush1.msra.mxu0 %v2544
    %2546 = vmatprep.subr.mxu0 0.0
    %2547 = vmatpush2.msra.mxu0 0.0
    %2548 = vmatprep.subr.mxu0 0.0
    %2549 = vmatpush2.msra.mxu0 0.0
    %2550 = vmatprep.subr.mxu0 0.0
    %2551 = vmatpush2.msra.mxu0 0.0
    %2552 = vmatprep.subr.mxu0 0.0
    %2553 = vmatpush2.msra.mxu0 0.0
    %2554 = vmatprep.subr.mxu0 0.0
    %2555 = vmatpush2.msra.mxu0 0.0
    %2556 = vmatprep.subr.mxu0 0.0
    %2557 = vmatpush2.msra.mxu0 0.0
    %2558 = vmatprep.subr.mxu0 0.0
    %2559 = vmatpush2.msra.mxu0 0.0
    %2560 = vmatprep.subr.mxu0 0.0
    %2561 = vmatpush2.msra.mxu0 0.0
    %2562 = vmatprep.subr.mxu0 0.0
    %2563 = vmatpush2.msra.mxu0 0.0
    %2564 = vmatprep.subr.mxu0 0.0
    %2565 = vmatpush2.msra.mxu0 0.0
    %2566 = vmatprep.subr.mxu0 0.0
    %2567 = vmatpush2.msra.mxu0 0.0
    %2568 = vmatprep.subr.mxu0 0.0
    %2569 = vmatpush2.msra.mxu0 0.0
    %2570 = vmatprep.subr.mxu0 0.0
    %2571 = vmatpush2.msra.mxu0 0.0
    %2572 = vmatprep.subr.mxu0 0.0
    %2573 = vmatpush2.msra.mxu0 0.0
    %2574 = vmatprep.subr.mxu0 0.0
    %2575 = vmatpush2.msra.mxu0 0.0
    %2576 = vmatprep.subr.mxu0 0.0
    %2577 = vmatpush2.msra.mxu0 0.0
    %2578 = vmatprep.mubr.f32.mxu0 0.0
    %v2579 = vand.u32 %v2508, 4294901760
    %v2580 = vsub.f32 %v2508, %v2579
    %v2581 = vand.u32 %v2580, 4294901760
    %v2582 = vsub.f32 %v2580, %v2581
    %v2583 = vand.u32 %v2582, 4294901760
    %2584 = vmatmul.mubr.f32.gmra.mxu0 %v2583
    %v2585 = vpop.f32.mrf.mxu0
    %v2586 = vadd.f32 0.0, %v2585
    %v2587 = vpop.f32.mrf.mxu0
    %2588 = vdwg.mxu0
    %2589 = vmatprep.subr.mxu0 0.0
    %2590 = vmatpush1.msra.mxu0 0.0
    %2591 = vmatprep.subr.mxu0 0.0
    %2592 = vmatpush1.msra.mxu0 0.0
    %2593 = vmatprep.subr.mxu0 0.0
    %2594 = vmatpush1.msra.mxu0 0.0
    %2595 = vmatprep.subr.mxu0 0.0
    %2596 = vmatpush1.msra.mxu0 0.0
    %2597 = vmatprep.subr.mxu0 0.0
    %2598 = vmatpush1.msra.mxu0 0.0
    %2599 = vmatprep.subr.mxu0 0.0
    %2600 = vmatpush1.msra.mxu0 0.0
    %2601 = vmatprep.subr.mxu0 0.0
    %2602 = vmatpush1.msra.mxu0 0.0
    %2603 = vmatprep.subr.mxu0 0.0
    %2604 = vmatpush1.msra.mxu0 0.0
    %2605 = vmatprep.subr.mxu0 0.0
    %2606 = vmatpush1.msra.mxu0 0.0
    %2607 = vmatprep.subr.mxu0 0.0
    %2608 = vmatpush1.msra.mxu0 0.0
    %2609 = vmatprep.subr.mxu0 0.0
    %2610 = vmatpush1.msra.mxu0 0.0
    %2611 = vmatprep.subr.mxu0 0.0
    %2612 = vmatpush1.msra.mxu0 0.0
    %2613 = vmatprep.subr.mxu0 0.0
    %v2614 = vand.u32 %v931, 4294901760
    %v2615 = vsub.f32 %v931, %v2614
    %v2616 = vand.u32 %v2615, 4294901760
    %v2617 = vsub.f32 %v2615, %v2616
    %v2618 = vand.u32 %v2617, 4294901760
    %2619 = vmatpush1.msra.mxu0 %v2618
    %2620 = vmatprep.subr.mxu0 0.0
    %v2621 = vand.u32 %v930, 4294901760
    %v2622 = vsub.f32 %v930, %v2621
    %v2623 = vand.u32 %v2622, 4294901760
    %v2624 = vsub.f32 %v2622, %v2623
    %v2625 = vand.u32 %v2624, 4294901760
    %2626 = vmatpush1.msra.mxu0 %v2625
    %2627 = vmatprep.subr.mxu0 0.0
    %v2628 = vand.u32 %v929, 4294901760
    %v2629 = vsub.f32 %v929, %v2628
    %v2630 = vand.u32 %v2629, 4294901760
    %v2631 = vsub.f32 %v2629, %v2630
    %v2632 = vand.u32 %v2631, 4294901760
    %2633 = vmatpush1.msra.mxu0 %v2632
    %2634 = vmatprep.subr.mxu0 0.0
    %v2635 = vand.u32 %v928, 4294901760
    %v2636 = vsub.f32 %v928, %v2635
    %v2637 = vand.u32 %v2636, 4294901760
    %v2638 = vsub.f32 %v2636, %v2637
    %v2639 = vand.u32 %v2638, 4294901760
    %2640 = vmatpush1.msra.mxu0 %v2639
    %2641 = vmatprep.subr.mxu0 0.0
    %2642 = vmatpush2.msra.mxu0 0.0
    %2643 = vmatprep.subr.mxu0 0.0
    %2644 = vmatpush2.msra.mxu0 0.0
    %2645 = vmatprep.subr.mxu0 0.0
    %2646 = vmatpush2.msra.mxu0 0.0
    %2647 = vmatprep.subr.mxu0 0.0
    %2648 = vmatpush2.msra.mxu0 0.0
    %2649 = vmatprep.subr.mxu0 0.0
    %2650 = vmatpush2.msra.mxu0 0.0
    %2651 = vmatprep.subr.mxu0 0.0
    %2652 = vmatpush2.msra.mxu0 0.0
    %2653 = vmatprep.subr.mxu0 0.0
    %2654 = vmatpush2.msra.mxu0 0.0
    %2655 = vmatprep.subr.mxu0 0.0
    %2656 = vmatpush2.msra.mxu0 0.0
    %2657 = vmatprep.subr.mxu0 0.0
    %2658 = vmatpush2.msra.mxu0 0.0
    %2659 = vmatprep.subr.mxu0 0.0
    %2660 = vmatpush2.msra.mxu0 0.0
    %2661 = vmatprep.subr.mxu0 0.0
    %2662 = vmatpush2.msra.mxu0 0.0
    %2663 = vmatprep.subr.mxu0 0.0
    %2664 = vmatpush2.msra.mxu0 0.0
    %2665 = vmatprep.subr.mxu0 0.0
    %2666 = vmatpush2.msra.mxu0 0.0
    %2667 = vmatprep.subr.mxu0 0.0
    %2668 = vmatpush2.msra.mxu0 0.0
    %2669 = vmatprep.subr.mxu0 0.0
    %2670 = vmatpush2.msra.mxu0 0.0
    %2671 = vmatprep.subr.mxu0 0.0
    %2672 = vmatpush2.msra.mxu0 0.0
    %2673 = vmatprep.mubr.f32.mxu0 0.0
    %v2674 = vand.u32 %v2508, 4294901760
    %2675 = vmatmul.mubr.f32.gmra.mxu0 %v2674
    %v2676 = vpop.f32.mrf.mxu0
    %v2677 = vadd.f32 %v2586, %v2676
    %v2678 = vpop.f32.mrf.mxu0
    %2679 = vdwg.mxu0
    %2680 = vmatprep.subr.mxu0 0.0
    %2681 = vmatpush1.msra.mxu0 0.0
    %2682 = vmatprep.subr.mxu0 0.0
    %2683 = vmatpush1.msra.mxu0 0.0
    %2684 = vmatprep.subr.mxu0 0.0
    %2685 = vmatpush1.msra.mxu0 0.0
    %2686 = vmatprep.subr.mxu0 0.0
    %2687 = vmatpush1.msra.mxu0 0.0
    %2688 = vmatprep.subr.mxu0 0.0
    %2689 = vmatpush1.msra.mxu0 0.0
    %2690 = vmatprep.subr.mxu0 0.0
    %2691 = vmatpush1.msra.mxu0 0.0
    %2692 = vmatprep.subr.mxu0 0.0
    %2693 = vmatpush1.msra.mxu0 0.0
    %2694 = vmatprep.subr.mxu0 0.0
    %2695 = vmatpush1.msra.mxu0 0.0
    %2696 = vmatprep.subr.mxu0 0.0
    %2697 = vmatpush1.msra.mxu0 0.0
    %2698 = vmatprep.subr.mxu0 0.0
    %2699 = vmatpush1.msra.mxu0 0.0
    %2700 = vmatprep.subr.mxu0 0.0
    %2701 = vmatpush1.msra.mxu0 0.0
    %2702 = vmatprep.subr.mxu0 0.0
    %2703 = vmatpush1.msra.mxu0 0.0
    %2704 = vmatprep.subr.mxu0 0.0
    %v2705 = vand.u32 %v931, 4294901760
    %v2706 = vsub.f32 %v931, %v2705
    %2707 = vmatpush1.msra.mxu0 %v2706
    %2708 = vmatprep.subr.mxu0 0.0
    %v2709 = vand.u32 %v930, 4294901760
    %v2710 = vsub.f32 %v930, %v2709
    %2711 = vmatpush1.msra.mxu0 %v2710
    %2712 = vmatprep.subr.mxu0 0.0
    %v2713 = vand.u32 %v929, 4294901760
    %v2714 = vsub.f32 %v929, %v2713
    %2715 = vmatpush1.msra.mxu0 %v2714
    %2716 = vmatprep.subr.mxu0 0.0
    %v2717 = vand.u32 %v928, 4294901760
    %v2718 = vsub.f32 %v928, %v2717
    %2719 = vmatpush1.msra.mxu0 %v2718
    %2720 = vmatprep.subr.mxu0 0.0
    %2721 = vmatpush2.msra.mxu0 0.0
    %2722 = vmatprep.subr.mxu0 0.0
    %2723 = vmatpush2.msra.mxu0 0.0
    %2724 = vmatprep.subr.mxu0 0.0
    %2725 = vmatpush2.msra.mxu0 0.0
    %2726 = vmatprep.subr.mxu0 0.0
    %2727 = vmatpush2.msra.mxu0 0.0
    %2728 = vmatprep.subr.mxu0 0.0
    %2729 = vmatpush2.msra.mxu0 0.0
    %2730 = vmatprep.subr.mxu0 0.0
    %2731 = vmatpush2.msra.mxu0 0.0
    %2732 = vmatprep.subr.mxu0 0.0
    %2733 = vmatpush2.msra.mxu0 0.0
    %2734 = vmatprep.subr.mxu0 0.0
    %2735 = vmatpush2.msra.mxu0 0.0
    %2736 = vmatprep.subr.mxu0 0.0
    %2737 = vmatpush2.msra.mxu0 0.0
    %2738 = vmatprep.subr.mxu0 0.0
    %2739 = vmatpush2.msra.mxu0 0.0
    %2740 = vmatprep.subr.mxu0 0.0
    %2741 = vmatpush2.msra.mxu0 0.0
    %2742 = vmatprep.subr.mxu0 0.0
    %2743 = vmatpush2.msra.mxu0 0.0
    %2744 = vmatprep.subr.mxu0 0.0
    %2745 = vmatpush2.msra.mxu0 0.0
    %2746 = vmatprep.subr.mxu0 0.0
    %2747 = vmatpush2.msra.mxu0 0.0
    %2748 = vmatprep.subr.mxu0 0.0
    %2749 = vmatpush2.msra.mxu0 0.0
    %2750 = vmatprep.subr.mxu0 0.0
    %2751 = vmatpush2.msra.mxu0 0.0
    %2752 = vmatprep.mubr.f32.mxu0 0.0
    %v2753 = vand.u32 %v2508, 4294901760
    %v2754 = vsub.f32 %v2508, %v2753
    %2755 = vmatmul.mubr.f32.gmra.mxu0 %v2754
    %v2756 = vpop.f32.mrf.mxu0
    %v2757 = vadd.f32 %v2677, %v2756
    %v2758 = vpop.f32.mrf.mxu0
    %2759 = vdwg.mxu0
    %2760 = vmatprep.subr.mxu0 0.0
    %2761 = vmatpush1.msra.mxu0 0.0
    %2762 = vmatprep.subr.mxu0 0.0
    %2763 = vmatpush1.msra.mxu0 0.0
    %2764 = vmatprep.subr.mxu0 0.0
    %2765 = vmatpush1.msra.mxu0 0.0
    %2766 = vmatprep.subr.mxu0 0.0
    %2767 = vmatpush1.msra.mxu0 0.0
    %2768 = vmatprep.subr.mxu0 0.0
    %2769 = vmatpush1.msra.mxu0 0.0
    %2770 = vmatprep.subr.mxu0 0.0
    %2771 = vmatpush1.msra.mxu0 0.0
    %2772 = vmatprep.subr.mxu0 0.0
    %2773 = vmatpush1.msra.mxu0 0.0
    %2774 = vmatprep.subr.mxu0 0.0
    %2775 = vmatpush1.msra.mxu0 0.0
    %2776 = vmatprep.subr.mxu0 0.0
    %2777 = vmatpush1.msra.mxu0 0.0
    %2778 = vmatprep.subr.mxu0 0.0
    %2779 = vmatpush1.msra.mxu0 0.0
    %2780 = vmatprep.subr.mxu0 0.0
    %2781 = vmatpush1.msra.mxu0 0.0
    %2782 = vmatprep.subr.mxu0 0.0
    %2783 = vmatpush1.msra.mxu0 0.0
    %2784 = vmatprep.subr.mxu0 0.0
    %v2785 = vand.u32 %v931, 4294901760
    %2786 = vmatpush1.msra.mxu0 %v2785
    %2787 = vmatprep.subr.mxu0 0.0
    %v2788 = vand.u32 %v930, 4294901760
    %2789 = vmatpush1.msra.mxu0 %v2788
    %2790 = vmatprep.subr.mxu0 0.0
    %v2791 = vand.u32 %v929, 4294901760
    %2792 = vmatpush1.msra.mxu0 %v2791
    %2793 = vmatprep.subr.mxu0 0.0
    %v2794 = vand.u32 %v928, 4294901760
    %2795 = vmatpush1.msra.mxu0 %v2794
    %2796 = vmatprep.subr.mxu0 0.0
    %2797 = vmatpush2.msra.mxu0 0.0
    %2798 = vmatprep.subr.mxu0 0.0
    %2799 = vmatpush2.msra.mxu0 0.0
    %2800 = vmatprep.subr.mxu0 0.0
    %2801 = vmatpush2.msra.mxu0 0.0
    %2802 = vmatprep.subr.mxu0 0.0
    %2803 = vmatpush2.msra.mxu0 0.0
    %2804 = vmatprep.subr.mxu0 0.0
    %2805 = vmatpush2.msra.mxu0 0.0
    %2806 = vmatprep.subr.mxu0 0.0
    %2807 = vmatpush2.msra.mxu0 0.0
    %2808 = vmatprep.subr.mxu0 0.0
    %2809 = vmatpush2.msra.mxu0 0.0
    %2810 = vmatprep.subr.mxu0 0.0
    %2811 = vmatpush2.msra.mxu0 0.0
    %2812 = vmatprep.subr.mxu0 0.0
    %2813 = vmatpush2.msra.mxu0 0.0
    %2814 = vmatprep.subr.mxu0 0.0
    %2815 = vmatpush2.msra.mxu0 0.0
    %2816 = vmatprep.subr.mxu0 0.0
    %2817 = vmatpush2.msra.mxu0 0.0
    %2818 = vmatprep.subr.mxu0 0.0
    %2819 = vmatpush2.msra.mxu0 0.0
    %2820 = vmatprep.subr.mxu0 0.0
    %2821 = vmatpush2.msra.mxu0 0.0
    %2822 = vmatprep.subr.mxu0 0.0
    %2823 = vmatpush2.msra.mxu0 0.0
    %2824 = vmatprep.subr.mxu0 0.0
    %2825 = vmatpush2.msra.mxu0 0.0
    %2826 = vmatprep.subr.mxu0 0.0
    %2827 = vmatpush2.msra.mxu0 0.0
    %2828 = vmatprep.mubr.f32.mxu0 0.0
    %v2829 = vand.u32 %v2508, 4294901760
    %v2830 = vsub.f32 %v2508, %v2829
    %v2831 = vand.u32 %v2830, 4294901760
    %2832 = vmatmul.mubr.f32.gmra.mxu0 %v2831
    %v2833 = vpop.f32.mrf.mxu0
    %v2834 = vadd.f32 %v2757, %v2833
    %v2835 = vpop.f32.mrf.mxu0
    %2836 = vdwg.mxu0
    %2837 = vmatprep.subr.mxu0 0.0
    %2838 = vmatpush1.msra.mxu0 0.0
    %2839 = vmatprep.subr.mxu0 0.0
    %2840 = vmatpush1.msra.mxu0 0.0
    %2841 = vmatprep.subr.mxu0 0.0
    %2842 = vmatpush1.msra.mxu0 0.0
    %2843 = vmatprep.subr.mxu0 0.0
    %2844 = vmatpush1.msra.mxu0 0.0
    %2845 = vmatprep.subr.mxu0 0.0
    %2846 = vmatpush1.msra.mxu0 0.0
    %2847 = vmatprep.subr.mxu0 0.0
    %2848 = vmatpush1.msra.mxu0 0.0
    %2849 = vmatprep.subr.mxu0 0.0
    %2850 = vmatpush1.msra.mxu0 0.0
    %2851 = vmatprep.subr.mxu0 0.0
    %2852 = vmatpush1.msra.mxu0 0.0
    %2853 = vmatprep.subr.mxu0 0.0
    %2854 = vmatpush1.msra.mxu0 0.0
    %2855 = vmatprep.subr.mxu0 0.0
    %2856 = vmatpush1.msra.mxu0 0.0
    %2857 = vmatprep.subr.mxu0 0.0
    %2858 = vmatpush1.msra.mxu0 0.0
    %2859 = vmatprep.subr.mxu0 0.0
    %2860 = vmatpush1.msra.mxu0 0.0
    %2861 = vmatprep.subr.mxu0 0.0
    %v2862 = vand.u32 %v931, 4294901760
    %v2863 = vsub.f32 %v931, %v2862
    %v2864 = vand.u32 %v2863, 4294901760
    %2865 = vmatpush1.msra.mxu0 %v2864
    %2866 = vmatprep.subr.mxu0 0.0
    %v2867 = vand.u32 %v930, 4294901760
    %v2868 = vsub.f32 %v930, %v2867
    %v2869 = vand.u32 %v2868, 4294901760
    %2870 = vmatpush1.msra.mxu0 %v2869
    %2871 = vmatprep.subr.mxu0 0.0
    %v2872 = vand.u32 %v929, 4294901760
    %v2873 = vsub.f32 %v929, %v2872
    %v2874 = vand.u32 %v2873, 4294901760
    %2875 = vmatpush1.msra.mxu0 %v2874
    %2876 = vmatprep.subr.mxu0 0.0
    %v2877 = vand.u32 %v928, 4294901760
    %v2878 = vsub.f32 %v928, %v2877
    %v2879 = vand.u32 %v2878, 4294901760
    %2880 = vmatpush1.msra.mxu0 %v2879
    %2881 = vmatprep.subr.mxu0 0.0
    %2882 = vmatpush2.msra.mxu0 0.0
    %2883 = vmatprep.subr.mxu0 0.0
    %2884 = vmatpush2.msra.mxu0 0.0
    %2885 = vmatprep.subr.mxu0 0.0
    %2886 = vmatpush2.msra.mxu0 0.0
    %2887 = vmatprep.subr.mxu0 0.0
    %2888 = vmatpush2.msra.mxu0 0.0
    %2889 = vmatprep.subr.mxu0 0.0
    %2890 = vmatpush2.msra.mxu0 0.0
    %2891 = vmatprep.subr.mxu0 0.0
    %2892 = vmatpush2.msra.mxu0 0.0
    %2893 = vmatprep.subr.mxu0 0.0
    %2894 = vmatpush2.msra.mxu0 0.0
    %2895 = vmatprep.subr.mxu0 0.0
    %2896 = vmatpush2.msra.mxu0 0.0
    %2897 = vmatprep.subr.mxu0 0.0
    %2898 = vmatpush2.msra.mxu0 0.0
    %2899 = vmatprep.subr.mxu0 0.0
    %2900 = vmatpush2.msra.mxu0 0.0
    %2901 = vmatprep.subr.mxu0 0.0
    %2902 = vmatpush2.msra.mxu0 0.0
    %2903 = vmatprep.subr.mxu0 0.0
    %2904 = vmatpush2.msra.mxu0 0.0
    %2905 = vmatprep.subr.mxu0 0.0
    %2906 = vmatpush2.msra.mxu0 0.0
    %2907 = vmatprep.subr.mxu0 0.0
    %2908 = vmatpush2.msra.mxu0 0.0
    %2909 = vmatprep.subr.mxu0 0.0
    %2910 = vmatpush2.msra.mxu0 0.0
    %2911 = vmatprep.subr.mxu0 0.0
    %2912 = vmatpush2.msra.mxu0 0.0
    %2913 = vmatprep.mubr.f32.mxu0 0.0
    %v2914 = vand.u32 %v2508, 4294901760
    %2915 = vmatmul.mubr.f32.gmra.mxu0 %v2914
    %v2916 = vpop.f32.mrf.mxu0
    %v2917 = vadd.f32 %v2834, %v2916
    %v2918 = vpop.f32.mrf.mxu0
    %2919 = vdwg.mxu0
    %2920 = vmatprep.subr.mxu0 0.0
    %2921 = vmatpush1.msra.mxu0 0.0
    %2922 = vmatprep.subr.mxu0 0.0
    %2923 = vmatpush1.msra.mxu0 0.0
    %2924 = vmatprep.subr.mxu0 0.0
    %2925 = vmatpush1.msra.mxu0 0.0
    %2926 = vmatprep.subr.mxu0 0.0
    %2927 = vmatpush1.msra.mxu0 0.0
    %2928 = vmatprep.subr.mxu0 0.0
    %2929 = vmatpush1.msra.mxu0 0.0
    %2930 = vmatprep.subr.mxu0 0.0
    %2931 = vmatpush1.msra.mxu0 0.0
    %2932 = vmatprep.subr.mxu0 0.0
    %2933 = vmatpush1.msra.mxu0 0.0
    %2934 = vmatprep.subr.mxu0 0.0
    %2935 = vmatpush1.msra.mxu0 0.0
    %2936 = vmatprep.subr.mxu0 0.0
    %2937 = vmatpush1.msra.mxu0 0.0
    %2938 = vmatprep.subr.mxu0 0.0
    %2939 = vmatpush1.msra.mxu0 0.0
    %2940 = vmatprep.subr.mxu0 0.0
    %2941 = vmatpush1.msra.mxu0 0.0
    %2942 = vmatprep.subr.mxu0 0.0
    %2943 = vmatpush1.msra.mxu0 0.0
    %2944 = vmatprep.subr.mxu0 0.0
    %v2945 = vand.u32 %v931, 4294901760
    %2946 = vmatpush1.msra.mxu0 %v2945
    %2947 = vmatprep.subr.mxu0 0.0
    %v2948 = vand.u32 %v930, 4294901760
    %2949 = vmatpush1.msra.mxu0 %v2948
    %2950 = vmatprep.subr.mxu0 0.0
    %v2951 = vand.u32 %v929, 4294901760
    %2952 = vmatpush1.msra.mxu0 %v2951
    %2953 = vmatprep.subr.mxu0 0.0
    %v2954 = vand.u32 %v928, 4294901760
    %2955 = vmatpush1.msra.mxu0 %v2954
    %2956 = vmatprep.subr.mxu0 0.0
    %2957 = vmatpush2.msra.mxu0 0.0
    %2958 = vmatprep.subr.mxu0 0.0
    %2959 = vmatpush2.msra.mxu0 0.0
    %2960 = vmatprep.subr.mxu0 0.0
    %2961 = vmatpush2.msra.mxu0 0.0
    %2962 = vmatprep.subr.mxu0 0.0
    %2963 = vmatpush2.msra.mxu0 0.0
    %2964 = vmatprep.subr.mxu0 0.0
    %2965 = vmatpush2.msra.mxu0 0.0
    %2966 = vmatprep.subr.mxu0 0.0
    %2967 = vmatpush2.msra.mxu0 0.0
    %2968 = vmatprep.subr.mxu0 0.0
    %2969 = vmatpush2.msra.mxu0 0.0
    %2970 = vmatprep.subr.mxu0 0.0
    %2971 = vmatpush2.msra.mxu0 0.0
    %2972 = vmatprep.subr.mxu0 0.0
    %2973 = vmatpush2.msra.mxu0 0.0
    %2974 = vmatprep.subr.mxu0 0.0
    %2975 = vmatpush2.msra.mxu0 0.0
    %2976 = vmatprep.subr.mxu0 0.0
    %2977 = vmatpush2.msra.mxu0 0.0
    %2978 = vmatprep.subr.mxu0 0.0
    %2979 = vmatpush2.msra.mxu0 0.0
    %2980 = vmatprep.subr.mxu0 0.0
    %2981 = vmatpush2.msra.mxu0 0.0
    %2982 = vmatprep.subr.mxu0 0.0
    %2983 = vmatpush2.msra.mxu0 0.0
    %2984 = vmatprep.subr.mxu0 0.0
    %2985 = vmatpush2.msra.mxu0 0.0
    %2986 = vmatprep.subr.mxu0 0.0
    %2987 = vmatpush2.msra.mxu0 0.0
    %2988 = vmatprep.mubr.f32.mxu0 0.0
    %v2989 = vand.u32 %v2508, 4294901760
    %2990 = vmatmul.mubr.f32.gmra.mxu0 %v2989
    %v2991 = vpop.f32.mrf.mxu0
    %v2992 = vadd.f32 %v2917, %v2991
    %v2993 = vpop.f32.mrf.mxu0
    %2994 = vdwg.mxu0
    %v2995 = vadd.f32 %v2504, %v2992
    %v2996 = vxor.u32 %v2995, 2147483648
    %v2997 = vmul.f32 %v2996, 1.442695
    %v2998 = vpow.pop %v2997
    %v2999 = vadd.f32 %v2998, 1.0
    %v3000 = vrcp.pop %v2999
    %v3001 = vmul.f32 1.0, %v3000
    %v3002 = vtanh.pop %v2995
    %v3003 = vmul.f32 %v3001, %v2497
    %3005 = vrot.lane.b32.xlu0 %v3002, 64
    %v3006 = vpop.permute.xlu0 %3005
    %v3008 = vmul.f32 %v3001, %v3006
    %3010 = vrot.lane.b32.xlu0 %v3008, 32
    %v3011 = vpop.permute.xlu0 %3010
    %v3013 = vadd.f32 %v3003, %v3011
    %v3014 = vtanh.pop %v3013
    %3016 = vrot.lane.b32.xlu0 %v3014, 64
    %v3017 = vpop.permute.xlu0 %3016
    %v3019 = vmul.f32 %v3001, %v3017
    %v3020 = vld [vmem:[#allocation2 + $0x50] sm:$0xff]
    %3022 = vrot.lane.b32.xlu0 %v3019, 32
    %v3023 = vpop.permute.xlu0 %3022
    %v3024 = vsel %vm955, %v3023, 0
    %3026 = vmatprep.subr.mxu0 0.0
    %3027 = vmatpush1.msra.mxu0 0.0
    %3028 = vmatprep.subr.mxu0 0.0
    %3029 = vmatpush1.msra.mxu0 0.0
    %3030 = vmatprep.subr.mxu0 0.0
    %3031 = vmatpush1.msra.mxu0 0.0
    %3032 = vmatprep.subr.mxu0 0.0
    %3033 = vmatpush1.msra.mxu0 0.0
    %3034 = vmatprep.subr.mxu0 0.0
    %3035 = vmatpush1.msra.mxu0 0.0
    %3036 = vmatprep.subr.mxu0 0.0
    %3037 = vmatpush1.msra.mxu0 0.0
    %3038 = vmatprep.subr.mxu0 0.0
    %3039 = vmatpush1.msra.mxu0 0.0
    %3040 = vmatprep.subr.mxu0 0.0
    %3041 = vmatpush1.msra.mxu0 0.0
    %3042 = vmatprep.subr.mxu0 0.0
    %3043 = vmatpush1.msra.mxu0 0.0
    %3044 = vmatprep.subr.mxu0 0.0
    %3045 = vmatpush1.msra.mxu0 0.0
    %3046 = vmatprep.subr.mxu0 0.0
    %3047 = vmatpush1.msra.mxu0 0.0
    %3048 = vmatprep.subr.mxu0 0.0
    %3049 = vmatpush1.msra.mxu0 0.0
    %3050 = vmatprep.subr.mxu0 0.0
    %v3051 = vand.u32 %v931, 4294901760
    %3052 = vmatpush1.msra.mxu0 %v3051
    %3053 = vmatprep.subr.mxu0 0.0
    %v3054 = vand.u32 %v930, 4294901760
    %3055 = vmatpush1.msra.mxu0 %v3054
    %3056 = vmatprep.subr.mxu0 0.0
    %v3057 = vand.u32 %v929, 4294901760
    %3058 = vmatpush1.msra.mxu0 %v3057
    %3059 = vmatprep.subr.mxu0 0.0
    %v3060 = vand.u32 %v928, 4294901760
    %3061 = vmatpush1.msra.mxu0 %v3060
    %3062 = vmatprep.subr.mxu0 0.0
    %3063 = vmatpush2.msra.mxu0 0.0
    %3064 = vmatprep.subr.mxu0 0.0
    %3065 = vmatpush2.msra.mxu0 0.0
    %3066 = vmatprep.subr.mxu0 0.0
    %3067 = vmatpush2.msra.mxu0 0.0
    %3068 = vmatprep.subr.mxu0 0.0
    %3069 = vmatpush2.msra.mxu0 0.0
    %3070 = vmatprep.subr.mxu0 0.0
    %3071 = vmatpush2.msra.mxu0 0.0
    %3072 = vmatprep.subr.mxu0 0.0
    %3073 = vmatpush2.msra.mxu0 0.0
    %3074 = vmatprep.subr.mxu0 0.0
    %3075 = vmatpush2.msra.mxu0 0.0
    %3076 = vmatprep.subr.mxu0 0.0
    %3077 = vmatpush2.msra.mxu0 0.0
    %3078 = vmatprep.subr.mxu0 0.0
    %3079 = vmatpush2.msra.mxu0 0.0
    %3080 = vmatprep.subr.mxu0 0.0
    %3081 = vmatpush2.msra.mxu0 0.0
    %3082 = vmatprep.subr.mxu0 0.0
    %3083 = vmatpush2.msra.mxu0 0.0
    %3084 = vmatprep.subr.mxu0 0.0
    %3085 = vmatpush2.msra.mxu0 0.0
    %3086 = vmatprep.subr.mxu0 0.0
    %3087 = vmatpush2.msra.mxu0 0.0
    %3088 = vmatprep.subr.mxu0 0.0
    %3089 = vmatpush2.msra.mxu0 0.0
    %3090 = vmatprep.subr.mxu0 0.0
    %3091 = vmatpush2.msra.mxu0 0.0
    %3092 = vmatprep.subr.mxu0 0.0
    %3093 = vmatpush2.msra.mxu0 0.0
    %3094 = vmatprep.mubr.f32.mxu0 0.0
    %v3095 = vand.u32 %v3024, 4294901760
    %v3096 = vsub.f32 %v3024, %v3095
    %v3097 = vand.u32 %v3096, 4294901760
    %v3098 = vsub.f32 %v3096, %v3097
    %v3099 = vand.u32 %v3098, 4294901760
    %3100 = vmatmul.mubr.f32.gmra.mxu0 %v3099
    %v3101 = vpop.f32.mrf.mxu0
    %v3102 = vadd.f32 0.0, %v3101
    %v3103 = vpop.f32.mrf.mxu0
    %3104 = vdwg.mxu0
    %3105 = vmatprep.subr.mxu0 0.0
    %3106 = vmatpush1.msra.mxu0 0.0
    %3107 = vmatprep.subr.mxu0 0.0
    %3108 = vmatpush1.msra.mxu0 0.0
    %3109 = vmatprep.subr.mxu0 0.0
    %3110 = vmatpush1.msra.mxu0 0.0
    %3111 = vmatprep.subr.mxu0 0.0
    %3112 = vmatpush1.msra.mxu0 0.0
    %3113 = vmatprep.subr.mxu0 0.0
    %3114 = vmatpush1.msra.mxu0 0.0
    %3115 = vmatprep.subr.mxu0 0.0
    %3116 = vmatpush1.msra.mxu0 0.0
    %3117 = vmatprep.subr.mxu0 0.0
    %3118 = vmatpush1.msra.mxu0 0.0
    %3119 = vmatprep.subr.mxu0 0.0
    %3120 = vmatpush1.msra.mxu0 0.0
    %3121 = vmatprep.subr.mxu0 0.0
    %3122 = vmatpush1.msra.mxu0 0.0
    %3123 = vmatprep.subr.mxu0 0.0
    %3124 = vmatpush1.msra.mxu0 0.0
    %3125 = vmatprep.subr.mxu0 0.0
    %3126 = vmatpush1.msra.mxu0 0.0
    %3127 = vmatprep.subr.mxu0 0.0
    %3128 = vmatpush1.msra.mxu0 0.0
    %3129 = vmatprep.subr.mxu0 0.0
    %v3130 = vand.u32 %v931, 4294901760
    %v3131 = vsub.f32 %v931, %v3130
    %v3132 = vand.u32 %v3131, 4294901760
    %v3133 = vsub.f32 %v3131, %v3132
    %v3134 = vand.u32 %v3133, 4294901760
    %3135 = vmatpush1.msra.mxu0 %v3134
    %3136 = vmatprep.subr.mxu0 0.0
    %v3137 = vand.u32 %v930, 4294901760
    %v3138 = vsub.f32 %v930, %v3137
    %v3139 = vand.u32 %v3138, 4294901760
    %v3140 = vsub.f32 %v3138, %v3139
    %v3141 = vand.u32 %v3140, 4294901760
    %3142 = vmatpush1.msra.mxu0 %v3141
    %3143 = vmatprep.subr.mxu0 0.0
    %v3144 = vand.u32 %v929, 4294901760
    %v3145 = vsub.f32 %v929, %v3144
    %v3146 = vand.u32 %v3145, 4294901760
    %v3147 = vsub.f32 %v3145, %v3146
    %v3148 = vand.u32 %v3147, 4294901760
    %3149 = vmatpush1.msra.mxu0 %v3148
    %3150 = vmatprep.subr.mxu0 0.0
    %v3151 = vand.u32 %v928, 4294901760
    %v3152 = vsub.f32 %v928, %v3151
    %v3153 = vand.u32 %v3152, 4294901760
    %v3154 = vsub.f32 %v3152, %v3153
    %v3155 = vand.u32 %v3154, 4294901760
    %3156 = vmatpush1.msra.mxu0 %v3155
    %3157 = vmatprep.subr.mxu0 0.0
    %3158 = vmatpush2.msra.mxu0 0.0
    %3159 = vmatprep.subr.mxu0 0.0
    %3160 = vmatpush2.msra.mxu0 0.0
    %3161 = vmatprep.subr.mxu0 0.0
    %3162 = vmatpush2.msra.mxu0 0.0
    %3163 = vmatprep.subr.mxu0 0.0
    %3164 = vmatpush2.msra.mxu0 0.0
    %3165 = vmatprep.subr.mxu0 0.0
    %3166 = vmatpush2.msra.mxu0 0.0
    %3167 = vmatprep.subr.mxu0 0.0
    %3168 = vmatpush2.msra.mxu0 0.0
    %3169 = vmatprep.subr.mxu0 0.0
    %3170 = vmatpush2.msra.mxu0 0.0
    %3171 = vmatprep.subr.mxu0 0.0
    %3172 = vmatpush2.msra.mxu0 0.0
    %3173 = vmatprep.subr.mxu0 0.0
    %3174 = vmatpush2.msra.mxu0 0.0
    %3175 = vmatprep.subr.mxu0 0.0
    %3176 = vmatpush2.msra.mxu0 0.0
    %3177 = vmatprep.subr.mxu0 0.0
    %3178 = vmatpush2.msra.mxu0 0.0
    %3179 = vmatprep.subr.mxu0 0.0
    %3180 = vmatpush2.msra.mxu0 0.0
    %3181 = vmatprep.subr.mxu0 0.0
    %3182 = vmatpush2.msra.mxu0 0.0
    %3183 = vmatprep.subr.mxu0 0.0
    %3184 = vmatpush2.msra.mxu0 0.0
    %3185 = vmatprep.subr.mxu0 0.0
    %3186 = vmatpush2.msra.mxu0 0.0
    %3187 = vmatprep.subr.mxu0 0.0
    %3188 = vmatpush2.msra.mxu0 0.0
    %3189 = vmatprep.mubr.f32.mxu0 0.0
    %v3190 = vand.u32 %v3024, 4294901760
    %3191 = vmatmul.mubr.f32.gmra.mxu0 %v3190
    %v3192 = vpop.f32.mrf.mxu0
    %v3193 = vadd.f32 %v3102, %v3192
    %v3194 = vpop.f32.mrf.mxu0
    %3195 = vdwg.mxu0
    %3196 = vmatprep.subr.mxu0 0.0
    %3197 = vmatpush1.msra.mxu0 0.0
    %3198 = vmatprep.subr.mxu0 0.0
    %3199 = vmatpush1.msra.mxu0 0.0
    %3200 = vmatprep.subr.mxu0 0.0
    %3201 = vmatpush1.msra.mxu0 0.0
    %3202 = vmatprep.subr.mxu0 0.0
    %3203 = vmatpush1.msra.mxu0 0.0
    %3204 = vmatprep.subr.mxu0 0.0
    %3205 = vmatpush1.msra.mxu0 0.0
    %3206 = vmatprep.subr.mxu0 0.0
    %3207 = vmatpush1.msra.mxu0 0.0
    %3208 = vmatprep.subr.mxu0 0.0
    %3209 = vmatpush1.msra.mxu0 0.0
    %3210 = vmatprep.subr.mxu0 0.0
    %3211 = vmatpush1.msra.mxu0 0.0
    %3212 = vmatprep.subr.mxu0 0.0
    %3213 = vmatpush1.msra.mxu0 0.0
    %3214 = vmatprep.subr.mxu0 0.0
    %3215 = vmatpush1.msra.mxu0 0.0
    %3216 = vmatprep.subr.mxu0 0.0
    %3217 = vmatpush1.msra.mxu0 0.0
    %3218 = vmatprep.subr.mxu0 0.0
    %3219 = vmatpush1.msra.mxu0 0.0
    %3220 = vmatprep.subr.mxu0 0.0
    %v3221 = vand.u32 %v931, 4294901760
    %v3222 = vsub.f32 %v931, %v3221
    %3223 = vmatpush1.msra.mxu0 %v3222
    %3224 = vmatprep.subr.mxu0 0.0
    %v3225 = vand.u32 %v930, 4294901760
    %v3226 = vsub.f32 %v930, %v3225
    %3227 = vmatpush1.msra.mxu0 %v3226
    %3228 = vmatprep.subr.mxu0 0.0
    %v3229 = vand.u32 %v929, 4294901760
    %v3230 = vsub.f32 %v929, %v3229
    %3231 = vmatpush1.msra.mxu0 %v3230
    %3232 = vmatprep.subr.mxu0 0.0
    %v3233 = vand.u32 %v928, 4294901760
    %v3234 = vsub.f32 %v928, %v3233
    %3235 = vmatpush1.msra.mxu0 %v3234
    %3236 = vmatprep.subr.mxu0 0.0
    %3237 = vmatpush2.msra.mxu0 0.0
    %3238 = vmatprep.subr.mxu0 0.0
    %3239 = vmatpush2.msra.mxu0 0.0
    %3240 = vmatprep.subr.mxu0 0.0
    %3241 = vmatpush2.msra.mxu0 0.0
    %3242 = vmatprep.subr.mxu0 0.0
    %3243 = vmatpush2.msra.mxu0 0.0
    %3244 = vmatprep.subr.mxu0 0.0
    %3245 = vmatpush2.msra.mxu0 0.0
    %3246 = vmatprep.subr.mxu0 0.0
    %3247 = vmatpush2.msra.mxu0 0.0
    %3248 = vmatprep.subr.mxu0 0.0
    %3249 = vmatpush2.msra.mxu0 0.0
    %3250 = vmatprep.subr.mxu0 0.0
    %3251 = vmatpush2.msra.mxu0 0.0
    %3252 = vmatprep.subr.mxu0 0.0
    %3253 = vmatpush2.msra.mxu0 0.0
    %3254 = vmatprep.subr.mxu0 0.0
    %3255 = vmatpush2.msra.mxu0 0.0
    %3256 = vmatprep.subr.mxu0 0.0
    %3257 = vmatpush2.msra.mxu0 0.0
    %3258 = vmatprep.subr.mxu0 0.0
    %3259 = vmatpush2.msra.mxu0 0.0
    %3260 = vmatprep.subr.mxu0 0.0
    %3261 = vmatpush2.msra.mxu0 0.0
    %3262 = vmatprep.subr.mxu0 0.0
    %3263 = vmatpush2.msra.mxu0 0.0
    %3264 = vmatprep.subr.mxu0 0.0
    %3265 = vmatpush2.msra.mxu0 0.0
    %3266 = vmatprep.subr.mxu0 0.0
    %3267 = vmatpush2.msra.mxu0 0.0
    %3268 = vmatprep.mubr.f32.mxu0 0.0
    %v3269 = vand.u32 %v3024, 4294901760
    %v3270 = vsub.f32 %v3024, %v3269
    %3271 = vmatmul.mubr.f32.gmra.mxu0 %v3270
    %v3272 = vpop.f32.mrf.mxu0
    %v3273 = vadd.f32 %v3193, %v3272
    %v3274 = vpop.f32.mrf.mxu0
    %3275 = vdwg.mxu0
    %3276 = vmatprep.subr.mxu0 0.0
    %3277 = vmatpush1.msra.mxu0 0.0
    %3278 = vmatprep.subr.mxu0 0.0
    %3279 = vmatpush1.msra.mxu0 0.0
    %3280 = vmatprep.subr.mxu0 0.0
    %3281 = vmatpush1.msra.mxu0 0.0
    %3282 = vmatprep.subr.mxu0 0.0
    %3283 = vmatpush1.msra.mxu0 0.0
    %3284 = vmatprep.subr.mxu0 0.0
    %3285 = vmatpush1.msra.mxu0 0.0
    %3286 = vmatprep.subr.mxu0 0.0
    %3287 = vmatpush1.msra.mxu0 0.0
    %3288 = vmatprep.subr.mxu0 0.0
    %3289 = vmatpush1.msra.mxu0 0.0
    %3290 = vmatprep.subr.mxu0 0.0
    %3291 = vmatpush1.msra.mxu0 0.0
    %3292 = vmatprep.subr.mxu0 0.0
    %3293 = vmatpush1.msra.mxu0 0.0
    %3294 = vmatprep.subr.mxu0 0.0
    %3295 = vmatpush1.msra.mxu0 0.0
    %3296 = vmatprep.subr.mxu0 0.0
    %3297 = vmatpush1.msra.mxu0 0.0
    %3298 = vmatprep.subr.mxu0 0.0
    %3299 = vmatpush1.msra.mxu0 0.0
    %3300 = vmatprep.subr.mxu0 0.0
    %v3301 = vand.u32 %v931, 4294901760
    %3302 = vmatpush1.msra.mxu0 %v3301
    %3303 = vmatprep.subr.mxu0 0.0
    %v3304 = vand.u32 %v930, 4294901760
    %3305 = vmatpush1.msra.mxu0 %v3304
    %3306 = vmatprep.subr.mxu0 0.0
    %v3307 = vand.u32 %v929, 4294901760
    %3308 = vmatpush1.msra.mxu0 %v3307
    %3309 = vmatprep.subr.mxu0 0.0
    %v3310 = vand.u32 %v928, 4294901760
    %3311 = vmatpush1.msra.mxu0 %v3310
    %3312 = vmatprep.subr.mxu0 0.0
    %3313 = vmatpush2.msra.mxu0 0.0
    %3314 = vmatprep.subr.mxu0 0.0
    %3315 = vmatpush2.msra.mxu0 0.0
    %3316 = vmatprep.subr.mxu0 0.0
    %3317 = vmatpush2.msra.mxu0 0.0
    %3318 = vmatprep.subr.mxu0 0.0
    %3319 = vmatpush2.msra.mxu0 0.0
    %3320 = vmatprep.subr.mxu0 0.0
    %3321 = vmatpush2.msra.mxu0 0.0
    %3322 = vmatprep.subr.mxu0 0.0
    %3323 = vmatpush2.msra.mxu0 0.0
    %3324 = vmatprep.subr.mxu0 0.0
    %3325 = vmatpush2.msra.mxu0 0.0
    %3326 = vmatprep.subr.mxu0 0.0
    %3327 = vmatpush2.msra.mxu0 0.0
    %3328 = vmatprep.subr.mxu0 0.0
    %3329 = vmatpush2.msra.mxu0 0.0
    %3330 = vmatprep.subr.mxu0 0.0
    %3331 = vmatpush2.msra.mxu0 0.0
    %3332 = vmatprep.subr.mxu0 0.0
    %3333 = vmatpush2.msra.mxu0 0.0
    %3334 = vmatprep.subr.mxu0 0.0
    %3335 = vmatpush2.msra.mxu0 0.0
    %3336 = vmatprep.subr.mxu0 0.0
    %3337 = vmatpush2.msra.mxu0 0.0
    %3338 = vmatprep.subr.mxu0 0.0
    %3339 = vmatpush2.msra.mxu0 0.0
    %3340 = vmatprep.subr.mxu0 0.0
    %3341 = vmatpush2.msra.mxu0 0.0
    %3342 = vmatprep.subr.mxu0 0.0
    %3343 = vmatpush2.msra.mxu0 0.0
    %3344 = vmatprep.mubr.f32.mxu0 0.0
    %v3345 = vand.u32 %v3024, 4294901760
    %v3346 = vsub.f32 %v3024, %v3345
    %v3347 = vand.u32 %v3346, 4294901760
    %3348 = vmatmul.mubr.f32.gmra.mxu0 %v3347
    %v3349 = vpop.f32.mrf.mxu0
    %v3350 = vadd.f32 %v3273, %v3349
    %v3351 = vpop.f32.mrf.mxu0
    %3352 = vdwg.mxu0
    %3353 = vmatprep.subr.mxu0 0.0
    %3354 = vmatpush1.msra.mxu0 0.0
    %3355 = vmatprep.subr.mxu0 0.0
    %3356 = vmatpush1.msra.mxu0 0.0
    %3357 = vmatprep.subr.mxu0 0.0
    %3358 = vmatpush1.msra.mxu0 0.0
    %3359 = vmatprep.subr.mxu0 0.0
    %3360 = vmatpush1.msra.mxu0 0.0
    %3361 = vmatprep.subr.mxu0 0.0
    %3362 = vmatpush1.msra.mxu0 0.0
    %3363 = vmatprep.subr.mxu0 0.0
    %3364 = vmatpush1.msra.mxu0 0.0
    %3365 = vmatprep.subr.mxu0 0.0
    %3366 = vmatpush1.msra.mxu0 0.0
    %3367 = vmatprep.subr.mxu0 0.0
    %3368 = vmatpush1.msra.mxu0 0.0
    %3369 = vmatprep.subr.mxu0 0.0
    %3370 = vmatpush1.msra.mxu0 0.0
    %3371 = vmatprep.subr.mxu0 0.0
    %3372 = vmatpush1.msra.mxu0 0.0
    %3373 = vmatprep.subr.mxu0 0.0
    %3374 = vmatpush1.msra.mxu0 0.0
    %3375 = vmatprep.subr.mxu0 0.0
    %3376 = vmatpush1.msra.mxu0 0.0
    %3377 = vmatprep.subr.mxu0 0.0
    %v3378 = vand.u32 %v931, 4294901760
    %v3379 = vsub.f32 %v931, %v3378
    %v3380 = vand.u32 %v3379, 4294901760
    %3381 = vmatpush1.msra.mxu0 %v3380
    %3382 = vmatprep.subr.mxu0 0.0
    %v3383 = vand.u32 %v930, 4294901760
    %v3384 = vsub.f32 %v930, %v3383
    %v3385 = vand.u32 %v3384, 4294901760
    %3386 = vmatpush1.msra.mxu0 %v3385
    %3387 = vmatprep.subr.mxu0 0.0
    %v3388 = vand.u32 %v929, 4294901760
    %v3389 = vsub.f32 %v929, %v3388
    %v3390 = vand.u32 %v3389, 4294901760
    %3391 = vmatpush1.msra.mxu0 %v3390
    %3392 = vmatprep.subr.mxu0 0.0
    %v3393 = vand.u32 %v928, 4294901760
    %v3394 = vsub.f32 %v928, %v3393
    %v3395 = vand.u32 %v3394, 4294901760
    %3396 = vmatpush1.msra.mxu0 %v3395
    %3397 = vmatprep.subr.mxu0 0.0
    %3398 = vmatpush2.msra.mxu0 0.0
    %3399 = vmatprep.subr.mxu0 0.0
    %3400 = vmatpush2.msra.mxu0 0.0
    %3401 = vmatprep.subr.mxu0 0.0
    %3402 = vmatpush2.msra.mxu0 0.0
    %3403 = vmatprep.subr.mxu0 0.0
    %3404 = vmatpush2.msra.mxu0 0.0
    %3405 = vmatprep.subr.mxu0 0.0
    %3406 = vmatpush2.msra.mxu0 0.0
    %3407 = vmatprep.subr.mxu0 0.0
    %3408 = vmatpush2.msra.mxu0 0.0
    %3409 = vmatprep.subr.mxu0 0.0
    %3410 = vmatpush2.msra.mxu0 0.0
    %3411 = vmatprep.subr.mxu0 0.0
    %3412 = vmatpush2.msra.mxu0 0.0
    %3413 = vmatprep.subr.mxu0 0.0
    %3414 = vmatpush2.msra.mxu0 0.0
    %3415 = vmatprep.subr.mxu0 0.0
    %3416 = vmatpush2.msra.mxu0 0.0
    %3417 = vmatprep.subr.mxu0 0.0
    %3418 = vmatpush2.msra.mxu0 0.0
    %3419 = vmatprep.subr.mxu0 0.0
    %3420 = vmatpush2.msra.mxu0 0.0
    %3421 = vmatprep.subr.mxu0 0.0
    %3422 = vmatpush2.msra.mxu0 0.0
    %3423 = vmatprep.subr.mxu0 0.0
    %3424 = vmatpush2.msra.mxu0 0.0
    %3425 = vmatprep.subr.mxu0 0.0
    %3426 = vmatpush2.msra.mxu0 0.0
    %3427 = vmatprep.subr.mxu0 0.0
    %3428 = vmatpush2.msra.mxu0 0.0
    %3429 = vmatprep.mubr.f32.mxu0 0.0
    %v3430 = vand.u32 %v3024, 4294901760
    %3431 = vmatmul.mubr.f32.gmra.mxu0 %v3430
    %v3432 = vpop.f32.mrf.mxu0
    %v3433 = vadd.f32 %v3350, %v3432
    %v3434 = vpop.f32.mrf.mxu0
    %3435 = vdwg.mxu0
    %3436 = vmatprep.subr.mxu0 0.0
    %3437 = vmatpush1.msra.mxu0 0.0
    %3438 = vmatprep.subr.mxu0 0.0
    %3439 = vmatpush1.msra.mxu0 0.0
    %3440 = vmatprep.subr.mxu0 0.0
    %3441 = vmatpush1.msra.mxu0 0.0
    %3442 = vmatprep.subr.mxu0 0.0
    %3443 = vmatpush1.msra.mxu0 0.0
    %3444 = vmatprep.subr.mxu0 0.0
    %3445 = vmatpush1.msra.mxu0 0.0
    %3446 = vmatprep.subr.mxu0 0.0
    %3447 = vmatpush1.msra.mxu0 0.0
    %3448 = vmatprep.subr.mxu0 0.0
    %3449 = vmatpush1.msra.mxu0 0.0
    %3450 = vmatprep.subr.mxu0 0.0
    %3451 = vmatpush1.msra.mxu0 0.0
    %3452 = vmatprep.subr.mxu0 0.0
    %3453 = vmatpush1.msra.mxu0 0.0
    %3454 = vmatprep.subr.mxu0 0.0
    %3455 = vmatpush1.msra.mxu0 0.0
    %3456 = vmatprep.subr.mxu0 0.0
    %3457 = vmatpush1.msra.mxu0 0.0
    %3458 = vmatprep.subr.mxu0 0.0
    %3459 = vmatpush1.msra.mxu0 0.0
    %3460 = vmatprep.subr.mxu0 0.0
    %v3461 = vand.u32 %v931, 4294901760
    %3462 = vmatpush1.msra.mxu0 %v3461
    %3463 = vmatprep.subr.mxu0 0.0
    %v3464 = vand.u32 %v930, 4294901760
    %3465 = vmatpush1.msra.mxu0 %v3464
    %3466 = vmatprep.subr.mxu0 0.0
    %v3467 = vand.u32 %v929, 4294901760
    %3468 = vmatpush1.msra.mxu0 %v3467
    %3469 = vmatprep.subr.mxu0 0.0
    %v3470 = vand.u32 %v928, 4294901760
    %3471 = vmatpush1.msra.mxu0 %v3470
    %3472 = vmatprep.subr.mxu0 0.0
    %3473 = vmatpush2.msra.mxu0 0.0
    %3474 = vmatprep.subr.mxu0 0.0
    %3475 = vmatpush2.msra.mxu0 0.0
    %3476 = vmatprep.subr.mxu0 0.0
    %3477 = vmatpush2.msra.mxu0 0.0
    %3478 = vmatprep.subr.mxu0 0.0
    %3479 = vmatpush2.msra.mxu0 0.0
    %3480 = vmatprep.subr.mxu0 0.0
    %3481 = vmatpush2.msra.mxu0 0.0
    %3482 = vmatprep.subr.mxu0 0.0
    %3483 = vmatpush2.msra.mxu0 0.0
    %3484 = vmatprep.subr.mxu0 0.0
    %3485 = vmatpush2.msra.mxu0 0.0
    %3486 = vmatprep.subr.mxu0 0.0
    %3487 = vmatpush2.msra.mxu0 0.0
    %3488 = vmatprep.subr.mxu0 0.0
    %3489 = vmatpush2.msra.mxu0 0.0
    %3490 = vmatprep.subr.mxu0 0.0
    %3491 = vmatpush2.msra.mxu0 0.0
    %3492 = vmatprep.subr.mxu0 0.0
    %3493 = vmatpush2.msra.mxu0 0.0
    %3494 = vmatprep.subr.mxu0 0.0
    %3495 = vmatpush2.msra.mxu0 0.0
    %3496 = vmatprep.subr.mxu0 0.0
    %3497 = vmatpush2.msra.mxu0 0.0
    %3498 = vmatprep.subr.mxu0 0.0
    %3499 = vmatpush2.msra.mxu0 0.0
    %3500 = vmatprep.subr.mxu0 0.0
    %3501 = vmatpush2.msra.mxu0 0.0
    %3502 = vmatprep.subr.mxu0 0.0
    %3503 = vmatpush2.msra.mxu0 0.0
    %3504 = vmatprep.mubr.f32.mxu0 0.0
    %v3505 = vand.u32 %v3024, 4294901760
    %3506 = vmatmul.mubr.f32.gmra.mxu0 %v3505
    %v3507 = vpop.f32.mrf.mxu0
    %v3508 = vadd.f32 %v3433, %v3507
    %v3509 = vpop.f32.mrf.mxu0
    %3510 = vdwg.mxu0
    %v3511 = vadd.f32 %v3020, %v3508
    %v3512 = vxor.u32 %v3511, 2147483648
    %v3513 = vmul.f32 %v3512, 1.442695
    %v3514 = vpow.pop %v3513
    %v3515 = vadd.f32 %v3514, 1.0
    %v3516 = vrcp.pop %v3515
    %v3517 = vmul.f32 1.0, %v3516
    %v3518 = vtanh.pop %v3511
    %v3519 = vmul.f32 %v3517, %v3013
    %3521 = vrot.lane.b32.xlu0 %v3518, 64
    %v3522 = vpop.permute.xlu0 %3521
    %v3524 = vmul.f32 %v3517, %v3522
    %3526 = vrot.lane.b32.xlu0 %v3524, 32
    %v3527 = vpop.permute.xlu0 %3526
    %v3529 = vadd.f32 %v3519, %v3527
    %v3530 = vtanh.pop %v3529
    %3532 = vrot.lane.b32.xlu0 %v3530, 64
    %v3533 = vpop.permute.xlu0 %3532
    %v3535 = vmul.f32 %v3517, %v3533
    %v3536 = vld [vmem:[#allocation2 + $0x60] sm:$0xff]
    %3538 = vrot.lane.b32.xlu0 %v3535, 32
    %v3539 = vpop.permute.xlu0 %3538
    %v3540 = vsel %vm955, %v3539, 0
    %3542 = vmatprep.subr.mxu0 0.0
    %3543 = vmatpush1.msra.mxu0 0.0
    %3544 = vmatprep.subr.mxu0 0.0
    %3545 = vmatpush1.msra.mxu0 0.0
    %3546 = vmatprep.subr.mxu0 0.0
    %3547 = vmatpush1.msra.mxu0 0.0
    %3548 = vmatprep.subr.mxu0 0.0
    %3549 = vmatpush1.msra.mxu0 0.0
    %3550 = vmatprep.subr.mxu0 0.0
    %3551 = vmatpush1.msra.mxu0 0.0
    %3552 = vmatprep.subr.mxu0 0.0
    %3553 = vmatpush1.msra.mxu0 0.0
    %3554 = vmatprep.subr.mxu0 0.0
    %3555 = vmatpush1.msra.mxu0 0.0
    %3556 = vmatprep.subr.mxu0 0.0
    %3557 = vmatpush1.msra.mxu0 0.0
    %3558 = vmatprep.subr.mxu0 0.0
    %3559 = vmatpush1.msra.mxu0 0.0
    %3560 = vmatprep.subr.mxu0 0.0
    %3561 = vmatpush1.msra.mxu0 0.0
    %3562 = vmatprep.subr.mxu0 0.0
    %3563 = vmatpush1.msra.mxu0 0.0
    %3564 = vmatprep.subr.mxu0 0.0
    %3565 = vmatpush1.msra.mxu0 0.0
    %3566 = vmatprep.subr.mxu0 0.0
    %v3567 = vand.u32 %v931, 4294901760
    %3568 = vmatpush1.msra.mxu0 %v3567
    %3569 = vmatprep.subr.mxu0 0.0
    %v3570 = vand.u32 %v930, 4294901760
    %3571 = vmatpush1.msra.mxu0 %v3570
    %3572 = vmatprep.subr.mxu0 0.0
    %v3573 = vand.u32 %v929, 4294901760
    %3574 = vmatpush1.msra.mxu0 %v3573
    %3575 = vmatprep.subr.mxu0 0.0
    %v3576 = vand.u32 %v928, 4294901760
    %3577 = vmatpush1.msra.mxu0 %v3576
    %3578 = vmatprep.subr.mxu0 0.0
    %3579 = vmatpush2.msra.mxu0 0.0
    %3580 = vmatprep.subr.mxu0 0.0
    %3581 = vmatpush2.msra.mxu0 0.0
    %3582 = vmatprep.subr.mxu0 0.0
    %3583 = vmatpush2.msra.mxu0 0.0
    %3584 = vmatprep.subr.mxu0 0.0
    %3585 = vmatpush2.msra.mxu0 0.0
    %3586 = vmatprep.subr.mxu0 0.0
    %3587 = vmatpush2.msra.mxu0 0.0
    %3588 = vmatprep.subr.mxu0 0.0
    %3589 = vmatpush2.msra.mxu0 0.0
    %3590 = vmatprep.subr.mxu0 0.0
    %3591 = vmatpush2.msra.mxu0 0.0
    %3592 = vmatprep.subr.mxu0 0.0
    %3593 = vmatpush2.msra.mxu0 0.0
    %3594 = vmatprep.subr.mxu0 0.0
    %3595 = vmatpush2.msra.mxu0 0.0
    %3596 = vmatprep.subr.mxu0 0.0
    %3597 = vmatpush2.msra.mxu0 0.0
    %3598 = vmatprep.subr.mxu0 0.0
    %3599 = vmatpush2.msra.mxu0 0.0
    %3600 = vmatprep.subr.mxu0 0.0
    %3601 = vmatpush2.msra.mxu0 0.0
    %3602 = vmatprep.subr.mxu0 0.0
    %3603 = vmatpush2.msra.mxu0 0.0
    %3604 = vmatprep.subr.mxu0 0.0
    %3605 = vmatpush2.msra.mxu0 0.0
    %3606 = vmatprep.subr.mxu0 0.0
    %3607 = vmatpush2.msra.mxu0 0.0
    %3608 = vmatprep.subr.mxu0 0.0
    %3609 = vmatpush2.msra.mxu0 0.0
    %3610 = vmatprep.mubr.f32.mxu0 0.0
    %v3611 = vand.u32 %v3540, 4294901760
    %v3612 = vsub.f32 %v3540, %v3611
    %v3613 = vand.u32 %v3612, 4294901760
    %v3614 = vsub.f32 %v3612, %v3613
    %v3615 = vand.u32 %v3614, 4294901760
    %3616 = vmatmul.mubr.f32.gmra.mxu0 %v3615
    %v3617 = vpop.f32.mrf.mxu0
    %v3618 = vadd.f32 0.0, %v3617
    %v3619 = vpop.f32.mrf.mxu0
    %3620 = vdwg.mxu0
    %3621 = vmatprep.subr.mxu0 0.0
    %3622 = vmatpush1.msra.mxu0 0.0
    %3623 = vmatprep.subr.mxu0 0.0
    %3624 = vmatpush1.msra.mxu0 0.0
    %3625 = vmatprep.subr.mxu0 0.0
    %3626 = vmatpush1.msra.mxu0 0.0
    %3627 = vmatprep.subr.mxu0 0.0
    %3628 = vmatpush1.msra.mxu0 0.0
    %3629 = vmatprep.subr.mxu0 0.0
    %3630 = vmatpush1.msra.mxu0 0.0
    %3631 = vmatprep.subr.mxu0 0.0
    %3632 = vmatpush1.msra.mxu0 0.0
    %3633 = vmatprep.subr.mxu0 0.0
    %3634 = vmatpush1.msra.mxu0 0.0
    %3635 = vmatprep.subr.mxu0 0.0
    %3636 = vmatpush1.msra.mxu0 0.0
    %3637 = vmatprep.subr.mxu0 0.0
    %3638 = vmatpush1.msra.mxu0 0.0
    %3639 = vmatprep.subr.mxu0 0.0
    %3640 = vmatpush1.msra.mxu0 0.0
    %3641 = vmatprep.subr.mxu0 0.0
    %3642 = vmatpush1.msra.mxu0 0.0
    %3643 = vmatprep.subr.mxu0 0.0
    %3644 = vmatpush1.msra.mxu0 0.0
    %3645 = vmatprep.subr.mxu0 0.0
    %v3646 = vand.u32 %v931, 4294901760
    %v3647 = vsub.f32 %v931, %v3646
    %v3648 = vand.u32 %v3647, 4294901760
    %v3649 = vsub.f32 %v3647, %v3648
    %v3650 = vand.u32 %v3649, 4294901760
    %3651 = vmatpush1.msra.mxu0 %v3650
    %3652 = vmatprep.subr.mxu0 0.0
    %v3653 = vand.u32 %v930, 4294901760
    %v3654 = vsub.f32 %v930, %v3653
    %v3655 = vand.u32 %v3654, 4294901760
    %v3656 = vsub.f32 %v3654, %v3655
    %v3657 = vand.u32 %v3656, 4294901760
    %3658 = vmatpush1.msra.mxu0 %v3657
    %3659 = vmatprep.subr.mxu0 0.0
    %v3660 = vand.u32 %v929, 4294901760
    %v3661 = vsub.f32 %v929, %v3660
    %v3662 = vand.u32 %v3661, 4294901760
    %v3663 = vsub.f32 %v3661, %v3662
    %v3664 = vand.u32 %v3663, 4294901760
    %3665 = vmatpush1.msra.mxu0 %v3664
    %3666 = vmatprep.subr.mxu0 0.0
    %v3667 = vand.u32 %v928, 4294901760
    %v3668 = vsub.f32 %v928, %v3667
    %v3669 = vand.u32 %v3668, 4294901760
    %v3670 = vsub.f32 %v3668, %v3669
    %v3671 = vand.u32 %v3670, 4294901760
    %3672 = vmatpush1.msra.mxu0 %v3671
    %3673 = vmatprep.subr.mxu0 0.0
    %3674 = vmatpush2.msra.mxu0 0.0
    %3675 = vmatprep.subr.mxu0 0.0
    %3676 = vmatpush2.msra.mxu0 0.0
    %3677 = vmatprep.subr.mxu0 0.0
    %3678 = vmatpush2.msra.mxu0 0.0
    %3679 = vmatprep.subr.mxu0 0.0
    %3680 = vmatpush2.msra.mxu0 0.0
    %3681 = vmatprep.subr.mxu0 0.0
    %3682 = vmatpush2.msra.mxu0 0.0
    %3683 = vmatprep.subr.mxu0 0.0
    %3684 = vmatpush2.msra.mxu0 0.0
    %3685 = vmatprep.subr.mxu0 0.0
    %3686 = vmatpush2.msra.mxu0 0.0
    %3687 = vmatprep.subr.mxu0 0.0
    %3688 = vmatpush2.msra.mxu0 0.0
    %3689 = vmatprep.subr.mxu0 0.0
    %3690 = vmatpush2.msra.mxu0 0.0
    %3691 = vmatprep.subr.mxu0 0.0
    %3692 = vmatpush2.msra.mxu0 0.0
    %3693 = vmatprep.subr.mxu0 0.0
    %3694 = vmatpush2.msra.mxu0 0.0
    %3695 = vmatprep.subr.mxu0 0.0
    %3696 = vmatpush2.msra.mxu0 0.0
    %3697 = vmatprep.subr.mxu0 0.0
    %3698 = vmatpush2.msra.mxu0 0.0
    %3699 = vmatprep.subr.mxu0 0.0
    %3700 = vmatpush2.msra.mxu0 0.0
    %3701 = vmatprep.subr.mxu0 0.0
    %3702 = vmatpush2.msra.mxu0 0.0
    %3703 = vmatprep.subr.mxu0 0.0
    %3704 = vmatpush2.msra.mxu0 0.0
    %3705 = vmatprep.mubr.f32.mxu0 0.0
    %v3706 = vand.u32 %v3540, 4294901760
    %3707 = vmatmul.mubr.f32.gmra.mxu0 %v3706
    %v3708 = vpop.f32.mrf.mxu0
    %v3709 = vadd.f32 %v3618, %v3708
    %v3710 = vpop.f32.mrf.mxu0
    %3711 = vdwg.mxu0
    %3712 = vmatprep.subr.mxu0 0.0
    %3713 = vmatpush1.msra.mxu0 0.0
    %3714 = vmatprep.subr.mxu0 0.0
    %3715 = vmatpush1.msra.mxu0 0.0
    %3716 = vmatprep.subr.mxu0 0.0
    %3717 = vmatpush1.msra.mxu0 0.0
    %3718 = vmatprep.subr.mxu0 0.0
    %3719 = vmatpush1.msra.mxu0 0.0
    %3720 = vmatprep.subr.mxu0 0.0
    %3721 = vmatpush1.msra.mxu0 0.0
    %3722 = vmatprep.subr.mxu0 0.0
    %3723 = vmatpush1.msra.mxu0 0.0
    %3724 = vmatprep.subr.mxu0 0.0
    %3725 = vmatpush1.msra.mxu0 0.0
    %3726 = vmatprep.subr.mxu0 0.0
    %3727 = vmatpush1.msra.mxu0 0.0
    %3728 = vmatprep.subr.mxu0 0.0
    %3729 = vmatpush1.msra.mxu0 0.0
    %3730 = vmatprep.subr.mxu0 0.0
    %3731 = vmatpush1.msra.mxu0 0.0
    %3732 = vmatprep.subr.mxu0 0.0
    %3733 = vmatpush1.msra.mxu0 0.0
    %3734 = vmatprep.subr.mxu0 0.0
    %3735 = vmatpush1.msra.mxu0 0.0
    %3736 = vmatprep.subr.mxu0 0.0
    %v3737 = vand.u32 %v931, 4294901760
    %v3738 = vsub.f32 %v931, %v3737
    %3739 = vmatpush1.msra.mxu0 %v3738
    %3740 = vmatprep.subr.mxu0 0.0
    %v3741 = vand.u32 %v930, 4294901760
    %v3742 = vsub.f32 %v930, %v3741
    %3743 = vmatpush1.msra.mxu0 %v3742
    %3744 = vmatprep.subr.mxu0 0.0
    %v3745 = vand.u32 %v929, 4294901760
    %v3746 = vsub.f32 %v929, %v3745
    %3747 = vmatpush1.msra.mxu0 %v3746
    %3748 = vmatprep.subr.mxu0 0.0
    %v3749 = vand.u32 %v928, 4294901760
    %v3750 = vsub.f32 %v928, %v3749
    %3751 = vmatpush1.msra.mxu0 %v3750
    %3752 = vmatprep.subr.mxu0 0.0
    %3753 = vmatpush2.msra.mxu0 0.0
    %3754 = vmatprep.subr.mxu0 0.0
    %3755 = vmatpush2.msra.mxu0 0.0
    %3756 = vmatprep.subr.mxu0 0.0
    %3757 = vmatpush2.msra.mxu0 0.0
    %3758 = vmatprep.subr.mxu0 0.0
    %3759 = vmatpush2.msra.mxu0 0.0
    %3760 = vmatprep.subr.mxu0 0.0
    %3761 = vmatpush2.msra.mxu0 0.0
    %3762 = vmatprep.subr.mxu0 0.0
    %3763 = vmatpush2.msra.mxu0 0.0
    %3764 = vmatprep.subr.mxu0 0.0
    %3765 = vmatpush2.msra.mxu0 0.0
    %3766 = vmatprep.subr.mxu0 0.0
    %3767 = vmatpush2.msra.mxu0 0.0
    %3768 = vmatprep.subr.mxu0 0.0
    %3769 = vmatpush2.msra.mxu0 0.0
    %3770 = vmatprep.subr.mxu0 0.0
    %3771 = vmatpush2.msra.mxu0 0.0
    %3772 = vmatprep.subr.mxu0 0.0
    %3773 = vmatpush2.msra.mxu0 0.0
    %3774 = vmatprep.subr.mxu0 0.0
    %3775 = vmatpush2.msra.mxu0 0.0
    %3776 = vmatprep.subr.mxu0 0.0
    %3777 = vmatpush2.msra.mxu0 0.0
    %3778 = vmatprep.subr.mxu0 0.0
    %3779 = vmatpush2.msra.mxu0 0.0
    %3780 = vmatprep.subr.mxu0 0.0
    %3781 = vmatpush2.msra.mxu0 0.0
    %3782 = vmatprep.subr.mxu0 0.0
    %3783 = vmatpush2.msra.mxu0 0.0
    %3784 = vmatprep.mubr.f32.mxu0 0.0
    %v3785 = vand.u32 %v3540, 4294901760
    %v3786 = vsub.f32 %v3540, %v3785
    %3787 = vmatmul.mubr.f32.gmra.mxu0 %v3786
    %v3788 = vpop.f32.mrf.mxu0
    %v3789 = vadd.f32 %v3709, %v3788
    %v3790 = vpop.f32.mrf.mxu0
    %3791 = vdwg.mxu0
    %3792 = vmatprep.subr.mxu0 0.0
    %3793 = vmatpush1.msra.mxu0 0.0
    %3794 = vmatprep.subr.mxu0 0.0
    %3795 = vmatpush1.msra.mxu0 0.0
    %3796 = vmatprep.subr.mxu0 0.0
    %3797 = vmatpush1.msra.mxu0 0.0
    %3798 = vmatprep.subr.mxu0 0.0
    %3799 = vmatpush1.msra.mxu0 0.0
    %3800 = vmatprep.subr.mxu0 0.0
    %3801 = vmatpush1.msra.mxu0 0.0
    %3802 = vmatprep.subr.mxu0 0.0
    %3803 = vmatpush1.msra.mxu0 0.0
    %3804 = vmatprep.subr.mxu0 0.0
    %3805 = vmatpush1.msra.mxu0 0.0
    %3806 = vmatprep.subr.mxu0 0.0
    %3807 = vmatpush1.msra.mxu0 0.0
    %3808 = vmatprep.subr.mxu0 0.0
    %3809 = vmatpush1.msra.mxu0 0.0
    %3810 = vmatprep.subr.mxu0 0.0
    %3811 = vmatpush1.msra.mxu0 0.0
    %3812 = vmatprep.subr.mxu0 0.0
    %3813 = vmatpush1.msra.mxu0 0.0
    %3814 = vmatprep.subr.mxu0 0.0
    %3815 = vmatpush1.msra.mxu0 0.0
    %3816 = vmatprep.subr.mxu0 0.0
    %v3817 = vand.u32 %v931, 4294901760
    %3818 = vmatpush1.msra.mxu0 %v3817
    %3819 = vmatprep.subr.mxu0 0.0
    %v3820 = vand.u32 %v930, 4294901760
    %3821 = vmatpush1.msra.mxu0 %v3820
    %3822 = vmatprep.subr.mxu0 0.0
    %v3823 = vand.u32 %v929, 4294901760
    %3824 = vmatpush1.msra.mxu0 %v3823
    %3825 = vmatprep.subr.mxu0 0.0
    %v3826 = vand.u32 %v928, 4294901760
    %3827 = vmatpush1.msra.mxu0 %v3826
    %3828 = vmatprep.subr.mxu0 0.0
    %3829 = vmatpush2.msra.mxu0 0.0
    %3830 = vmatprep.subr.mxu0 0.0
    %3831 = vmatpush2.msra.mxu0 0.0
    %3832 = vmatprep.subr.mxu0 0.0
    %3833 = vmatpush2.msra.mxu0 0.0
    %3834 = vmatprep.subr.mxu0 0.0
    %3835 = vmatpush2.msra.mxu0 0.0
    %3836 = vmatprep.subr.mxu0 0.0
    %3837 = vmatpush2.msra.mxu0 0.0
    %3838 = vmatprep.subr.mxu0 0.0
    %3839 = vmatpush2.msra.mxu0 0.0
    %3840 = vmatprep.subr.mxu0 0.0
    %3841 = vmatpush2.msra.mxu0 0.0
    %3842 = vmatprep.subr.mxu0 0.0
    %3843 = vmatpush2.msra.mxu0 0.0
    %3844 = vmatprep.subr.mxu0 0.0
    %3845 = vmatpush2.msra.mxu0 0.0
    %3846 = vmatprep.subr.mxu0 0.0
    %3847 = vmatpush2.msra.mxu0 0.0
    %3848 = vmatprep.subr.mxu0 0.0
    %3849 = vmatpush2.msra.mxu0 0.0
    %3850 = vmatprep.subr.mxu0 0.0
    %3851 = vmatpush2.msra.mxu0 0.0
    %3852 = vmatprep.subr.mxu0 0.0
    %3853 = vmatpush2.msra.mxu0 0.0
    %3854 = vmatprep.subr.mxu0 0.0
    %3855 = vmatpush2.msra.mxu0 0.0
    %3856 = vmatprep.subr.mxu0 0.0
    %3857 = vmatpush2.msra.mxu0 0.0
    %3858 = vmatprep.subr.mxu0 0.0
    %3859 = vmatpush2.msra.mxu0 0.0
    %3860 = vmatprep.mubr.f32.mxu0 0.0
    %v3861 = vand.u32 %v3540, 4294901760
    %v3862 = vsub.f32 %v3540, %v3861
    %v3863 = vand.u32 %v3862, 4294901760
    %3864 = vmatmul.mubr.f32.gmra.mxu0 %v3863
    %v3865 = vpop.f32.mrf.mxu0
    %v3866 = vadd.f32 %v3789, %v3865
    %v3867 = vpop.f32.mrf.mxu0
    %3868 = vdwg.mxu0
    %3869 = vmatprep.subr.mxu0 0.0
    %3870 = vmatpush1.msra.mxu0 0.0
    %3871 = vmatprep.subr.mxu0 0.0
    %3872 = vmatpush1.msra.mxu0 0.0
    %3873 = vmatprep.subr.mxu0 0.0
    %3874 = vmatpush1.msra.mxu0 0.0
    %3875 = vmatprep.subr.mxu0 0.0
    %3876 = vmatpush1.msra.mxu0 0.0
    %3877 = vmatprep.subr.mxu0 0.0
    %3878 = vmatpush1.msra.mxu0 0.0
    %3879 = vmatprep.subr.mxu0 0.0
    %3880 = vmatpush1.msra.mxu0 0.0
    %3881 = vmatprep.subr.mxu0 0.0
    %3882 = vmatpush1.msra.mxu0 0.0
    %3883 = vmatprep.subr.mxu0 0.0
    %3884 = vmatpush1.msra.mxu0 0.0
    %3885 = vmatprep.subr.mxu0 0.0
    %3886 = vmatpush1.msra.mxu0 0.0
    %3887 = vmatprep.subr.mxu0 0.0
    %3888 = vmatpush1.msra.mxu0 0.0
    %3889 = vmatprep.subr.mxu0 0.0
    %3890 = vmatpush1.msra.mxu0 0.0
    %3891 = vmatprep.subr.mxu0 0.0
    %3892 = vmatpush1.msra.mxu0 0.0
    %3893 = vmatprep.subr.mxu0 0.0
    %v3894 = vand.u32 %v931, 4294901760
    %v3895 = vsub.f32 %v931, %v3894
    %v3896 = vand.u32 %v3895, 4294901760
    %3897 = vmatpush1.msra.mxu0 %v3896
    %3898 = vmatprep.subr.mxu0 0.0
    %v3899 = vand.u32 %v930, 4294901760
    %v3900 = vsub.f32 %v930, %v3899
    %v3901 = vand.u32 %v3900, 4294901760
    %3902 = vmatpush1.msra.mxu0 %v3901
    %3903 = vmatprep.subr.mxu0 0.0
    %v3904 = vand.u32 %v929, 4294901760
    %v3905 = vsub.f32 %v929, %v3904
    %v3906 = vand.u32 %v3905, 4294901760
    %3907 = vmatpush1.msra.mxu0 %v3906
    %3908 = vmatprep.subr.mxu0 0.0
    %v3909 = vand.u32 %v928, 4294901760
    %v3910 = vsub.f32 %v928, %v3909
    %v3911 = vand.u32 %v3910, 4294901760
    %3912 = vmatpush1.msra.mxu0 %v3911
    %3913 = vmatprep.subr.mxu0 0.0
    %3914 = vmatpush2.msra.mxu0 0.0
    %3915 = vmatprep.subr.mxu0 0.0
    %3916 = vmatpush2.msra.mxu0 0.0
    %3917 = vmatprep.subr.mxu0 0.0
    %3918 = vmatpush2.msra.mxu0 0.0
    %3919 = vmatprep.subr.mxu0 0.0
    %3920 = vmatpush2.msra.mxu0 0.0
    %3921 = vmatprep.subr.mxu0 0.0
    %3922 = vmatpush2.msra.mxu0 0.0
    %3923 = vmatprep.subr.mxu0 0.0
    %3924 = vmatpush2.msra.mxu0 0.0
    %3925 = vmatprep.subr.mxu0 0.0
    %3926 = vmatpush2.msra.mxu0 0.0
    %3927 = vmatprep.subr.mxu0 0.0
    %3928 = vmatpush2.msra.mxu0 0.0
    %3929 = vmatprep.subr.mxu0 0.0
    %3930 = vmatpush2.msra.mxu0 0.0
    %3931 = vmatprep.subr.mxu0 0.0
    %3932 = vmatpush2.msra.mxu0 0.0
    %3933 = vmatprep.subr.mxu0 0.0
    %3934 = vmatpush2.msra.mxu0 0.0
    %3935 = vmatprep.subr.mxu0 0.0
    %3936 = vmatpush2.msra.mxu0 0.0
    %3937 = vmatprep.subr.mxu0 0.0
    %3938 = vmatpush2.msra.mxu0 0.0
    %3939 = vmatprep.subr.mxu0 0.0
    %3940 = vmatpush2.msra.mxu0 0.0
    %3941 = vmatprep.subr.mxu0 0.0
    %3942 = vmatpush2.msra.mxu0 0.0
    %3943 = vmatprep.subr.mxu0 0.0
    %3944 = vmatpush2.msra.mxu0 0.0
    %3945 = vmatprep.mubr.f32.mxu0 0.0
    %v3946 = vand.u32 %v3540, 4294901760
    %3947 = vmatmul.mubr.f32.gmra.mxu0 %v3946
    %v3948 = vpop.f32.mrf.mxu0
    %v3949 = vadd.f32 %v3866, %v3948
    %v3950 = vpop.f32.mrf.mxu0
    %3951 = vdwg.mxu0
    %3952 = vmatprep.subr.mxu0 0.0
    %3953 = vmatpush1.msra.mxu0 0.0
    %3954 = vmatprep.subr.mxu0 0.0
    %3955 = vmatpush1.msra.mxu0 0.0
    %3956 = vmatprep.subr.mxu0 0.0
    %3957 = vmatpush1.msra.mxu0 0.0
    %3958 = vmatprep.subr.mxu0 0.0
    %3959 = vmatpush1.msra.mxu0 0.0
    %3960 = vmatprep.subr.mxu0 0.0
    %3961 = vmatpush1.msra.mxu0 0.0
    %3962 = vmatprep.subr.mxu0 0.0
    %3963 = vmatpush1.msra.mxu0 0.0
    %3964 = vmatprep.subr.mxu0 0.0
    %3965 = vmatpush1.msra.mxu0 0.0
    %3966 = vmatprep.subr.mxu0 0.0
    %3967 = vmatpush1.msra.mxu0 0.0
    %3968 = vmatprep.subr.mxu0 0.0
    %3969 = vmatpush1.msra.mxu0 0.0
    %3970 = vmatprep.subr.mxu0 0.0
    %3971 = vmatpush1.msra.mxu0 0.0
    %3972 = vmatprep.subr.mxu0 0.0
    %3973 = vmatpush1.msra.mxu0 0.0
    %3974 = vmatprep.subr.mxu0 0.0
    %3975 = vmatpush1.msra.mxu0 0.0
    %3976 = vmatprep.subr.mxu0 0.0
    %v3977 = vand.u32 %v931, 4294901760
    %3978 = vmatpush1.msra.mxu0 %v3977
    %3979 = vmatprep.subr.mxu0 0.0
    %v3980 = vand.u32 %v930, 4294901760
    %3981 = vmatpush1.msra.mxu0 %v3980
    %3982 = vmatprep.subr.mxu0 0.0
    %v3983 = vand.u32 %v929, 4294901760
    %3984 = vmatpush1.msra.mxu0 %v3983
    %3985 = vmatprep.subr.mxu0 0.0
    %v3986 = vand.u32 %v928, 4294901760
    %3987 = vmatpush1.msra.mxu0 %v3986
    %3988 = vmatprep.subr.mxu0 0.0
    %3989 = vmatpush2.msra.mxu0 0.0
    %3990 = vmatprep.subr.mxu0 0.0
    %3991 = vmatpush2.msra.mxu0 0.0
    %3992 = vmatprep.subr.mxu0 0.0
    %3993 = vmatpush2.msra.mxu0 0.0
    %3994 = vmatprep.subr.mxu0 0.0
    %3995 = vmatpush2.msra.mxu0 0.0
    %3996 = vmatprep.subr.mxu0 0.0
    %3997 = vmatpush2.msra.mxu0 0.0
    %3998 = vmatprep.subr.mxu0 0.0
    %3999 = vmatpush2.msra.mxu0 0.0
    %4000 = vmatprep.subr.mxu0 0.0
    %4001 = vmatpush2.msra.mxu0 0.0
    %4002 = vmatprep.subr.mxu0 0.0
    %4003 = vmatpush2.msra.mxu0 0.0
    %4004 = vmatprep.subr.mxu0 0.0
    %4005 = vmatpush2.msra.mxu0 0.0
    %4006 = vmatprep.subr.mxu0 0.0
    %4007 = vmatpush2.msra.mxu0 0.0
    %4008 = vmatprep.subr.mxu0 0.0
    %4009 = vmatpush2.msra.mxu0 0.0
    %4010 = vmatprep.subr.mxu0 0.0
    %4011 = vmatpush2.msra.mxu0 0.0
    %4012 = vmatprep.subr.mxu0 0.0
    %4013 = vmatpush2.msra.mxu0 0.0
    %4014 = vmatprep.subr.mxu0 0.0
    %4015 = vmatpush2.msra.mxu0 0.0
    %4016 = vmatprep.subr.mxu0 0.0
    %4017 = vmatpush2.msra.mxu0 0.0
    %4018 = vmatprep.subr.mxu0 0.0
    %4019 = vmatpush2.msra.mxu0 0.0
    %4020 = vmatprep.mubr.f32.mxu0 0.0
    %v4021 = vand.u32 %v3540, 4294901760
    %4022 = vmatmul.mubr.f32.gmra.mxu0 %v4021
    %v4023 = vpop.f32.mrf.mxu0
    %v4024 = vadd.f32 %v3949, %v4023
    %v4025 = vpop.f32.mrf.mxu0
    %4026 = vdwg.mxu0
    %v4027 = vadd.f32 %v3536, %v4024
    %v4028 = vxor.u32 %v4027, 2147483648
    %v4029 = vmul.f32 %v4028, 1.442695
    %v4030 = vpow.pop %v4029
    %v4031 = vadd.f32 %v4030, 1.0
    %v4032 = vrcp.pop %v4031
    %v4033 = vmul.f32 1.0, %v4032
    %v4034 = vtanh.pop %v4027
    %v4035 = vmul.f32 %v4033, %v3529
    %4037 = vrot.lane.b32.xlu0 %v4034, 64
    %v4038 = vpop.permute.xlu0 %4037
    %v4040 = vmul.f32 %v4033, %v4038
    %4042 = vrot.lane.b32.xlu0 %v4040, 32
    %v4043 = vpop.permute.xlu0 %4042
    %v4045 = vadd.f32 %v4035, %v4043
    %v4046 = vtanh.pop %v4045
    %4048 = vrot.lane.b32.xlu0 %v4046, 64
    %v4049 = vpop.permute.xlu0 %4048
    %v4051 = vmul.f32 %v4033, %v4049
    %v4052 = vld [vmem:[#allocation2 + $0x70] sm:$0xff]
    %4054 = vrot.lane.b32.xlu0 %v4051, 32
    %v4055 = vpop.permute.xlu0 %4054
    %v4056 = vsel %vm955, %v4055, 0
    %4058 = vmatprep.subr.mxu0 0.0
    %4059 = vmatpush1.msra.mxu0 0.0
    %4060 = vmatprep.subr.mxu0 0.0
    %4061 = vmatpush1.msra.mxu0 0.0
    %4062 = vmatprep.subr.mxu0 0.0
    %4063 = vmatpush1.msra.mxu0 0.0
    %4064 = vmatprep.subr.mxu0 0.0
    %4065 = vmatpush1.msra.mxu0 0.0
    %4066 = vmatprep.subr.mxu0 0.0
    %4067 = vmatpush1.msra.mxu0 0.0
    %4068 = vmatprep.subr.mxu0 0.0
    %4069 = vmatpush1.msra.mxu0 0.0
    %4070 = vmatprep.subr.mxu0 0.0
    %4071 = vmatpush1.msra.mxu0 0.0
    %4072 = vmatprep.subr.mxu0 0.0
    %4073 = vmatpush1.msra.mxu0 0.0
    %4074 = vmatprep.subr.mxu0 0.0
    %4075 = vmatpush1.msra.mxu0 0.0
    %4076 = vmatprep.subr.mxu0 0.0
    %4077 = vmatpush1.msra.mxu0 0.0
    %4078 = vmatprep.subr.mxu0 0.0
    %4079 = vmatpush1.msra.mxu0 0.0
    %4080 = vmatprep.subr.mxu0 0.0
    %4081 = vmatpush1.msra.mxu0 0.0
    %4082 = vmatprep.subr.mxu0 0.0
    %v4083 = vand.u32 %v931, 4294901760
    %4084 = vmatpush1.msra.mxu0 %v4083
    %4085 = vmatprep.subr.mxu0 0.0
    %v4086 = vand.u32 %v930, 4294901760
    %4087 = vmatpush1.msra.mxu0 %v4086
    %4088 = vmatprep.subr.mxu0 0.0
    %v4089 = vand.u32 %v929, 4294901760
    %4090 = vmatpush1.msra.mxu0 %v4089
    %4091 = vmatprep.subr.mxu0 0.0
    %v4092 = vand.u32 %v928, 4294901760
    %4093 = vmatpush1.msra.mxu0 %v4092
    %4094 = vmatprep.subr.mxu0 0.0
    %4095 = vmatpush2.msra.mxu0 0.0
    %4096 = vmatprep.subr.mxu0 0.0
    %4097 = vmatpush2.msra.mxu0 0.0
    %4098 = vmatprep.subr.mxu0 0.0
    %4099 = vmatpush2.msra.mxu0 0.0
    %4100 = vmatprep.subr.mxu0 0.0
    %4101 = vmatpush2.msra.mxu0 0.0
    %4102 = vmatprep.subr.mxu0 0.0
    %4103 = vmatpush2.msra.mxu0 0.0
    %4104 = vmatprep.subr.mxu0 0.0
    %4105 = vmatpush2.msra.mxu0 0.0
    %4106 = vmatprep.subr.mxu0 0.0
    %4107 = vmatpush2.msra.mxu0 0.0
    %4108 = vmatprep.subr.mxu0 0.0
    %4109 = vmatpush2.msra.mxu0 0.0
    %4110 = vmatprep.subr.mxu0 0.0
    %4111 = vmatpush2.msra.mxu0 0.0
    %4112 = vmatprep.subr.mxu0 0.0
    %4113 = vmatpush2.msra.mxu0 0.0
    %4114 = vmatprep.subr.mxu0 0.0
    %4115 = vmatpush2.msra.mxu0 0.0
    %4116 = vmatprep.subr.mxu0 0.0
    %4117 = vmatpush2.msra.mxu0 0.0
    %4118 = vmatprep.subr.mxu0 0.0
    %4119 = vmatpush2.msra.mxu0 0.0
    %4120 = vmatprep.subr.mxu0 0.0
    %4121 = vmatpush2.msra.mxu0 0.0
    %4122 = vmatprep.subr.mxu0 0.0
    %4123 = vmatpush2.msra.mxu0 0.0
    %4124 = vmatprep.subr.mxu0 0.0
    %4125 = vmatpush2.msra.mxu0 0.0
    %4126 = vmatprep.mubr.f32.mxu0 0.0
    %v4127 = vand.u32 %v4056, 4294901760
    %v4128 = vsub.f32 %v4056, %v4127
    %v4129 = vand.u32 %v4128, 4294901760
    %v4130 = vsub.f32 %v4128, %v4129
    %v4131 = vand.u32 %v4130, 4294901760
    %4132 = vmatmul.mubr.f32.gmra.mxu0 %v4131
    %v4133 = vpop.f32.mrf.mxu0
    %v4134 = vadd.f32 0.0, %v4133
    %v4135 = vpop.f32.mrf.mxu0
    %4136 = vdwg.mxu0
    %4137 = vmatprep.subr.mxu0 0.0
    %4138 = vmatpush1.msra.mxu0 0.0
    %4139 = vmatprep.subr.mxu0 0.0
    %4140 = vmatpush1.msra.mxu0 0.0
    %4141 = vmatprep.subr.mxu0 0.0
    %4142 = vmatpush1.msra.mxu0 0.0
    %4143 = vmatprep.subr.mxu0 0.0
    %4144 = vmatpush1.msra.mxu0 0.0
    %4145 = vmatprep.subr.mxu0 0.0
    %4146 = vmatpush1.msra.mxu0 0.0
    %4147 = vmatprep.subr.mxu0 0.0
    %4148 = vmatpush1.msra.mxu0 0.0
    %4149 = vmatprep.subr.mxu0 0.0
    %4150 = vmatpush1.msra.mxu0 0.0
    %4151 = vmatprep.subr.mxu0 0.0
    %4152 = vmatpush1.msra.mxu0 0.0
    %4153 = vmatprep.subr.mxu0 0.0
    %4154 = vmatpush1.msra.mxu0 0.0
    %4155 = vmatprep.subr.mxu0 0.0
    %4156 = vmatpush1.msra.mxu0 0.0
    %4157 = vmatprep.subr.mxu0 0.0
    %4158 = vmatpush1.msra.mxu0 0.0
    %4159 = vmatprep.subr.mxu0 0.0
    %4160 = vmatpush1.msra.mxu0 0.0
    %4161 = vmatprep.subr.mxu0 0.0
    %v4162 = vand.u32 %v931, 4294901760
    %v4163 = vsub.f32 %v931, %v4162
    %v4164 = vand.u32 %v4163, 4294901760
    %v4165 = vsub.f32 %v4163, %v4164
    %v4166 = vand.u32 %v4165, 4294901760
    %4167 = vmatpush1.msra.mxu0 %v4166
    %4168 = vmatprep.subr.mxu0 0.0
    %v4169 = vand.u32 %v930, 4294901760
    %v4170 = vsub.f32 %v930, %v4169
    %v4171 = vand.u32 %v4170, 4294901760
    %v4172 = vsub.f32 %v4170, %v4171
    %v4173 = vand.u32 %v4172, 4294901760
    %4174 = vmatpush1.msra.mxu0 %v4173
    %4175 = vmatprep.subr.mxu0 0.0
    %v4176 = vand.u32 %v929, 4294901760
    %v4177 = vsub.f32 %v929, %v4176
    %v4178 = vand.u32 %v4177, 4294901760
    %v4179 = vsub.f32 %v4177, %v4178
    %v4180 = vand.u32 %v4179, 4294901760
    %4181 = vmatpush1.msra.mxu0 %v4180
    %4182 = vmatprep.subr.mxu0 0.0
    %v4183 = vand.u32 %v928, 4294901760
    %v4184 = vsub.f32 %v928, %v4183
    %v4185 = vand.u32 %v4184, 4294901760
    %v4186 = vsub.f32 %v4184, %v4185
    %v4187 = vand.u32 %v4186, 4294901760
    %4188 = vmatpush1.msra.mxu0 %v4187
    %4189 = vmatprep.subr.mxu0 0.0
    %4190 = vmatpush2.msra.mxu0 0.0
    %4191 = vmatprep.subr.mxu0 0.0
    %4192 = vmatpush2.msra.mxu0 0.0
    %4193 = vmatprep.subr.mxu0 0.0
    %4194 = vmatpush2.msra.mxu0 0.0
    %4195 = vmatprep.subr.mxu0 0.0
    %4196 = vmatpush2.msra.mxu0 0.0
    %4197 = vmatprep.subr.mxu0 0.0
    %4198 = vmatpush2.msra.mxu0 0.0
    %4199 = vmatprep.subr.mxu0 0.0
    %4200 = vmatpush2.msra.mxu0 0.0
    %4201 = vmatprep.subr.mxu0 0.0
    %4202 = vmatpush2.msra.mxu0 0.0
    %4203 = vmatprep.subr.mxu0 0.0
    %4204 = vmatpush2.msra.mxu0 0.0
    %4205 = vmatprep.subr.mxu0 0.0
    %4206 = vmatpush2.msra.mxu0 0.0
    %4207 = vmatprep.subr.mxu0 0.0
    %4208 = vmatpush2.msra.mxu0 0.0
    %4209 = vmatprep.subr.mxu0 0.0
    %4210 = vmatpush2.msra.mxu0 0.0
    %4211 = vmatprep.subr.mxu0 0.0
    %4212 = vmatpush2.msra.mxu0 0.0
    %4213 = vmatprep.subr.mxu0 0.0
    %4214 = vmatpush2.msra.mxu0 0.0
    %4215 = vmatprep.subr.mxu0 0.0
    %4216 = vmatpush2.msra.mxu0 0.0
    %4217 = vmatprep.subr.mxu0 0.0
    %4218 = vmatpush2.msra.mxu0 0.0
    %4219 = vmatprep.subr.mxu0 0.0
    %4220 = vmatpush2.msra.mxu0 0.0
    %4221 = vmatprep.mubr.f32.mxu0 0.0
    %v4222 = vand.u32 %v4056, 4294901760
    %4223 = vmatmul.mubr.f32.gmra.mxu0 %v4222
    %v4224 = vpop.f32.mrf.mxu0
    %v4225 = vadd.f32 %v4134, %v4224
    %v4226 = vpop.f32.mrf.mxu0
    %4227 = vdwg.mxu0
    %4228 = vmatprep.subr.mxu0 0.0
    %4229 = vmatpush1.msra.mxu0 0.0
    %4230 = vmatprep.subr.mxu0 0.0
    %4231 = vmatpush1.msra.mxu0 0.0
    %4232 = vmatprep.subr.mxu0 0.0
    %4233 = vmatpush1.msra.mxu0 0.0
    %4234 = vmatprep.subr.mxu0 0.0
    %4235 = vmatpush1.msra.mxu0 0.0
    %4236 = vmatprep.subr.mxu0 0.0
    %4237 = vmatpush1.msra.mxu0 0.0
    %4238 = vmatprep.subr.mxu0 0.0
    %4239 = vmatpush1.msra.mxu0 0.0
    %4240 = vmatprep.subr.mxu0 0.0
    %4241 = vmatpush1.msra.mxu0 0.0
    %4242 = vmatprep.subr.mxu0 0.0
    %4243 = vmatpush1.msra.mxu0 0.0
    %4244 = vmatprep.subr.mxu0 0.0
    %4245 = vmatpush1.msra.mxu0 0.0
    %4246 = vmatprep.subr.mxu0 0.0
    %4247 = vmatpush1.msra.mxu0 0.0
    %4248 = vmatprep.subr.mxu0 0.0
    %4249 = vmatpush1.msra.mxu0 0.0
    %4250 = vmatprep.subr.mxu0 0.0
    %4251 = vmatpush1.msra.mxu0 0.0
    %4252 = vmatprep.subr.mxu0 0.0
    %v4253 = vand.u32 %v931, 4294901760
    %v4254 = vsub.f32 %v931, %v4253
    %4255 = vmatpush1.msra.mxu0 %v4254
    %4256 = vmatprep.subr.mxu0 0.0
    %v4257 = vand.u32 %v930, 4294901760
    %v4258 = vsub.f32 %v930, %v4257
    %4259 = vmatpush1.msra.mxu0 %v4258
    %4260 = vmatprep.subr.mxu0 0.0
    %v4261 = vand.u32 %v929, 4294901760
    %v4262 = vsub.f32 %v929, %v4261
    %4263 = vmatpush1.msra.mxu0 %v4262
    %4264 = vmatprep.subr.mxu0 0.0
    %v4265 = vand.u32 %v928, 4294901760
    %v4266 = vsub.f32 %v928, %v4265
    %4267 = vmatpush1.msra.mxu0 %v4266
    %4268 = vmatprep.subr.mxu0 0.0
    %4269 = vmatpush2.msra.mxu0 0.0
    %4270 = vmatprep.subr.mxu0 0.0
    %4271 = vmatpush2.msra.mxu0 0.0
    %4272 = vmatprep.subr.mxu0 0.0
    %4273 = vmatpush2.msra.mxu0 0.0
    %4274 = vmatprep.subr.mxu0 0.0
    %4275 = vmatpush2.msra.mxu0 0.0
    %4276 = vmatprep.subr.mxu0 0.0
    %4277 = vmatpush2.msra.mxu0 0.0
    %4278 = vmatprep.subr.mxu0 0.0
    %4279 = vmatpush2.msra.mxu0 0.0
    %4280 = vmatprep.subr.mxu0 0.0
    %4281 = vmatpush2.msra.mxu0 0.0
    %4282 = vmatprep.subr.mxu0 0.0
    %4283 = vmatpush2.msra.mxu0 0.0
    %4284 = vmatprep.subr.mxu0 0.0
    %4285 = vmatpush2.msra.mxu0 0.0
    %4286 = vmatprep.subr.mxu0 0.0
    %4287 = vmatpush2.msra.mxu0 0.0
    %4288 = vmatprep.subr.mxu0 0.0
    %4289 = vmatpush2.msra.mxu0 0.0
    %4290 = vmatprep.subr.mxu0 0.0
    %4291 = vmatpush2.msra.mxu0 0.0
    %4292 = vmatprep.subr.mxu0 0.0
    %4293 = vmatpush2.msra.mxu0 0.0
    %4294 = vmatprep.subr.mxu0 0.0
    %4295 = vmatpush2.msra.mxu0 0.0
    %4296 = vmatprep.subr.mxu0 0.0
    %4297 = vmatpush2.msra.mxu0 0.0
    %4298 = vmatprep.subr.mxu0 0.0
    %4299 = vmatpush2.msra.mxu0 0.0
    %4300 = vmatprep.mubr.f32.mxu0 0.0
    %v4301 = vand.u32 %v4056, 4294901760
    %v4302 = vsub.f32 %v4056, %v4301
    %4303 = vmatmul.mubr.f32.gmra.mxu0 %v4302
    %v4304 = vpop.f32.mrf.mxu0
    %v4305 = vadd.f32 %v4225, %v4304
    %v4306 = vpop.f32.mrf.mxu0
    %4307 = vdwg.mxu0
    %4308 = vmatprep.subr.mxu0 0.0
    %4309 = vmatpush1.msra.mxu0 0.0
    %4310 = vmatprep.subr.mxu0 0.0
    %4311 = vmatpush1.msra.mxu0 0.0
    %4312 = vmatprep.subr.mxu0 0.0
    %4313 = vmatpush1.msra.mxu0 0.0
    %4314 = vmatprep.subr.mxu0 0.0
    %4315 = vmatpush1.msra.mxu0 0.0
    %4316 = vmatprep.subr.mxu0 0.0
    %4317 = vmatpush1.msra.mxu0 0.0
    %4318 = vmatprep.subr.mxu0 0.0
    %4319 = vmatpush1.msra.mxu0 0.0
    %4320 = vmatprep.subr.mxu0 0.0
    %4321 = vmatpush1.msra.mxu0 0.0
    %4322 = vmatprep.subr.mxu0 0.0
    %4323 = vmatpush1.msra.mxu0 0.0
    %4324 = vmatprep.subr.mxu0 0.0
    %4325 = vmatpush1.msra.mxu0 0.0
    %4326 = vmatprep.subr.mxu0 0.0
    %4327 = vmatpush1.msra.mxu0 0.0
    %4328 = vmatprep.subr.mxu0 0.0
    %4329 = vmatpush1.msra.mxu0 0.0
    %4330 = vmatprep.subr.mxu0 0.0
    %4331 = vmatpush1.msra.mxu0 0.0
    %4332 = vmatprep.subr.mxu0 0.0
    %v4333 = vand.u32 %v931, 4294901760
    %4334 = vmatpush1.msra.mxu0 %v4333
    %4335 = vmatprep.subr.mxu0 0.0
    %v4336 = vand.u32 %v930, 4294901760
    %4337 = vmatpush1.msra.mxu0 %v4336
    %4338 = vmatprep.subr.mxu0 0.0
    %v4339 = vand.u32 %v929, 4294901760
    %4340 = vmatpush1.msra.mxu0 %v4339
    %4341 = vmatprep.subr.mxu0 0.0
    %v4342 = vand.u32 %v928, 4294901760
    %4343 = vmatpush1.msra.mxu0 %v4342
    %4344 = vmatprep.subr.mxu0 0.0
    %4345 = vmatpush2.msra.mxu0 0.0
    %4346 = vmatprep.subr.mxu0 0.0
    %4347 = vmatpush2.msra.mxu0 0.0
    %4348 = vmatprep.subr.mxu0 0.0
    %4349 = vmatpush2.msra.mxu0 0.0
    %4350 = vmatprep.subr.mxu0 0.0
    %4351 = vmatpush2.msra.mxu0 0.0
    %4352 = vmatprep.subr.mxu0 0.0
    %4353 = vmatpush2.msra.mxu0 0.0
    %4354 = vmatprep.subr.mxu0 0.0
    %4355 = vmatpush2.msra.mxu0 0.0
    %4356 = vmatprep.subr.mxu0 0.0
    %4357 = vmatpush2.msra.mxu0 0.0
    %4358 = vmatprep.subr.mxu0 0.0
    %4359 = vmatpush2.msra.mxu0 0.0
    %4360 = vmatprep.subr.mxu0 0.0
    %4361 = vmatpush2.msra.mxu0 0.0
    %4362 = vmatprep.subr.mxu0 0.0
    %4363 = vmatpush2.msra.mxu0 0.0
    %4364 = vmatprep.subr.mxu0 0.0
    %4365 = vmatpush2.msra.mxu0 0.0
    %4366 = vmatprep.subr.mxu0 0.0
    %4367 = vmatpush2.msra.mxu0 0.0
    %4368 = vmatprep.subr.mxu0 0.0
    %4369 = vmatpush2.msra.mxu0 0.0
    %4370 = vmatprep.subr.mxu0 0.0
    %4371 = vmatpush2.msra.mxu0 0.0
    %4372 = vmatprep.subr.mxu0 0.0
    %4373 = vmatpush2.msra.mxu0 0.0
    %4374 = vmatprep.subr.mxu0 0.0
    %4375 = vmatpush2.msra.mxu0 0.0
    %4376 = vmatprep.mubr.f32.mxu0 0.0
    %v4377 = vand.u32 %v4056, 4294901760
    %v4378 = vsub.f32 %v4056, %v4377
    %v4379 = vand.u32 %v4378, 4294901760
    %4380 = vmatmul.mubr.f32.gmra.mxu0 %v4379
    %v4381 = vpop.f32.mrf.mxu0
    %v4382 = vadd.f32 %v4305, %v4381
    %v4383 = vpop.f32.mrf.mxu0
    %4384 = vdwg.mxu0
    %4385 = vmatprep.subr.mxu0 0.0
    %4386 = vmatpush1.msra.mxu0 0.0
    %4387 = vmatprep.subr.mxu0 0.0
    %4388 = vmatpush1.msra.mxu0 0.0
    %4389 = vmatprep.subr.mxu0 0.0
    %4390 = vmatpush1.msra.mxu0 0.0
    %4391 = vmatprep.subr.mxu0 0.0
    %4392 = vmatpush1.msra.mxu0 0.0
    %4393 = vmatprep.subr.mxu0 0.0
    %4394 = vmatpush1.msra.mxu0 0.0
    %4395 = vmatprep.subr.mxu0 0.0
    %4396 = vmatpush1.msra.mxu0 0.0
    %4397 = vmatprep.subr.mxu0 0.0
    %4398 = vmatpush1.msra.mxu0 0.0
    %4399 = vmatprep.subr.mxu0 0.0
    %4400 = vmatpush1.msra.mxu0 0.0
    %4401 = vmatprep.subr.mxu0 0.0
    %4402 = vmatpush1.msra.mxu0 0.0
    %4403 = vmatprep.subr.mxu0 0.0
    %4404 = vmatpush1.msra.mxu0 0.0
    %4405 = vmatprep.subr.mxu0 0.0
    %4406 = vmatpush1.msra.mxu0 0.0
    %4407 = vmatprep.subr.mxu0 0.0
    %4408 = vmatpush1.msra.mxu0 0.0
    %4409 = vmatprep.subr.mxu0 0.0
    %v4410 = vand.u32 %v931, 4294901760
    %v4411 = vsub.f32 %v931, %v4410
    %v4412 = vand.u32 %v4411, 4294901760
    %4413 = vmatpush1.msra.mxu0 %v4412
    %4414 = vmatprep.subr.mxu0 0.0
    %v4415 = vand.u32 %v930, 4294901760
    %v4416 = vsub.f32 %v930, %v4415
    %v4417 = vand.u32 %v4416, 4294901760
    %4418 = vmatpush1.msra.mxu0 %v4417
    %4419 = vmatprep.subr.mxu0 0.0
    %v4420 = vand.u32 %v929, 4294901760
    %v4421 = vsub.f32 %v929, %v4420
    %v4422 = vand.u32 %v4421, 4294901760
    %4423 = vmatpush1.msra.mxu0 %v4422
    %4424 = vmatprep.subr.mxu0 0.0
    %v4425 = vand.u32 %v928, 4294901760
    %v4426 = vsub.f32 %v928, %v4425
    %v4427 = vand.u32 %v4426, 4294901760
    %4428 = vmatpush1.msra.mxu0 %v4427
    %4429 = vmatprep.subr.mxu0 0.0
    %4430 = vmatpush2.msra.mxu0 0.0
    %4431 = vmatprep.subr.mxu0 0.0
    %4432 = vmatpush2.msra.mxu0 0.0
    %4433 = vmatprep.subr.mxu0 0.0
    %4434 = vmatpush2.msra.mxu0 0.0
    %4435 = vmatprep.subr.mxu0 0.0
    %4436 = vmatpush2.msra.mxu0 0.0
    %4437 = vmatprep.subr.mxu0 0.0
    %4438 = vmatpush2.msra.mxu0 0.0
    %4439 = vmatprep.subr.mxu0 0.0
    %4440 = vmatpush2.msra.mxu0 0.0
    %4441 = vmatprep.subr.mxu0 0.0
    %4442 = vmatpush2.msra.mxu0 0.0
    %4443 = vmatprep.subr.mxu0 0.0
    %4444 = vmatpush2.msra.mxu0 0.0
    %4445 = vmatprep.subr.mxu0 0.0
    %4446 = vmatpush2.msra.mxu0 0.0
    %4447 = vmatprep.subr.mxu0 0.0
    %4448 = vmatpush2.msra.mxu0 0.0
    %4449 = vmatprep.subr.mxu0 0.0
    %4450 = vmatpush2.msra.mxu0 0.0
    %4451 = vmatprep.subr.mxu0 0.0
    %4452 = vmatpush2.msra.mxu0 0.0
    %4453 = vmatprep.subr.mxu0 0.0
    %4454 = vmatpush2.msra.mxu0 0.0
    %4455 = vmatprep.subr.mxu0 0.0
    %4456 = vmatpush2.msra.mxu0 0.0
    %4457 = vmatprep.subr.mxu0 0.0
    %4458 = vmatpush2.msra.mxu0 0.0
    %4459 = vmatprep.subr.mxu0 0.0
    %4460 = vmatpush2.msra.mxu0 0.0
    %4461 = vmatprep.mubr.f32.mxu0 0.0
    %v4462 = vand.u32 %v4056, 4294901760
    %4463 = vmatmul.mubr.f32.gmra.mxu0 %v4462
    %v4464 = vpop.f32.mrf.mxu0
    %v4465 = vadd.f32 %v4382, %v4464
    %v4466 = vpop.f32.mrf.mxu0
    %4467 = vdwg.mxu0
    %4468 = vmatprep.subr.mxu0 0.0
    %4469 = vmatpush1.msra.mxu0 0.0
    %4470 = vmatprep.subr.mxu0 0.0
    %4471 = vmatpush1.msra.mxu0 0.0
    %4472 = vmatprep.subr.mxu0 0.0
    %4473 = vmatpush1.msra.mxu0 0.0
    %4474 = vmatprep.subr.mxu0 0.0
    %4475 = vmatpush1.msra.mxu0 0.0
    %4476 = vmatprep.subr.mxu0 0.0
    %4477 = vmatpush1.msra.mxu0 0.0
    %4478 = vmatprep.subr.mxu0 0.0
    %4479 = vmatpush1.msra.mxu0 0.0
    %4480 = vmatprep.subr.mxu0 0.0
    %4481 = vmatpush1.msra.mxu0 0.0
    %4482 = vmatprep.subr.mxu0 0.0
    %4483 = vmatpush1.msra.mxu0 0.0
    %4484 = vmatprep.subr.mxu0 0.0
    %4485 = vmatpush1.msra.mxu0 0.0
    %4486 = vmatprep.subr.mxu0 0.0
    %4487 = vmatpush1.msra.mxu0 0.0
    %4488 = vmatprep.subr.mxu0 0.0
    %4489 = vmatpush1.msra.mxu0 0.0
    %4490 = vmatprep.subr.mxu0 0.0
    %4491 = vmatpush1.msra.mxu0 0.0
    %4492 = vmatprep.subr.mxu0 0.0
    %v4493 = vand.u32 %v931, 4294901760
    %4494 = vmatpush1.msra.mxu0 %v4493
    %4495 = vmatprep.subr.mxu0 0.0
    %v4496 = vand.u32 %v930, 4294901760
    %4497 = vmatpush1.msra.mxu0 %v4496
    %4498 = vmatprep.subr.mxu0 0.0
    %v4499 = vand.u32 %v929, 4294901760
    %4500 = vmatpush1.msra.mxu0 %v4499
    %4501 = vmatprep.subr.mxu0 0.0
    %v4502 = vand.u32 %v928, 4294901760
    %4503 = vmatpush1.msra.mxu0 %v4502
    %4504 = vmatprep.subr.mxu0 0.0
    %4505 = vmatpush2.msra.mxu0 0.0
    %4506 = vmatprep.subr.mxu0 0.0
    %4507 = vmatpush2.msra.mxu0 0.0
    %4508 = vmatprep.subr.mxu0 0.0
    %4509 = vmatpush2.msra.mxu0 0.0
    %4510 = vmatprep.subr.mxu0 0.0
    %4511 = vmatpush2.msra.mxu0 0.0
    %4512 = vmatprep.subr.mxu0 0.0
    %4513 = vmatpush2.msra.mxu0 0.0
    %4514 = vmatprep.subr.mxu0 0.0
    %4515 = vmatpush2.msra.mxu0 0.0
    %4516 = vmatprep.subr.mxu0 0.0
    %4517 = vmatpush2.msra.mxu0 0.0
    %4518 = vmatprep.subr.mxu0 0.0
    %4519 = vmatpush2.msra.mxu0 0.0
    %4520 = vmatprep.subr.mxu0 0.0
    %4521 = vmatpush2.msra.mxu0 0.0
    %4522 = vmatprep.subr.mxu0 0.0
    %4523 = vmatpush2.msra.mxu0 0.0
    %4524 = vmatprep.subr.mxu0 0.0
    %4525 = vmatpush2.msra.mxu0 0.0
    %4526 = vmatprep.subr.mxu0 0.0
    %4527 = vmatpush2.msra.mxu0 0.0
    %4528 = vmatprep.subr.mxu0 0.0
    %4529 = vmatpush2.msra.mxu0 0.0
    %4530 = vmatprep.subr.mxu0 0.0
    %4531 = vmatpush2.msra.mxu0 0.0
    %4532 = vmatprep.subr.mxu0 0.0
    %4533 = vmatpush2.msra.mxu0 0.0
    %4534 = vmatprep.subr.mxu0 0.0
    %4535 = vmatpush2.msra.mxu0 0.0
    %4536 = vmatprep.mubr.f32.mxu0 0.0
    %v4537 = vand.u32 %v4056, 4294901760
    %4538 = vmatmul.mubr.f32.gmra.mxu0 %v4537
    %v4539 = vpop.f32.mrf.mxu0
    %v4540 = vadd.f32 %v4465, %v4539
    %v4541 = vpop.f32.mrf.mxu0
    %4542 = vdwg.mxu0
    %v4543 = vadd.f32 %v4052, %v4540
    %v4544 = vxor.u32 %v4543, 2147483648
    %v4545 = vmul.f32 %v4544, 1.442695
    %v4546 = vpow.pop %v4545
    %v4547 = vadd.f32 %v4546, 1.0
    %v4548 = vrcp.pop %v4547
    %v4549 = vmul.f32 1.0, %v4548
    %v4550 = vtanh.pop %v4543
    %v4551 = vmul.f32 %v4549, %v4045
    %4553 = vrot.lane.b32.xlu0 %v4550, 64
    %v4554 = vpop.permute.xlu0 %4553
    %v4556 = vmul.f32 %v4549, %v4554
    %4558 = vrot.lane.b32.xlu0 %v4556, 32
    %v4559 = vpop.permute.xlu0 %4558
    %v4561 = vadd.f32 %v4551, %v4559
    %v4562 = vtanh.pop %v4561
    %4564 = vrot.lane.b32.xlu0 %v4562, 64
    %v4565 = vpop.permute.xlu0 %4564
    %v4567 = vmul.f32 %v4549, %v4565
    %v4568 = vld [vmem:[#allocation2 + $0x78] sm:$0xff]
    %v4569 = vxor.u32 %v4568, 2147483648
    %v4570 = vmul.f32 %v4569, 1.442695
    %v4571 = vpow.pop %v4570
    %v4572 = vadd.f32 %v4571, 1.0
    %v4573 = vrcp.pop %v4572
    %v4574 = vmul.f32 1.0, %v4573
    %v4575 = vtanh.pop %v4568
    %4577 = vrot.lane.b32.xlu0 %v4575, 64
    %v4578 = vpop.permute.xlu0 %4577
    %v4580 = vmul.f32 %v4574, %v4578
    %v4581 = vtanh.pop %v4580
    %4583 = vrot.lane.b32.xlu0 %v4581, 96
    %v4584 = vpop.permute.xlu0 %4583
    %v4586 = vmul.f32 %v4574, %v4584
    %4588 = vrot.lane.b32.xlu0 %v4567, 32
    %v4589 = vpop.permute.xlu0 %4588
    %4592 = vrot.lane.b32.xlu0 %v4586, 64
    %v4593 = vpop.permute.xlu0 %4592
    %v4595 = vsel %vm955, %v4589, %v4593
    %v4596 = vld [vmem:[#allocation3 + $0x50] sm:$0xff]
    %v4597 = vld [vmem:[#allocation3 + $0x60] sm:$0xff]
    %v4598 = vld [vmem:[#allocation3 + $0x70] sm:$0xff]
    %v4599 = vld [vmem:[#allocation3 + $0x80] sm:$0xff]
    %v4600 = vld [vmem:[#allocation3 + $0x90] sm:$0xff]
    %v4601 = vld [vmem:[#allocation3 + $0xa0] sm:$0xff]
    %v4602 = vld [vmem:[#allocation3 + $0xb0] sm:$0xff]
    %v4603 = vld [vmem:[#allocation3 + $0xc0] sm:$0xff]
    %v4604 = vld [vmem:[#allocation3 + $0xd0] ss:$0 sm:$0xff]
    %vm4605 = vcmask 523264
    %v4607 = vsel %vm4605, %v4595, 0
    %4609 = vmatprep.subr.mxu0 0.0
    %4610 = vmatpush1.msra.mxu0 0.0
    %4611 = vmatprep.subr.mxu0 0.0
    %4612 = vmatpush1.msra.mxu0 0.0
    %4613 = vmatprep.subr.mxu0 0.0
    %4614 = vmatpush1.msra.mxu0 0.0
    %4615 = vmatprep.subr.mxu0 0.0
    %4616 = vmatpush1.msra.mxu0 0.0
    %4617 = vmatprep.subr.mxu0 0.0
    %4618 = vmatpush1.msra.mxu0 0.0
    %4619 = vmatprep.subr.mxu0 0.0
    %4620 = vmatpush1.msra.mxu0 0.0
    %4621 = vmatprep.subr.mxu0 0.0
    %4622 = vmatpush1.msra.mxu0 0.0
    %4623 = vmatprep.subr.mxu0 0.0
    %4624 = vmatpush1.msra.mxu0 0.0
    %4625 = vmatprep.subr.mxu0 0.0
    %v4626 = vand.u32 %v4603, 4294901760
    %4627 = vmatpush1.msra.mxu0 %v4626
    %4628 = vmatprep.subr.mxu0 0.0
    %v4629 = vand.u32 %v4602, 4294901760
    %4630 = vmatpush1.msra.mxu0 %v4629
    %4631 = vmatprep.subr.mxu0 0.0
    %v4632 = vand.u32 %v4601, 4294901760
    %4633 = vmatpush1.msra.mxu0 %v4632
    %4634 = vmatprep.subr.mxu0 0.0
    %v4635 = vand.u32 %v4600, 4294901760
    %4636 = vmatpush1.msra.mxu0 %v4635
    %4637 = vmatprep.subr.mxu0 0.0
    %v4638 = vand.u32 %v4599, 4294901760
    %4639 = vmatpush1.msra.mxu0 %v4638
    %4640 = vmatprep.subr.mxu0 0.0
    %v4641 = vand.u32 %v4598, 4294901760
    %4642 = vmatpush1.msra.mxu0 %v4641
    %4643 = vmatprep.subr.mxu0 0.0
    %v4644 = vand.u32 %v4597, 4294901760
    %4645 = vmatpush1.msra.mxu0 %v4644
    %4646 = vmatprep.subr.mxu0 0.0
    %v4647 = vand.u32 %v4596, 4294901760
    %4648 = vmatpush1.msra.mxu0 %v4647
    %4649 = vmatprep.subr.mxu0 0.0
    %4650 = vmatpush2.msra.mxu0 0.0
    %4651 = vmatprep.subr.mxu0 0.0
    %4652 = vmatpush2.msra.mxu0 0.0
    %4653 = vmatprep.subr.mxu0 0.0
    %4654 = vmatpush2.msra.mxu0 0.0
    %4655 = vmatprep.subr.mxu0 0.0
    %4656 = vmatpush2.msra.mxu0 0.0
    %4657 = vmatprep.subr.mxu0 0.0
    %4658 = vmatpush2.msra.mxu0 0.0
    %4659 = vmatprep.subr.mxu0 0.0
    %4660 = vmatpush2.msra.mxu0 0.0
    %4661 = vmatprep.subr.mxu0 0.0
    %4662 = vmatpush2.msra.mxu0 0.0
    %4663 = vmatprep.subr.mxu0 0.0
    %4664 = vmatpush2.msra.mxu0 0.0
    %4665 = vmatprep.subr.mxu0 0.0
    %4666 = vmatpush2.msra.mxu0 0.0
    %4667 = vmatprep.subr.mxu0 0.0
    %4668 = vmatpush2.msra.mxu0 0.0
    %4669 = vmatprep.subr.mxu0 0.0
    %4670 = vmatpush2.msra.mxu0 0.0
    %4671 = vmatprep.subr.mxu0 0.0
    %4672 = vmatpush2.msra.mxu0 0.0
    %4673 = vmatprep.subr.mxu0 0.0
    %4674 = vmatpush2.msra.mxu0 0.0
    %4675 = vmatprep.subr.mxu0 0.0
    %4676 = vmatpush2.msra.mxu0 0.0
    %4677 = vmatprep.subr.mxu0 0.0
    %4678 = vmatpush2.msra.mxu0 0.0
    %4679 = vmatprep.subr.mxu0 0.0
    %4680 = vmatpush2.msra.mxu0 0.0
    %4681 = vmatprep.mubr.f32.mxu0 0.0
    %v4682 = vand.u32 %v4607, 4294901760
    %v4683 = vsub.f32 %v4607, %v4682
    %v4684 = vand.u32 %v4683, 4294901760
    %v4685 = vsub.f32 %v4683, %v4684
    %v4686 = vand.u32 %v4685, 4294901760
    %4687 = vmatmul.mubr.f32.gmra.mxu0 %v4686
    %v4688 = vpop.f32.mrf.mxu0
    %v4689 = vadd.f32 %v4604, %v4688
    %v4690 = vpop.f32.mrf.mxu0
    %4691 = vdwg.mxu0
    %4692 = vmatprep.subr.mxu0 0.0
    %4693 = vmatpush1.msra.mxu0 0.0
    %4694 = vmatprep.subr.mxu0 0.0
    %4695 = vmatpush1.msra.mxu0 0.0
    %4696 = vmatprep.subr.mxu0 0.0
    %4697 = vmatpush1.msra.mxu0 0.0
    %4698 = vmatprep.subr.mxu0 0.0
    %4699 = vmatpush1.msra.mxu0 0.0
    %4700 = vmatprep.subr.mxu0 0.0
    %4701 = vmatpush1.msra.mxu0 0.0
    %4702 = vmatprep.subr.mxu0 0.0
    %4703 = vmatpush1.msra.mxu0 0.0
    %4704 = vmatprep.subr.mxu0 0.0
    %4705 = vmatpush1.msra.mxu0 0.0
    %4706 = vmatprep.subr.mxu0 0.0
    %4707 = vmatpush1.msra.mxu0 0.0
    %4708 = vmatprep.subr.mxu0 0.0
    %v4709 = vand.u32 %v4603, 4294901760
    %v4710 = vsub.f32 %v4603, %v4709
    %v4711 = vand.u32 %v4710, 4294901760
    %v4712 = vsub.f32 %v4710, %v4711
    %v4713 = vand.u32 %v4712, 4294901760
    %4714 = vmatpush1.msra.mxu0 %v4713
    %4715 = vmatprep.subr.mxu0 0.0
    %v4716 = vand.u32 %v4602, 4294901760
    %v4717 = vsub.f32 %v4602, %v4716
    %v4718 = vand.u32 %v4717, 4294901760
    %v4719 = vsub.f32 %v4717, %v4718
    %v4720 = vand.u32 %v4719, 4294901760
    %4721 = vmatpush1.msra.mxu0 %v4720
    %4722 = vmatprep.subr.mxu0 0.0
    %v4723 = vand.u32 %v4601, 4294901760
    %v4724 = vsub.f32 %v4601, %v4723
    %v4725 = vand.u32 %v4724, 4294901760
    %v4726 = vsub.f32 %v4724, %v4725
    %v4727 = vand.u32 %v4726, 4294901760
    %4728 = vmatpush1.msra.mxu0 %v4727
    %4729 = vmatprep.subr.mxu0 0.0
    %v4730 = vand.u32 %v4600, 4294901760
    %v4731 = vsub.f32 %v4600, %v4730
    %v4732 = vand.u32 %v4731, 4294901760
    %v4733 = vsub.f32 %v4731, %v4732
    %v4734 = vand.u32 %v4733, 4294901760
    %4735 = vmatpush1.msra.mxu0 %v4734
    %4736 = vmatprep.subr.mxu0 0.0
    %v4737 = vand.u32 %v4599, 4294901760
    %v4738 = vsub.f32 %v4599, %v4737
    %v4739 = vand.u32 %v4738, 4294901760
    %v4740 = vsub.f32 %v4738, %v4739
    %v4741 = vand.u32 %v4740, 4294901760
    %4742 = vmatpush1.msra.mxu0 %v4741
    %4743 = vmatprep.subr.mxu0 0.0
    %v4744 = vand.u32 %v4598, 4294901760
    %v4745 = vsub.f32 %v4598, %v4744
    %v4746 = vand.u32 %v4745, 4294901760
    %v4747 = vsub.f32 %v4745, %v4746
    %v4748 = vand.u32 %v4747, 4294901760
    %4749 = vmatpush1.msra.mxu0 %v4748
    %4750 = vmatprep.subr.mxu0 0.0
    %v4751 = vand.u32 %v4597, 4294901760
    %v4752 = vsub.f32 %v4597, %v4751
    %v4753 = vand.u32 %v4752, 4294901760
    %v4754 = vsub.f32 %v4752, %v4753
    %v4755 = vand.u32 %v4754, 4294901760
    %4756 = vmatpush1.msra.mxu0 %v4755
    %4757 = vmatprep.subr.mxu0 0.0
    %v4758 = vand.u32 %v4596, 4294901760
    %v4759 = vsub.f32 %v4596, %v4758
    %v4760 = vand.u32 %v4759, 4294901760
    %v4761 = vsub.f32 %v4759, %v4760
    %v4762 = vand.u32 %v4761, 4294901760
    %4763 = vmatpush1.msra.mxu0 %v4762
    %4764 = vmatprep.subr.mxu0 0.0
    %4765 = vmatpush2.msra.mxu0 0.0
    %4766 = vmatprep.subr.mxu0 0.0
    %4767 = vmatpush2.msra.mxu0 0.0
    %4768 = vmatprep.subr.mxu0 0.0
    %4769 = vmatpush2.msra.mxu0 0.0
    %4770 = vmatprep.subr.mxu0 0.0
    %4771 = vmatpush2.msra.mxu0 0.0
    %4772 = vmatprep.subr.mxu0 0.0
    %4773 = vmatpush2.msra.mxu0 0.0
    %4774 = vmatprep.subr.mxu0 0.0
    %4775 = vmatpush2.msra.mxu0 0.0
    %4776 = vmatprep.subr.mxu0 0.0
    %4777 = vmatpush2.msra.mxu0 0.0
    %4778 = vmatprep.subr.mxu0 0.0
    %4779 = vmatpush2.msra.mxu0 0.0
    %4780 = vmatprep.subr.mxu0 0.0
    %4781 = vmatpush2.msra.mxu0 0.0
    %4782 = vmatprep.subr.mxu0 0.0
    %4783 = vmatpush2.msra.mxu0 0.0
    %4784 = vmatprep.subr.mxu0 0.0
    %4785 = vmatpush2.msra.mxu0 0.0
    %4786 = vmatprep.subr.mxu0 0.0
    %4787 = vmatpush2.msra.mxu0 0.0
    %4788 = vmatprep.subr.mxu0 0.0
    %4789 = vmatpush2.msra.mxu0 0.0
    %4790 = vmatprep.subr.mxu0 0.0
    %4791 = vmatpush2.msra.mxu0 0.0
    %4792 = vmatprep.subr.mxu0 0.0
    %4793 = vmatpush2.msra.mxu0 0.0
    %4794 = vmatprep.subr.mxu0 0.0
    %4795 = vmatpush2.msra.mxu0 0.0
    %4796 = vmatprep.mubr.f32.mxu0 0.0
    %v4797 = vand.u32 %v4607, 4294901760
    %4798 = vmatmul.mubr.f32.gmra.mxu0 %v4797
    %v4799 = vpop.f32.mrf.mxu0
    %v4800 = vadd.f32 %v4689, %v4799
    %v4801 = vpop.f32.mrf.mxu0
    %4802 = vdwg.mxu0
    %4803 = vmatprep.subr.mxu0 0.0
    %4804 = vmatpush1.msra.mxu0 0.0
    %4805 = vmatprep.subr.mxu0 0.0
    %4806 = vmatpush1.msra.mxu0 0.0
    %4807 = vmatprep.subr.mxu0 0.0
    %4808 = vmatpush1.msra.mxu0 0.0
    %4809 = vmatprep.subr.mxu0 0.0
    %4810 = vmatpush1.msra.mxu0 0.0
    %4811 = vmatprep.subr.mxu0 0.0
    %4812 = vmatpush1.msra.mxu0 0.0
    %4813 = vmatprep.subr.mxu0 0.0
    %4814 = vmatpush1.msra.mxu0 0.0
    %4815 = vmatprep.subr.mxu0 0.0
    %4816 = vmatpush1.msra.mxu0 0.0
    %4817 = vmatprep.subr.mxu0 0.0
    %4818 = vmatpush1.msra.mxu0 0.0
    %4819 = vmatprep.subr.mxu0 0.0
    %v4820 = vand.u32 %v4603, 4294901760
    %v4821 = vsub.f32 %v4603, %v4820
    %4822 = vmatpush1.msra.mxu0 %v4821
    %4823 = vmatprep.subr.mxu0 0.0
    %v4824 = vand.u32 %v4602, 4294901760
    %v4825 = vsub.f32 %v4602, %v4824
    %4826 = vmatpush1.msra.mxu0 %v4825
    %4827 = vmatprep.subr.mxu0 0.0
    %v4828 = vand.u32 %v4601, 4294901760
    %v4829 = vsub.f32 %v4601, %v4828
    %4830 = vmatpush1.msra.mxu0 %v4829
    %4831 = vmatprep.subr.mxu0 0.0
    %v4832 = vand.u32 %v4600, 4294901760
    %v4833 = vsub.f32 %v4600, %v4832
    %4834 = vmatpush1.msra.mxu0 %v4833
    %4835 = vmatprep.subr.mxu0 0.0
    %v4836 = vand.u32 %v4599, 4294901760
    %v4837 = vsub.f32 %v4599, %v4836
    %4838 = vmatpush1.msra.mxu0 %v4837
    %4839 = vmatprep.subr.mxu0 0.0
    %v4840 = vand.u32 %v4598, 4294901760
    %v4841 = vsub.f32 %v4598, %v4840
    %4842 = vmatpush1.msra.mxu0 %v4841
    %4843 = vmatprep.subr.mxu0 0.0
    %v4844 = vand.u32 %v4597, 4294901760
    %v4845 = vsub.f32 %v4597, %v4844
    %4846 = vmatpush1.msra.mxu0 %v4845
    %4847 = vmatprep.subr.mxu0 0.0
    %v4848 = vand.u32 %v4596, 4294901760
    %v4849 = vsub.f32 %v4596, %v4848
    %4850 = vmatpush1.msra.mxu0 %v4849
    %4851 = vmatprep.subr.mxu0 0.0
    %4852 = vmatpush2.msra.mxu0 0.0
    %4853 = vmatprep.subr.mxu0 0.0
    %4854 = vmatpush2.msra.mxu0 0.0
    %4855 = vmatprep.subr.mxu0 0.0
    %4856 = vmatpush2.msra.mxu0 0.0
    %4857 = vmatprep.subr.mxu0 0.0
    %4858 = vmatpush2.msra.mxu0 0.0
    %4859 = vmatprep.subr.mxu0 0.0
    %4860 = vmatpush2.msra.mxu0 0.0
    %4861 = vmatprep.subr.mxu0 0.0
    %4862 = vmatpush2.msra.mxu0 0.0
    %4863 = vmatprep.subr.mxu0 0.0
    %4864 = vmatpush2.msra.mxu0 0.0
    %4865 = vmatprep.subr.mxu0 0.0
    %4866 = vmatpush2.msra.mxu0 0.0
    %4867 = vmatprep.subr.mxu0 0.0
    %4868 = vmatpush2.msra.mxu0 0.0
    %4869 = vmatprep.subr.mxu0 0.0
    %4870 = vmatpush2.msra.mxu0 0.0
    %4871 = vmatprep.subr.mxu0 0.0
    %4872 = vmatpush2.msra.mxu0 0.0
    %4873 = vmatprep.subr.mxu0 0.0
    %4874 = vmatpush2.msra.mxu0 0.0
    %4875 = vmatprep.subr.mxu0 0.0
    %4876 = vmatpush2.msra.mxu0 0.0
    %4877 = vmatprep.subr.mxu0 0.0
    %4878 = vmatpush2.msra.mxu0 0.0
    %4879 = vmatprep.subr.mxu0 0.0
    %4880 = vmatpush2.msra.mxu0 0.0
    %4881 = vmatprep.subr.mxu0 0.0
    %4882 = vmatpush2.msra.mxu0 0.0
    %4883 = vmatprep.mubr.f32.mxu0 0.0
    %v4884 = vand.u32 %v4607, 4294901760
    %v4885 = vsub.f32 %v4607, %v4884
    %4886 = vmatmul.mubr.f32.gmra.mxu0 %v4885
    %v4887 = vpop.f32.mrf.mxu0
    %v4888 = vadd.f32 %v4800, %v4887
    %v4889 = vpop.f32.mrf.mxu0
    %4890 = vdwg.mxu0
    %4891 = vmatprep.subr.mxu0 0.0
    %4892 = vmatpush1.msra.mxu0 0.0
    %4893 = vmatprep.subr.mxu0 0.0
    %4894 = vmatpush1.msra.mxu0 0.0
    %4895 = vmatprep.subr.mxu0 0.0
    %4896 = vmatpush1.msra.mxu0 0.0
    %4897 = vmatprep.subr.mxu0 0.0
    %4898 = vmatpush1.msra.mxu0 0.0
    %4899 = vmatprep.subr.mxu0 0.0
    %4900 = vmatpush1.msra.mxu0 0.0
    %4901 = vmatprep.subr.mxu0 0.0
    %4902 = vmatpush1.msra.mxu0 0.0
    %4903 = vmatprep.subr.mxu0 0.0
    %4904 = vmatpush1.msra.mxu0 0.0
    %4905 = vmatprep.subr.mxu0 0.0
    %4906 = vmatpush1.msra.mxu0 0.0
    %4907 = vmatprep.subr.mxu0 0.0
    %v4908 = vand.u32 %v4603, 4294901760
    %4909 = vmatpush1.msra.mxu0 %v4908
    %4910 = vmatprep.subr.mxu0 0.0
    %v4911 = vand.u32 %v4602, 4294901760
    %4912 = vmatpush1.msra.mxu0 %v4911
    %4913 = vmatprep.subr.mxu0 0.0
    %v4914 = vand.u32 %v4601, 4294901760
    %4915 = vmatpush1.msra.mxu0 %v4914
    %4916 = vmatprep.subr.mxu0 0.0
    %v4917 = vand.u32 %v4600, 4294901760
    %4918 = vmatpush1.msra.mxu0 %v4917
    %4919 = vmatprep.subr.mxu0 0.0
    %v4920 = vand.u32 %v4599, 4294901760
    %4921 = vmatpush1.msra.mxu0 %v4920
    %4922 = vmatprep.subr.mxu0 0.0
    %v4923 = vand.u32 %v4598, 4294901760
    %4924 = vmatpush1.msra.mxu0 %v4923
    %4925 = vmatprep.subr.mxu0 0.0
    %v4926 = vand.u32 %v4597, 4294901760
    %4927 = vmatpush1.msra.mxu0 %v4926
    %4928 = vmatprep.subr.mxu0 0.0
    %v4929 = vand.u32 %v4596, 4294901760
    %4930 = vmatpush1.msra.mxu0 %v4929
    %4931 = vmatprep.subr.mxu0 0.0
    %4932 = vmatpush2.msra.mxu0 0.0
    %4933 = vmatprep.subr.mxu0 0.0
    %4934 = vmatpush2.msra.mxu0 0.0
    %4935 = vmatprep.subr.mxu0 0.0
    %4936 = vmatpush2.msra.mxu0 0.0
    %4937 = vmatprep.subr.mxu0 0.0
    %4938 = vmatpush2.msra.mxu0 0.0
    %4939 = vmatprep.subr.mxu0 0.0
    %4940 = vmatpush2.msra.mxu0 0.0
    %4941 = vmatprep.subr.mxu0 0.0
    %4942 = vmatpush2.msra.mxu0 0.0
    %4943 = vmatprep.subr.mxu0 0.0
    %4944 = vmatpush2.msra.mxu0 0.0
    %4945 = vmatprep.subr.mxu0 0.0
    %4946 = vmatpush2.msra.mxu0 0.0
    %4947 = vmatprep.subr.mxu0 0.0
    %4948 = vmatpush2.msra.mxu0 0.0
    %4949 = vmatprep.subr.mxu0 0.0
    %4950 = vmatpush2.msra.mxu0 0.0
    %4951 = vmatprep.subr.mxu0 0.0
    %4952 = vmatpush2.msra.mxu0 0.0
    %4953 = vmatprep.subr.mxu0 0.0
    %4954 = vmatpush2.msra.mxu0 0.0
    %4955 = vmatprep.subr.mxu0 0.0
    %4956 = vmatpush2.msra.mxu0 0.0
    %4957 = vmatprep.subr.mxu0 0.0
    %4958 = vmatpush2.msra.mxu0 0.0
    %4959 = vmatprep.subr.mxu0 0.0
    %4960 = vmatpush2.msra.mxu0 0.0
    %4961 = vmatprep.subr.mxu0 0.0
    %4962 = vmatpush2.msra.mxu0 0.0
    %4963 = vmatprep.mubr.f32.mxu0 0.0
    %v4964 = vand.u32 %v4607, 4294901760
    %v4965 = vsub.f32 %v4607, %v4964
    %v4966 = vand.u32 %v4965, 4294901760
    %4967 = vmatmul.mubr.f32.gmra.mxu0 %v4966
    %v4968 = vpop.f32.mrf.mxu0
    %v4969 = vadd.f32 %v4888, %v4968
    %v4970 = vpop.f32.mrf.mxu0
    %4971 = vdwg.mxu0
    %4972 = vmatprep.subr.mxu0 0.0
    %4973 = vmatpush1.msra.mxu0 0.0
    %4974 = vmatprep.subr.mxu0 0.0
    %4975 = vmatpush1.msra.mxu0 0.0
    %4976 = vmatprep.subr.mxu0 0.0
    %4977 = vmatpush1.msra.mxu0 0.0
    %4978 = vmatprep.subr.mxu0 0.0
    %4979 = vmatpush1.msra.mxu0 0.0
    %4980 = vmatprep.subr.mxu0 0.0
    %4981 = vmatpush1.msra.mxu0 0.0
    %4982 = vmatprep.subr.mxu0 0.0
    %4983 = vmatpush1.msra.mxu0 0.0
    %4984 = vmatprep.subr.mxu0 0.0
    %4985 = vmatpush1.msra.mxu0 0.0
    %4986 = vmatprep.subr.mxu0 0.0
    %4987 = vmatpush1.msra.mxu0 0.0
    %4988 = vmatprep.subr.mxu0 0.0
    %v4989 = vand.u32 %v4603, 4294901760
    %v4990 = vsub.f32 %v4603, %v4989
    %v4991 = vand.u32 %v4990, 4294901760
    %4992 = vmatpush1.msra.mxu0 %v4991
    %4993 = vmatprep.subr.mxu0 0.0
    %v4994 = vand.u32 %v4602, 4294901760
    %v4995 = vsub.f32 %v4602, %v4994
    %v4996 = vand.u32 %v4995, 4294901760
    %4997 = vmatpush1.msra.mxu0 %v4996
    %4998 = vmatprep.subr.mxu0 0.0
    %v4999 = vand.u32 %v4601, 4294901760
    %v5000 = vsub.f32 %v4601, %v4999
    %v5001 = vand.u32 %v5000, 4294901760
    %5002 = vmatpush1.msra.mxu0 %v5001
    %5003 = vmatprep.subr.mxu0 0.0
    %v5004 = vand.u32 %v4600, 4294901760
    %v5005 = vsub.f32 %v4600, %v5004
    %v5006 = vand.u32 %v5005, 4294901760
    %5007 = vmatpush1.msra.mxu0 %v5006
    %5008 = vmatprep.subr.mxu0 0.0
    %v5009 = vand.u32 %v4599, 4294901760
    %v5010 = vsub.f32 %v4599, %v5009
    %v5011 = vand.u32 %v5010, 4294901760
    %5012 = vmatpush1.msra.mxu0 %v5011
    %5013 = vmatprep.subr.mxu0 0.0
    %v5014 = vand.u32 %v4598, 4294901760
    %v5015 = vsub.f32 %v4598, %v5014
    %v5016 = vand.u32 %v5015, 4294901760
    %5017 = vmatpush1.msra.mxu0 %v5016
    %5018 = vmatprep.subr.mxu0 0.0
    %v5019 = vand.u32 %v4597, 4294901760
    %v5020 = vsub.f32 %v4597, %v5019
    %v5021 = vand.u32 %v5020, 4294901760
    %5022 = vmatpush1.msra.mxu0 %v5021
    %5023 = vmatprep.subr.mxu0 0.0
    %v5024 = vand.u32 %v4596, 4294901760
    %v5025 = vsub.f32 %v4596, %v5024
    %v5026 = vand.u32 %v5025, 4294901760
    %5027 = vmatpush1.msra.mxu0 %v5026
    %5028 = vmatprep.subr.mxu0 0.0
    %5029 = vmatpush2.msra.mxu0 0.0
    %5030 = vmatprep.subr.mxu0 0.0
    %5031 = vmatpush2.msra.mxu0 0.0
    %5032 = vmatprep.subr.mxu0 0.0
    %5033 = vmatpush2.msra.mxu0 0.0
    %5034 = vmatprep.subr.mxu0 0.0
    %5035 = vmatpush2.msra.mxu0 0.0
    %5036 = vmatprep.subr.mxu0 0.0
    %5037 = vmatpush2.msra.mxu0 0.0
    %5038 = vmatprep.subr.mxu0 0.0
    %5039 = vmatpush2.msra.mxu0 0.0
    %5040 = vmatprep.subr.mxu0 0.0
    %5041 = vmatpush2.msra.mxu0 0.0
    %5042 = vmatprep.subr.mxu0 0.0
    %5043 = vmatpush2.msra.mxu0 0.0
    %5044 = vmatprep.subr.mxu0 0.0
    %5045 = vmatpush2.msra.mxu0 0.0
    %5046 = vmatprep.subr.mxu0 0.0
    %5047 = vmatpush2.msra.mxu0 0.0
    %5048 = vmatprep.subr.mxu0 0.0
    %5049 = vmatpush2.msra.mxu0 0.0
    %5050 = vmatprep.subr.mxu0 0.0
    %5051 = vmatpush2.msra.mxu0 0.0
    %5052 = vmatprep.subr.mxu0 0.0
    %5053 = vmatpush2.msra.mxu0 0.0
    %5054 = vmatprep.subr.mxu0 0.0
    %5055 = vmatpush2.msra.mxu0 0.0
    %5056 = vmatprep.subr.mxu0 0.0
    %5057 = vmatpush2.msra.mxu0 0.0
    %5058 = vmatprep.subr.mxu0 0.0
    %5059 = vmatpush2.msra.mxu0 0.0
    %5060 = vmatprep.mubr.f32.mxu0 0.0
    %v5061 = vand.u32 %v4607, 4294901760
    %5062 = vmatmul.mubr.f32.gmra.mxu0 %v5061
    %v5063 = vpop.f32.mrf.mxu0
    %v5064 = vadd.f32 %v4969, %v5063
    %v5065 = vpop.f32.mrf.mxu0
    %5066 = vdwg.mxu0
    %5067 = vmatprep.subr.mxu0 0.0
    %5068 = vmatpush1.msra.mxu0 0.0
    %5069 = vmatprep.subr.mxu0 0.0
    %5070 = vmatpush1.msra.mxu0 0.0
    %5071 = vmatprep.subr.mxu0 0.0
    %5072 = vmatpush1.msra.mxu0 0.0
    %5073 = vmatprep.subr.mxu0 0.0
    %5074 = vmatpush1.msra.mxu0 0.0
    %5075 = vmatprep.subr.mxu0 0.0
    %5076 = vmatpush1.msra.mxu0 0.0
    %5077 = vmatprep.subr.mxu0 0.0
    %5078 = vmatpush1.msra.mxu0 0.0
    %5079 = vmatprep.subr.mxu0 0.0
    %5080 = vmatpush1.msra.mxu0 0.0
    %5081 = vmatprep.subr.mxu0 0.0
    %5082 = vmatpush1.msra.mxu0 0.0
    %5083 = vmatprep.subr.mxu0 0.0
    %v5084 = vand.u32 %v4603, 4294901760
    %5085 = vmatpush1.msra.mxu0 %v5084
    %5086 = vmatprep.subr.mxu0 0.0
    %v5087 = vand.u32 %v4602, 4294901760
    %5088 = vmatpush1.msra.mxu0 %v5087
    %5089 = vmatprep.subr.mxu0 0.0
    %v5090 = vand.u32 %v4601, 4294901760
    %5091 = vmatpush1.msra.mxu0 %v5090
    %5092 = vmatprep.subr.mxu0 0.0
    %v5093 = vand.u32 %v4600, 4294901760
    %5094 = vmatpush1.msra.mxu0 %v5093
    %5095 = vmatprep.subr.mxu0 0.0
    %v5096 = vand.u32 %v4599, 4294901760
    %5097 = vmatpush1.msra.mxu0 %v5096
    %5098 = vmatprep.subr.mxu0 0.0
    %v5099 = vand.u32 %v4598, 4294901760
    %5100 = vmatpush1.msra.mxu0 %v5099
    %5101 = vmatprep.subr.mxu0 0.0
    %v5102 = vand.u32 %v4597, 4294901760
    %5103 = vmatpush1.msra.mxu0 %v5102
    %5104 = vmatprep.subr.mxu0 0.0
    %v5105 = vand.u32 %v4596, 4294901760
    %5106 = vmatpush1.msra.mxu0 %v5105
    %5107 = vmatprep.subr.mxu0 0.0
    %5108 = vmatpush2.msra.mxu0 0.0
    %5109 = vmatprep.subr.mxu0 0.0
    %5110 = vmatpush2.msra.mxu0 0.0
    %5111 = vmatprep.subr.mxu0 0.0
    %5112 = vmatpush2.msra.mxu0 0.0
    %5113 = vmatprep.subr.mxu0 0.0
    %5114 = vmatpush2.msra.mxu0 0.0
    %5115 = vmatprep.subr.mxu0 0.0
    %5116 = vmatpush2.msra.mxu0 0.0
    %5117 = vmatprep.subr.mxu0 0.0
    %5118 = vmatpush2.msra.mxu0 0.0
    %5119 = vmatprep.subr.mxu0 0.0
    %5120 = vmatpush2.msra.mxu0 0.0
    %5121 = vmatprep.subr.mxu0 0.0
    %5122 = vmatpush2.msra.mxu0 0.0
    %5123 = vmatprep.subr.mxu0 0.0
    %5124 = vmatpush2.msra.mxu0 0.0
    %5125 = vmatprep.subr.mxu0 0.0
    %5126 = vmatpush2.msra.mxu0 0.0
    %5127 = vmatprep.subr.mxu0 0.0
    %5128 = vmatpush2.msra.mxu0 0.0
    %5129 = vmatprep.subr.mxu0 0.0
    %5130 = vmatpush2.msra.mxu0 0.0
    %5131 = vmatprep.subr.mxu0 0.0
    %5132 = vmatpush2.msra.mxu0 0.0
    %5133 = vmatprep.subr.mxu0 0.0
    %5134 = vmatpush2.msra.mxu0 0.0
    %5135 = vmatprep.subr.mxu0 0.0
    %5136 = vmatpush2.msra.mxu0 0.0
    %5137 = vmatprep.subr.mxu0 0.0
    %5138 = vmatpush2.msra.mxu0 0.0
    %5139 = vmatprep.mubr.f32.mxu0 0.0
    %v5140 = vand.u32 %v4607, 4294901760
    %5141 = vmatmul.mubr.f32.gmra.mxu0 %v5140
    %v5142 = vpop.f32.mrf.mxu0
    %v5143 = vadd.f32 %v5064, %v5142
    %v5144 = vpop.f32.mrf.mxu0
    %5145 = vdwg.mxu0
    %v5146 = vld [vmem:[#allocation3 + $0xe0] ss:$0 sm:$0xff]
    %v5147 = vld [vmem:[#allocation3 + $0xf0] ss:$0 sm:$0xff]
    %v5148 = vmul.f32 %v5143, %v5146
    %v5149 = vsel %vm955, %v5148, 0.0
    %5150 = vadd.xlane.f32.xlu0 %v5149
    %v5151 = vpop.xlane.xlu0 %5150
    %v5152 = vadd.f32 %v5151, %v5147
    %vm5153 = vcmask 7168
    %5154 = vst.msk [vmem:[%s3] sm:$0xff] %vm5153, %v5152
    // Predicated region
    $region18: #{tpu_custom_call.1} parent=1 // pred_check
      _
    $region19: #{tpu_custom_call.1} parent=1 // pred_check_branch
      %5156 = sbr.rel (0) target = $region21
    $region20: #{tpu_custom_call.1} parent=1 // pred_region
      _
    $region21: #{tpu_custom_call.1} parent=1 // pred_fallthru
      _
    // Predicated region
    $region22: #{tpu_custom_call.1} parent=1 // pred_check
      _
    $region23: #{tpu_custom_call.1} parent=1 // pred_check_branch
      %5158 = sbr.rel (0) target = $region25
    $region24: #{tpu_custom_call.1} parent=1 // pred_region
      _
    $region25: #{tpu_custom_call.1} parent=1 // pred_fallthru
      _
    %5159 = vsyncpa [#allocation4], 1

</llo_original>
